<compile_context>
chip_gen: v5e
topology: v5e:2x2
jax: 0.10.0
libtpu: 0.0.40
codegen_flags: <defaults>
</compile_context>

<pallas_src>
import jax
import jax.numpy as jnp
from jax import lax
from jax.experimental import pallas as pl
from jax.experimental.pallas import tpu as pltpu

_SLOPE = 0.01          # nn.LeakyReLU(0.01), as in the PyTorch module
_COUT_LAST = 128       # pad the 1-channel head output to a full lane width


# -----------------------------------------------------------------------------
# Fused kernel builder (all loops statically unrolled at trace time: toy sizes)
# -----------------------------------------------------------------------------
def _make_fused_kernel(num_s2, chans, spats):
    """num_s2: number of 4x4/stride-2 conv layers (repeat_num).
    chans:  [c_in_padded, c_1, ..., c_R] channel counts.
    spats:  [s_0, s_1, ..., s_R] square spatial sizes, s_i = s_{i-1} // 2."""

    def kernel(*refs):
        xe_ref, xo_ref = refs[0], refs[1]              # even / odd padded cols of x
        w_refs = refs[2:2 + num_s2]                    # (16*c_in, c_out) bf16
        b_refs = refs[2 + num_s2:2 + 2 * num_s2]       # (1, c_out) f32
        wl_ref = refs[2 + 2 * num_s2]                  # (9*c_R, 128) bf16
        out_ref = refs[3 + 2 * num_s2]                 # (sf, sf, 128) f32
        scr = refs[4 + 2 * num_s2:]
        cg_refs = [(scr[2 * l], scr[2 * l + 1]) for l in range(num_s2 - 1)]
        act_f = scr[2 * (num_s2 - 1)]                  # plain padded input of head

        def build_patches_s2(ref_e, ref_o, n):
            # im2col for a 4x4 / stride-2 / pad-1 conv with all 16 taps folded
            # into K.  ref_e[r, m] = padded pixel (r, 2m); ref_o[r, m] = (r, 2m+1).
            rows = []
            for oh in range(n):
                taps = []
                for di in range(4):
                    r = 2 * oh + di
                    ve = ref_e[r]                      # (n+1, c_in)
                    vo = ref_o[r]                      # (n+1, c_in)
                    # dj = 0,1,2,3  <->  padded cols 2ow, 2ow+1, 2ow+2, 2ow+3
                    taps += [ve[0:n, :], vo[0:n, :], ve[1:n + 1, :], vo[1:n + 1, :]]
                rows.append(jnp.concatenate(taps, axis=-1))    # (n, 16*c_in)
            return jnp.concatenate(rows, axis=0)               # (n*n, 16*c_in)

        in_e, in_o = xe_ref, xo_ref
        for l in range(num_s2):
            n = spats[l + 1]
            c_out = chans[l + 1]
            patches = build_patches_s2(in_e, in_o, n)
            y = jnp.dot(patches.astype(jnp.bfloat16), w_refs[l][...],
                        preferred_element_type=jnp.float32)    # (n*n, c_out) f32
            y = y + b_refs[l][...]
            y = jnp.where(y >= 0.0, y, _SLOPE * y)             # LeakyReLU(0.01)

            if l < num_s2 - 1:
                # write column-parity-split, 1-px zero-bordered activation for
                # the next stride-2 layer
                oe, oo = cg_refs[l]
                hw = n // 2
                zrow = jnp.zeros((hw + 1, c_out), jnp.float32)
                oe[0] = zrow
                oe[n + 1] = zrow
                oo[0] = zrow
                oo[n + 1] = zrow
                zcol = jnp.zeros((n + 2, 1, c_out), jnp.float32)
                oe[:, 0:1, :] = zcol                   # padded col 0  (left pad)
                oo[:, hw:hw + 1, :] = zcol             # padded col n+1 (right pad)
                # constant 0/1 parity selectors: MXU does the stride-2 gather
                ri = lax.broadcasted_iota(jnp.int32, (hw, n), 0)
                ci = lax.broadcasted_iota(jnp.int32, (hw, n), 1)
                s_ev = jnp.where(ci == 2 * ri, 1.0, 0.0)
                s_od = jnp.where(ci == 2 * ri + 1, 1.0, 0.0)
                for oh in range(n):
                    yr = y[oh * n:(oh + 1) * n, :]                     # (n, c_out)
                    y_ev = jnp.dot(s_ev, yr, preferred_element_type=jnp.float32)
                    y_od = jnp.dot(s_od, yr, preferred_element_type=jnp.float32)
                    oo[oh + 1, 0:hw, :] = y_ev      # even ow -> odd padded col
                    oe[oh + 1, 1:hw + 1, :] = y_od  # odd ow  -> even padded col
                in_e, in_o = oe, oo
            else:
                # last stride-2 layer: plain padded NHWC layout for the 3x3 head
                sf = n
                zrow = jnp.zeros((sf + 2, c_out), jnp.float32)
                act_f[0] = zrow
                act_f[sf + 1] = zrow
                zcol = jnp.zeros((sf + 2, 1, c_out), jnp.float32)
                act_f[:, 0:1, :] = zcol
                act_f[:, sf + 1:sf + 2, :] = zcol
                for oh in range(sf):
                    act_f[oh + 1, 1:sf + 1, :] = y[oh * sf:(oh + 1) * sf, :]

        # ---- head: Conv2d(c_R, 1, k=3, s=1, p=1, bias=False), Cout padded to 128
        sf = spats[num_s2]
        rows = []
        for oh in range(sf):
            taps = []
            for di in range(3):
                v = act_f[oh + di]                     # (sf+2, c_R)
                for dj in range(3):
                    taps.append(v[dj:dj + sf, :])
            rows.append(jnp.concatenate(taps, axis=-1))        # (sf, 9*c_R)
        ph = jnp.concatenate(rows, axis=0)                     # (sf*sf, 9*c_R)
        oy = jnp.dot(ph.astype(jnp.bfloat16), wl_ref[...],
                     preferred_element_type=jnp.float32)       # (sf*sf, 128)
        for oh in range(sf):
            out_ref[oh] = oy[oh * sf:(oh + 1) * sf, :]

    return kernel


# -----------------------------------------------------------------------------
# Public forward: NCHW in / NCHW out (PyTorch semantics)
# -----------------------------------------------------------------------------
def nlayer_discriminator_forward(x, params, w_last):
    """x: (N, 3, H, W) f32.  params: [(w, b)] torch-layout 4x4/s2 convs.
    w_last: (1, C_R, 3, 3) torch-layout.  Returns (N, 1, H/2^R, W/2^R) f32."""
    bsz, c_in, hh, ww = x.shape
    assert hh == ww, "square inputs expected"
    num_s2 = len(params)
    assert hh % (2 ** num_s2) == 0
    couts = [wi.shape[0] for (wi, _) in params]
    spats = [hh // (2 ** i) for i in range(num_s2 + 1)]
    sf = spats[-1]

    cin_p = ((c_in + 7) // 8) * 8          # zero-pad input channels (exact)
    chans = [cin_p] + couts

    # ---- one-time boundary layout work in XLA: NCHW -> NHWC, channel pad,
    #      1px zero border, split into even / odd padded columns --------------
    x_nhwc = jnp.transpose(x, (0, 2, 3, 1)).astype(jnp.float32)
    x_nhwc = jnp.pad(x_nhwc, ((0, 0), (0, 0), (0, 0), (0, cin_p - c_in)))
    x_pad = jnp.pad(x_nhwc, ((0, 0), (1, 1), (1, 1), (0, 0)))
    x_even = x_pad[:, :, 0::2, :]          # (N, H+2, W//2+1, cin_p)
    x_odd = x_pad[:, :, 1::2, :]

    # ---- fold all 16 taps of each 4x4 conv into the contraction dim (bf16) ---
    w_folds, biases = [], []
    for li, (wi, bi) in enumerate(params):
        co, ci, kh, kw = wi.shape
        wt = jnp.transpose(wi, (2, 3, 1, 0)).reshape(kh * kw, ci, co)
        if li == 0 and ci < cin_p:
            wt = jnp.pad(wt, ((0, 0), (0, cin_p - ci), (0, 0)))
        w_folds.append(wt.reshape(-1, co).astype(jnp.bfloat16))  # (16*c_in, c_out)
        biases.append(bi.reshape(1, co).astype(jnp.float32))
    clo, cli, kh, kw = w_last.shape                               # (1, c_R, 3, 3)
    wl = jnp.transpose(w_last, (2, 3, 1, 0)).reshape(kh * kw, cli, clo)
    wl = jnp.pad(wl, ((0, 0), (0, 0), (0, _COUT_LAST - clo)))     # lane-dense head
    wl = wl.reshape(kh * kw * cli, _COUT_LAST).astype(jnp.bfloat16)

    kernel = _make_fused_kernel(num_s2, chans, spats)

    def _const_spec(a):
        nd = a.ndim
        return pl.BlockSpec(a.shape, lambda i, nd=nd: (0,) * nd)

    slots0 = ww // 2 + 1
    x_spec = pl.BlockSpec((None, hh + 2, slots0, cin_p), lambda i: (i, 0, 0, 0))
    in_specs = ([x_spec, x_spec]
                + [_const_spec(a) for a in w_folds]
                + [_const_spec(a) for a in biases]
                + [_const_spec(wl)])
    out_specs = pl.BlockSpec((None, sf, sf, _COUT_LAST), lambda i: (i, 0, 0, 0))

    scratch = []
    for l in range(num_s2 - 1):
        nl = spats[l + 1]
        shape = (nl + 2, nl // 2 + 1, chans[l + 1])
        scratch.append(pltpu.VMEM(shape, jnp.float32))   # even padded cols
        scratch.append(pltpu.VMEM(shape, jnp.float32))   # odd padded cols
    scratch.append(pltpu.VMEM((sf + 2, sf + 2, chans[num_s2]), jnp.float32))

    out = pl.pallas_call(
        kernel,
        out_shape=jax.ShapeDtypeStruct((bsz, sf, sf, _COUT_LAST), jnp.float32),
        grid_spec=pltpu.PrefetchScalarGridSpec(
            num_scalar_prefetch=0,
            grid=(bsz,),                         # one image per grid step
            in_specs=in_specs,
            out_specs=out_specs,
            scratch_shapes=scratch),
        compiler_params=pltpu.CompilerParams(
            dimension_semantics=("parallel",),   # shard batch across TensorCores
            vmem_limit_bytes=32 * 1024 * 1024),
    )(x_even, x_odd, *w_folds, *biases, wl)

    # back to NCHW, keep only the real (single) output channel
    return jnp.transpose(out[..., :1], (0, 3, 1, 2))


# -----------------------------------------------------------------------------
# Parameter construction (toy sizes) + pure-JAX reference for cross-check
# -----------------------------------------------------------------------------
def init_params(key, conv_dim=8, repeat_num=3):
    params = []
    cin, cout = 3, conv_dim
    for _ in range(repeat_num):
        key, kw_, kb_ = jax.random.split(key, 3)
        w = jax.random.normal(kw_, (cout, cin, 4, 4), jnp.float32) * 0.05
        b = jax.random.normal(kb_, (cout,), jnp.float32) * 0.05
        params.append((w, b))
        cin, cout = cout, cout * 2
    key, kw_ = jax.random.split(key)
    w_last = jax.random.normal(kw_, (1, cin, 3, 3), jnp.float32) * 0.05
    return params, w_last


def _ref_forward(x, params, w_last):
    """Pure-JAX reference with the same bf16-operand / f32-accumulate contract."""
    def conv(h, w, b, stride, pad):
        y = lax.conv_general_dilated(
            h.astype(jnp.bfloat16), w.astype(jnp.bfloat16),
            window_strides=(stride, stride),
            padding=((pad, pad), (pad, pad)),
            dimension_numbers=("NCHW", "OIHW", "NCHW"),
            preferred_element_type=jnp.float32)
        if b is not None:
            y = y + b.reshape(1, -1, 1, 1)
        return y

    h = x
    for (w, b) in params:
        h = conv(h, w, b, 2, 1)
        h = jnp.where(h >= 0.0, h, _SLOPE * h)
    return conv(h, w_last, None, 1, 1)


if __name__ == "__main__":
    # image_size=16, conv_dim=8, repeat_num=3  ->  (2, 3, 16, 16) -> (2, 1, 2, 2)
    key = jax.random.PRNGKey(0)
    key, kx = jax.random.split(key)
    x = jax.random.normal(kx, (2, 3, 16, 16), jnp.float32)

    params, w_last = init_params(key, conv_dim=8, repeat_num=3)

    out = nlayer_discriminator_forward(x, params, w_last)
    out = jax.block_until_ready(out)
    assert out.shape == (2, 1, 2, 2), out.shape

    ref = jax.block_until_ready(_ref_forward(x, params, w_last))
    max_diff = float(jnp.max(jnp.abs(out - ref)))
    assert jnp.allclose(out, ref, atol=2e-3, rtol=2e-2), f"max abs diff {max_diff}"

    print("KERNEL_OK")
</pallas_src>

<mosaic_0001>
module attributes {stable_mosaic.version = 11 : i64} {
  func.func @kernel(%arg0: i32, %arg1: memref<1x18x9x8xf32, #tpu.memory_space<vmem>>, %arg2: memref<1x18x9x8xf32, #tpu.memory_space<vmem>>, %arg3: memref<128x8xbf16, #tpu.memory_space<vmem>>, %arg4: memref<128x16xbf16, #tpu.memory_space<vmem>>, %arg5: memref<256x32xbf16, #tpu.memory_space<vmem>>, %arg6: memref<1x8xf32, #tpu.memory_space<vmem>>, %arg7: memref<1x16xf32, #tpu.memory_space<vmem>>, %arg8: memref<1x32xf32, #tpu.memory_space<vmem>>, %arg9: memref<288x128xbf16, #tpu.memory_space<vmem>>, %arg10: memref<1x2x2x128xf32, #tpu.memory_space<vmem>>, %arg11: memref<10x5x8xf32, #tpu.memory_space<vmem>>, %arg12: memref<10x5x8xf32, #tpu.memory_space<vmem>>, %arg13: memref<6x3x16xf32, #tpu.memory_space<vmem>>, %arg14: memref<6x3x16xf32, #tpu.memory_space<vmem>>, %arg15: memref<4x4x32xf32, #tpu.memory_space<vmem>>) attributes {dimension_semantics = [#tpu.dimension_semantics<parallel>], iteration_bounds = array<i64: 2>, scalar_prefetch = 0 : i64, scratch_operands = 5 : i64, tpu.core_type = #tpu.core_type<tc>, window_params = [{transform_indices = @transform_0, window_bounds = array<i64: 1, 18, 9, 8>}, {transform_indices = @transform_1, window_bounds = array<i64: 1, 18, 9, 8>}, {pipeline_mode = #tpu.pipeline_mode<synchronous>, transform_indices = @transform_2, window_bounds = array<i64: 128, 8>}, {pipeline_mode = #tpu.pipeline_mode<synchronous>, transform_indices = @transform_3, window_bounds = array<i64: 128, 16>}, {pipeline_mode = #tpu.pipeline_mode<synchronous>, transform_indices = @transform_4, window_bounds = array<i64: 256, 32>}, {pipeline_mode = #tpu.pipeline_mode<synchronous>, transform_indices = @transform_5, window_bounds = array<i64: 1, 8>}, {pipeline_mode = #tpu.pipeline_mode<synchronous>, transform_indices = @transform_6, window_bounds = array<i64: 1, 16>}, {pipeline_mode = #tpu.pipeline_mode<synchronous>, transform_indices = @transform_7, window_bounds = array<i64: 1, 32>}, {pipeline_mode = #tpu.pipeline_mode<synchronous>, transform_indices = @transform_8, window_bounds = array<i64: 288, 128>}, {transform_indices = @transform_9, window_bounds = array<i64: 1, 2, 2, 128>}]} {
    %c0 = arith.constant 0 : index
    %c0_0 = arith.constant 0 : index
    %c0_1 = arith.constant 0 : index
    %c0_2 = arith.constant 0 : index
    %0 = vector.load %arg1[%c0, %c0_0, %c0_1, %c0_2] : memref<1x18x9x8xf32, #tpu.memory_space<vmem>>, vector<1x1x9x8xf32>
    %1 = vector.shape_cast %0 : vector<1x1x9x8xf32> to vector<9x8xf32>
    %c0_3 = arith.constant 0 : index
    %c0_4 = arith.constant 0 : index
    %c0_5 = arith.constant 0 : index
    %c0_6 = arith.constant 0 : index
    %2 = vector.load %arg2[%c0_3, %c0_4, %c0_5, %c0_6] : memref<1x18x9x8xf32, #tpu.memory_space<vmem>>, vector<1x1x9x8xf32>
    %3 = vector.shape_cast %2 : vector<1x1x9x8xf32> to vector<9x8xf32>
    %4 = vector.extract_strided_slice %1 {offsets = [0, 0], sizes = [8, 8], strides = [1, 1]} : vector<9x8xf32> to vector<8x8xf32>
    %5 = vector.extract_strided_slice %3 {offsets = [0, 0], sizes = [8, 8], strides = [1, 1]} : vector<9x8xf32> to vector<8x8xf32>
    %6 = vector.extract_strided_slice %1 {offsets = [1, 0], sizes = [8, 8], strides = [1, 1]} : vector<9x8xf32> to vector<8x8xf32>
    %7 = vector.extract_strided_slice %3 {offsets = [1, 0], sizes = [8, 8], strides = [1, 1]} : vector<9x8xf32> to vector<8x8xf32>
    %c0_7 = arith.constant 0 : index
    %c1 = arith.constant 1 : index
    %c0_8 = arith.constant 0 : index
    %c0_9 = arith.constant 0 : index
    %8 = vector.load %arg1[%c0_7, %c1, %c0_8, %c0_9] : memref<1x18x9x8xf32, #tpu.memory_space<vmem>>, vector<1x1x9x8xf32>
    %9 = vector.shape_cast %8 : vector<1x1x9x8xf32> to vector<9x8xf32>
    %c0_10 = arith.constant 0 : index
    %c1_11 = arith.constant 1 : index
    %c0_12 = arith.constant 0 : index
    %c0_13 = arith.constant 0 : index
    %10 = vector.load %arg2[%c0_10, %c1_11, %c0_12, %c0_13] : memref<1x18x9x8xf32, #tpu.memory_space<vmem>>, vector<1x1x9x8xf32>
    %11 = vector.shape_cast %10 : vector<1x1x9x8xf32> to vector<9x8xf32>
    %12 = vector.extract_strided_slice %9 {offsets = [0, 0], sizes = [8, 8], strides = [1, 1]} : vector<9x8xf32> to vector<8x8xf32>
    %13 = vector.extract_strided_slice %11 {offsets = [0, 0], sizes = [8, 8], strides = [1, 1]} : vector<9x8xf32> to vector<8x8xf32>
    %14 = vector.extract_strided_slice %9 {offsets = [1, 0], sizes = [8, 8], strides = [1, 1]} : vector<9x8xf32> to vector<8x8xf32>
    %15 = vector.extract_strided_slice %11 {offsets = [1, 0], sizes = [8, 8], strides = [1, 1]} : vector<9x8xf32> to vector<8x8xf32>
    %c0_14 = arith.constant 0 : index
    %c2 = arith.constant 2 : index
    %c0_15 = arith.constant 0 : index
    %c0_16 = arith.constant 0 : index
    %16 = vector.load %arg1[%c0_14, %c2, %c0_15, %c0_16] : memref<1x18x9x8xf32, #tpu.memory_space<vmem>>, vector<1x1x9x8xf32>
    %17 = vector.shape_cast %16 : vector<1x1x9x8xf32> to vector<9x8xf32>
    %c0_17 = arith.constant 0 : index
    %c2_18 = arith.constant 2 : index
    %c0_19 = arith.constant 0 : index
    %c0_20 = arith.constant 0 : index
    %18 = vector.load %arg2[%c0_17, %c2_18, %c0_19, %c0_20] : memref<1x18x9x8xf32, #tpu.memory_space<vmem>>, vector<1x1x9x8xf32>
    %19 = vector.shape_cast %18 : vector<1x1x9x8xf32> to vector<9x8xf32>
    %20 = vector.extract_strided_slice %17 {offsets = [0, 0], sizes = [8, 8], strides = [1, 1]} : vector<9x8xf32> to vector<8x8xf32>
    %21 = vector.extract_strided_slice %19 {offsets = [0, 0], sizes = [8, 8], strides = [1, 1]} : vector<9x8xf32> to vector<8x8xf32>
    %22 = vector.extract_strided_slice %17 {offsets = [1, 0], sizes = [8, 8], strides = [1, 1]} : vector<9x8xf32> to vector<8x8xf32>
    %23 = vector.extract_strided_slice %19 {offsets = [1, 0], sizes = [8, 8], strides = [1, 1]} : vector<9x8xf32> to vector<8x8xf32>
    %c0_21 = arith.constant 0 : index
    %c3 = arith.constant 3 : index
    %c0_22 = arith.constant 0 : index
    %c0_23 = arith.constant 0 : index
    %24 = vector.load %arg1[%c0_21, %c3, %c0_22, %c0_23] : memref<1x18x9x8xf32, #tpu.memory_space<vmem>>, vector<1x1x9x8xf32>
    %25 = vector.shape_cast %24 : vector<1x1x9x8xf32> to vector<9x8xf32>
    %c0_24 = arith.constant 0 : index
    %c3_25 = arith.constant 3 : index
    %c0_26 = arith.constant 0 : index
    %c0_27 = arith.constant 0 : index
    %26 = vector.load %arg2[%c0_24, %c3_25, %c0_26, %c0_27] : memref<1x18x9x8xf32, #tpu.memory_space<vmem>>, vector<1x1x9x8xf32>
    %27 = vector.shape_cast %26 : vector<1x1x9x8xf32> to vector<9x8xf32>
    %28 = vector.extract_strided_slice %25 {offsets = [0, 0], sizes = [8, 8], strides = [1, 1]} : vector<9x8xf32> to vector<8x8xf32>
    %29 = vector.extract_strided_slice %27 {offsets = [0, 0], sizes = [8, 8], strides = [1, 1]} : vector<9x8xf32> to vector<8x8xf32>
    %30 = vector.extract_strided_slice %25 {offsets = [1, 0], sizes = [8, 8], strides = [1, 1]} : vector<9x8xf32> to vector<8x8xf32>
    %31 = vector.extract_strided_slice %27 {offsets = [1, 0], sizes = [8, 8], strides = [1, 1]} : vector<9x8xf32> to vector<8x8xf32>
    %32 = tpu.concatenate %4, %5, %6, %7, %12, %13, %14, %15, %20, %21, %22, %23, %28, %29, %30, %31 in 1 : vector<8x8xf32>, vector<8x8xf32>, vector<8x8xf32>, vector<8x8xf32>, vector<8x8xf32>, vector<8x8xf32>, vector<8x8xf32>, vector<8x8xf32>, vector<8x8xf32>, vector<8x8xf32>, vector<8x8xf32>, vector<8x8xf32>, vector<8x8xf32>, vector<8x8xf32>, vector<8x8xf32>, vector<8x8xf32> -> vector<8x128xf32>
    %c0_28 = arith.constant 0 : index
    %c2_29 = arith.constant 2 : index
    %c0_30 = arith.constant 0 : index
    %c0_31 = arith.constant 0 : index
    %33 = vector.load %arg1[%c0_28, %c2_29, %c0_30, %c0_31] : memref<1x18x9x8xf32, #tpu.memory_space<vmem>>, vector<1x1x9x8xf32>
    %34 = vector.shape_cast %33 : vector<1x1x9x8xf32> to vector<9x8xf32>
    %c0_32 = arith.constant 0 : index
    %c2_33 = arith.constant 2 : index
    %c0_34 = arith.constant 0 : index
    %c0_35 = arith.constant 0 : index
    %35 = vector.load %arg2[%c0_32, %c2_33, %c0_34, %c0_35] : memref<1x18x9x8xf32, #tpu.memory_space<vmem>>, vector<1x1x9x8xf32>
    %36 = vector.shape_cast %35 : vector<1x1x9x8xf32> to vector<9x8xf32>
    %37 = vector.extract_strided_slice %34 {offsets = [0, 0], sizes = [8, 8], strides = [1, 1]} : vector<9x8xf32> to vector<8x8xf32>
    %38 = vector.extract_strided_slice %36 {offsets = [0, 0], sizes = [8, 8], strides = [1, 1]} : vector<9x8xf32> to vector<8x8xf32>
    %39 = vector.extract_strided_slice %34 {offsets = [1, 0], sizes = [8, 8], strides = [1, 1]} : vector<9x8xf32> to vector<8x8xf32>
    %40 = vector.extract_strided_slice %36 {offsets = [1, 0], sizes = [8, 8], strides = [1, 1]} : vector<9x8xf32> to vector<8x8xf32>
    %c0_36 = arith.constant 0 : index
    %c3_37 = arith.constant 3 : index
    %c0_38 = arith.constant 0 : index
    %c0_39 = arith.constant 0 : index
    %41 = vector.load %arg1[%c0_36, %c3_37, %c0_38, %c0_39] : memref<1x18x9x8xf32, #tpu.memory_space<vmem>>, vector<1x1x9x8xf32>
    %42 = vector.shape_cast %41 : vector<1x1x9x8xf32> to vector<9x8xf32>
    %c0_40 = arith.constant 0 : index
    %c3_41 = arith.constant 3 : index
    %c0_42 = arith.constant 0 : index
    %c0_43 = arith.constant 0 : index
    %43 = vector.load %arg2[%c0_40, %c3_41, %c0_42, %c0_43] : memref<1x18x9x8xf32, #tpu.memory_space<vmem>>, vector<1x1x9x8xf32>
    %44 = vector.shape_cast %43 : vector<1x1x9x8xf32> to vector<9x8xf32>
    %45 = vector.extract_strided_slice %42 {offsets = [0, 0], sizes = [8, 8], strides = [1, 1]} : vector<9x8xf32> to vector<8x8xf32>
    %46 = vector.extract_strided_slice %44 {offsets = [0, 0], sizes = [8, 8], strides = [1, 1]} : vector<9x8xf32> to vector<8x8xf32>
    %47 = vector.extract_strided_slice %42 {offsets = [1, 0], sizes = [8, 8], strides = [1, 1]} : vector<9x8xf32> to vector<8x8xf32>
    %48 = vector.extract_strided_slice %44 {offsets = [1, 0], sizes = [8, 8], strides = [1, 1]} : vector<9x8xf32> to vector<8x8xf32>
    %c0_44 = arith.constant 0 : index
    %c4 = arith.constant 4 : index
    %c0_45 = arith.constant 0 : index
    %c0_46 = arith.constant 0 : index
    %49 = vector.load %arg1[%c0_44, %c4, %c0_45, %c0_46] : memref<1x18x9x8xf32, #tpu.memory_space<vmem>>, vector<1x1x9x8xf32>
    %50 = vector.shape_cast %49 : vector<1x1x9x8xf32> to vector<9x8xf32>
    %c0_47 = arith.constant 0 : index
    %c4_48 = arith.constant 4 : index
    %c0_49 = arith.constant 0 : index
    %c0_50 = arith.constant 0 : index
    %51 = vector.load %arg2[%c0_47, %c4_48, %c0_49, %c0_50] : memref<1x18x9x8xf32, #tpu.memory_space<vmem>>, vector<1x1x9x8xf32>
    %52 = vector.shape_cast %51 : vector<1x1x9x8xf32> to vector<9x8xf32>
    %53 = vector.extract_strided_slice %50 {offsets = [0, 0], sizes = [8, 8], strides = [1, 1]} : vector<9x8xf32> to vector<8x8xf32>
    %54 = vector.extract_strided_slice %52 {offsets = [0, 0], sizes = [8, 8], strides = [1, 1]} : vector<9x8xf32> to vector<8x8xf32>
    %55 = vector.extract_strided_slice %50 {offsets = [1, 0], sizes = [8, 8], strides = [1, 1]} : vector<9x8xf32> to vector<8x8xf32>
    %56 = vector.extract_strided_slice %52 {offsets = [1, 0], sizes = [8, 8], strides = [1, 1]} : vector<9x8xf32> to vector<8x8xf32>
    %c0_51 = arith.constant 0 : index
    %c5 = arith.constant 5 : index
    %c0_52 = arith.constant 0 : index
    %c0_53 = arith.constant 0 : index
    %57 = vector.load %arg1[%c0_51, %c5, %c0_52, %c0_53] : memref<1x18x9x8xf32, #tpu.memory_space<vmem>>, vector<1x1x9x8xf32>
    %58 = vector.shape_cast %57 : vector<1x1x9x8xf32> to vector<9x8xf32>
    %c0_54 = arith.constant 0 : index
    %c5_55 = arith.constant 5 : index
    %c0_56 = arith.constant 0 : index
    %c0_57 = arith.constant 0 : index
    %59 = vector.load %arg2[%c0_54, %c5_55, %c0_56, %c0_57] : memref<1x18x9x8xf32, #tpu.memory_space<vmem>>, vector<1x1x9x8xf32>
    %60 = vector.shape_cast %59 : vector<1x1x9x8xf32> to vector<9x8xf32>
    %61 = vector.extract_strided_slice %58 {offsets = [0, 0], sizes = [8, 8], strides = [1, 1]} : vector<9x8xf32> to vector<8x8xf32>
    %62 = vector.extract_strided_slice %60 {offsets = [0, 0], sizes = [8, 8], strides = [1, 1]} : vector<9x8xf32> to vector<8x8xf32>
    %63 = vector.extract_strided_slice %58 {offsets = [1, 0], sizes = [8, 8], strides = [1, 1]} : vector<9x8xf32> to vector<8x8xf32>
    %64 = vector.extract_strided_slice %60 {offsets = [1, 0], sizes = [8, 8], strides = [1, 1]} : vector<9x8xf32> to vector<8x8xf32>
    %65 = tpu.concatenate %37, %38, %39, %40, %45, %46, %47, %48, %53, %54, %55, %56, %61, %62, %63, %64 in 1 : vector<8x8xf32>, vector<8x8xf32>, vector<8x8xf32>, vector<8x8xf32>, vector<8x8xf32>, vector<8x8xf32>, vector<8x8xf32>, vector<8x8xf32>, vector<8x8xf32>, vector<8x8xf32>, vector<8x8xf32>, vector<8x8xf32>, vector<8x8xf32>, vector<8x8xf32>, vector<8x8xf32>, vector<8x8xf32> -> vector<8x128xf32>
    %c0_58 = arith.constant 0 : index
    %c4_59 = arith.constant 4 : index
    %c0_60 = arith.constant 0 : index
    %c0_61 = arith.constant 0 : index
    %66 = vector.load %arg1[%c0_58, %c4_59, %c0_60, %c0_61] : memref<1x18x9x8xf32, #tpu.memory_space<vmem>>, vector<1x1x9x8xf32>
    %67 = vector.shape_cast %66 : vector<1x1x9x8xf32> to vector<9x8xf32>
    %c0_62 = arith.constant 0 : index
    %c4_63 = arith.constant 4 : index
    %c0_64 = arith.constant 0 : index
    %c0_65 = arith.constant 0 : index
    %68 = vector.load %arg2[%c0_62, %c4_63, %c0_64, %c0_65] : memref<1x18x9x8xf32, #tpu.memory_space<vmem>>, vector<1x1x9x8xf32>
    %69 = vector.shape_cast %68 : vector<1x1x9x8xf32> to vector<9x8xf32>
    %70 = vector.extract_strided_slice %67 {offsets = [0, 0], sizes = [8, 8], strides = [1, 1]} : vector<9x8xf32> to vector<8x8xf32>
    %71 = vector.extract_strided_slice %69 {offsets = [0, 0], sizes = [8, 8], strides = [1, 1]} : vector<9x8xf32> to vector<8x8xf32>
    %72 = vector.extract_strided_slice %67 {offsets = [1, 0], sizes = [8, 8], strides = [1, 1]} : vector<9x8xf32> to vector<8x8xf32>
    %73 = vector.extract_strided_slice %69 {offsets = [1, 0], sizes = [8, 8], strides = [1, 1]} : vector<9x8xf32> to vector<8x8xf32>
    %c0_66 = arith.constant 0 : index
    %c5_67 = arith.constant 5 : index
    %c0_68 = arith.constant 0 : index
    %c0_69 = arith.constant 0 : index
    %74 = vector.load %arg1[%c0_66, %c5_67, %c0_68, %c0_69] : memref<1x18x9x8xf32, #tpu.memory_space<vmem>>, vector<1x1x9x8xf32>
    %75 = vector.shape_cast %74 : vector<1x1x9x8xf32> to vector<9x8xf32>
    %c0_70 = arith.constant 0 : index
    %c5_71 = arith.constant 5 : index
    %c0_72 = arith.constant 0 : index
    %c0_73 = arith.constant 0 : index
    %76 = vector.load %arg2[%c0_70, %c5_71, %c0_72, %c0_73] : memref<1x18x9x8xf32, #tpu.memory_space<vmem>>, vector<1x1x9x8xf32>
    %77 = vector.shape_cast %76 : vector<1x1x9x8xf32> to vector<9x8xf32>
    %78 = vector.extract_strided_slice %75 {offsets = [0, 0], sizes = [8, 8], strides = [1, 1]} : vector<9x8xf32> to vector<8x8xf32>
    %79 = vector.extract_strided_slice %77 {offsets = [0, 0], sizes = [8, 8], strides = [1, 1]} : vector<9x8xf32> to vector<8x8xf32>
    %80 = vector.extract_strided_slice %75 {offsets = [1, 0], sizes = [8, 8], strides = [1, 1]} : vector<9x8xf32> to vector<8x8xf32>
    %81 = vector.extract_strided_slice %77 {offsets = [1, 0], sizes = [8, 8], strides = [1, 1]} : vector<9x8xf32> to vector<8x8xf32>
    %c0_74 = arith.constant 0 : index
    %c6 = arith.constant 6 : index
    %c0_75 = arith.constant 0 : index
    %c0_76 = arith.constant 0 : index
    %82 = vector.load %arg1[%c0_74, %c6, %c0_75, %c0_76] : memref<1x18x9x8xf32, #tpu.memory_space<vmem>>, vector<1x1x9x8xf32>
    %83 = vector.shape_cast %82 : vector<1x1x9x8xf32> to vector<9x8xf32>
    %c0_77 = arith.constant 0 : index
    %c6_78 = arith.constant 6 : index
    %c0_79 = arith.constant 0 : index
    %c0_80 = arith.constant 0 : index
    %84 = vector.load %arg2[%c0_77, %c6_78, %c0_79, %c0_80] : memref<1x18x9x8xf32, #tpu.memory_space<vmem>>, vector<1x1x9x8xf32>
    %85 = vector.shape_cast %84 : vector<1x1x9x8xf32> to vector<9x8xf32>
    %86 = vector.extract_strided_slice %83 {offsets = [0, 0], sizes = [8, 8], strides = [1, 1]} : vector<9x8xf32> to vector<8x8xf32>
    %87 = vector.extract_strided_slice %85 {offsets = [0, 0], sizes = [8, 8], strides = [1, 1]} : vector<9x8xf32> to vector<8x8xf32>
    %88 = vector.extract_strided_slice %83 {offsets = [1, 0], sizes = [8, 8], strides = [1, 1]} : vector<9x8xf32> to vector<8x8xf32>
    %89 = vector.extract_strided_slice %85 {offsets = [1, 0], sizes = [8, 8], strides = [1, 1]} : vector<9x8xf32> to vector<8x8xf32>
    %c0_81 = arith.constant 0 : index
    %c7 = arith.constant 7 : index
    %c0_82 = arith.constant 0 : index
    %c0_83 = arith.constant 0 : index
    %90 = vector.load %arg1[%c0_81, %c7, %c0_82, %c0_83] : memref<1x18x9x8xf32, #tpu.memory_space<vmem>>, vector<1x1x9x8xf32>
    %91 = vector.shape_cast %90 : vector<1x1x9x8xf32> to vector<9x8xf32>
    %c0_84 = arith.constant 0 : index
    %c7_85 = arith.constant 7 : index
    %c0_86 = arith.constant 0 : index
    %c0_87 = arith.constant 0 : index
    %92 = vector.load %arg2[%c0_84, %c7_85, %c0_86, %c0_87] : memref<1x18x9x8xf32, #tpu.memory_space<vmem>>, vector<1x1x9x8xf32>
    %93 = vector.shape_cast %92 : vector<1x1x9x8xf32> to vector<9x8xf32>
    %94 = vector.extract_strided_slice %91 {offsets = [0, 0], sizes = [8, 8], strides = [1, 1]} : vector<9x8xf32> to vector<8x8xf32>
    %95 = vector.extract_strided_slice %93 {offsets = [0, 0], sizes = [8, 8], strides = [1, 1]} : vector<9x8xf32> to vector<8x8xf32>
    %96 = vector.extract_strided_slice %91 {offsets = [1, 0], sizes = [8, 8], strides = [1, 1]} : vector<9x8xf32> to vector<8x8xf32>
    %97 = vector.extract_strided_slice %93 {offsets = [1, 0], sizes = [8, 8], strides = [1, 1]} : vector<9x8xf32> to vector<8x8xf32>
    %98 = tpu.concatenate %70, %71, %72, %73, %78, %79, %80, %81, %86, %87, %88, %89, %94, %95, %96, %97 in 1 : vector<8x8xf32>, vector<8x8xf32>, vector<8x8xf32>, vector<8x8xf32>, vector<8x8xf32>, vector<8x8xf32>, vector<8x8xf32>, vector<8x8xf32>, vector<8x8xf32>, vector<8x8xf32>, vector<8x8xf32>, vector<8x8xf32>, vector<8x8xf32>, vector<8x8xf32>, vector<8x8xf32>, vector<8x8xf32> -> vector<8x128xf32>
    %c0_88 = arith.constant 0 : index
    %c6_89 = arith.constant 6 : index
    %c0_90 = arith.constant 0 : index
    %c0_91 = arith.constant 0 : index
    %99 = vector.load %arg1[%c0_88, %c6_89, %c0_90, %c0_91] : memref<1x18x9x8xf32, #tpu.memory_space<vmem>>, vector<1x1x9x8xf32>
    %100 = vector.shape_cast %99 : vector<1x1x9x8xf32> to vector<9x8xf32>
    %c0_92 = arith.constant 0 : index
    %c6_93 = arith.constant 6 : index
    %c0_94 = arith.constant 0 : index
    %c0_95 = arith.constant 0 : index
    %101 = vector.load %arg2[%c0_92, %c6_93, %c0_94, %c0_95] : memref<1x18x9x8xf32, #tpu.memory_space<vmem>>, vector<1x1x9x8xf32>
    %102 = vector.shape_cast %101 : vector<1x1x9x8xf32> to vector<9x8xf32>
    %103 = vector.extract_strided_slice %100 {offsets = [0, 0], sizes = [8, 8], strides = [1, 1]} : vector<9x8xf32> to vector<8x8xf32>
    %104 = vector.extract_strided_slice %102 {offsets = [0, 0], sizes = [8, 8], strides = [1, 1]} : vector<9x8xf32> to vector<8x8xf32>
    %105 = vector.extract_strided_slice %100 {offsets = [1, 0], sizes = [8, 8], strides = [1, 1]} : vector<9x8xf32> to vector<8x8xf32>
    %106 = vector.extract_strided_slice %102 {offsets = [1, 0], sizes = [8, 8], strides = [1, 1]} : vector<9x8xf32> to vector<8x8xf32>
    %c0_96 = arith.constant 0 : index
    %c7_97 = arith.constant 7 : index
    %c0_98 = arith.constant 0 : index
    %c0_99 = arith.constant 0 : index
    %107 = vector.load %arg1[%c0_96, %c7_97, %c0_98, %c0_99] : memref<1x18x9x8xf32, #tpu.memory_space<vmem>>, vector<1x1x9x8xf32>
    %108 = vector.shape_cast %107 : vector<1x1x9x8xf32> to vector<9x8xf32>
    %c0_100 = arith.constant 0 : index
    %c7_101 = arith.constant 7 : index
    %c0_102 = arith.constant 0 : index
    %c0_103 = arith.constant 0 : index
    %109 = vector.load %arg2[%c0_100, %c7_101, %c0_102, %c0_103] : memref<1x18x9x8xf32, #tpu.memory_space<vmem>>, vector<1x1x9x8xf32>
    %110 = vector.shape_cast %109 : vector<1x1x9x8xf32> to vector<9x8xf32>
    %111 = vector.extract_strided_slice %108 {offsets = [0, 0], sizes = [8, 8], strides = [1, 1]} : vector<9x8xf32> to vector<8x8xf32>
    %112 = vector.extract_strided_slice %110 {offsets = [0, 0], sizes = [8, 8], strides = [1, 1]} : vector<9x8xf32> to vector<8x8xf32>
    %113 = vector.extract_strided_slice %108 {offsets = [1, 0], sizes = [8, 8], strides = [1, 1]} : vector<9x8xf32> to vector<8x8xf32>
    %114 = vector.extract_strided_slice %110 {offsets = [1, 0], sizes = [8, 8], strides = [1, 1]} : vector<9x8xf32> to vector<8x8xf32>
    %c0_104 = arith.constant 0 : index
    %c8 = arith.constant 8 : index
    %c0_105 = arith.constant 0 : index
    %c0_106 = arith.constant 0 : index
    %115 = vector.load %arg1[%c0_104, %c8, %c0_105, %c0_106] : memref<1x18x9x8xf32, #tpu.memory_space<vmem>>, vector<1x1x9x8xf32>
    %116 = vector.shape_cast %115 : vector<1x1x9x8xf32> to vector<9x8xf32>
    %c0_107 = arith.constant 0 : index
    %c8_108 = arith.constant 8 : index
    %c0_109 = arith.constant 0 : index
    %c0_110 = arith.constant 0 : index
    %117 = vector.load %arg2[%c0_107, %c8_108, %c0_109, %c0_110] : memref<1x18x9x8xf32, #tpu.memory_space<vmem>>, vector<1x1x9x8xf32>
    %118 = vector.shape_cast %117 : vector<1x1x9x8xf32> to vector<9x8xf32>
    %119 = vector.extract_strided_slice %116 {offsets = [0, 0], sizes = [8, 8], strides = [1, 1]} : vector<9x8xf32> to vector<8x8xf32>
    %120 = vector.extract_strided_slice %118 {offsets = [0, 0], sizes = [8, 8], strides = [1, 1]} : vector<9x8xf32> to vector<8x8xf32>
    %121 = vector.extract_strided_slice %116 {offsets = [1, 0], sizes = [8, 8], strides = [1, 1]} : vector<9x8xf32> to vector<8x8xf32>
    %122 = vector.extract_strided_slice %118 {offsets = [1, 0], sizes = [8, 8], strides = [1, 1]} : vector<9x8xf32> to vector<8x8xf32>
    %c0_111 = arith.constant 0 : index
    %c9 = arith.constant 9 : index
    %c0_112 = arith.constant 0 : index
    %c0_113 = arith.constant 0 : index
    %123 = vector.load %arg1[%c0_111, %c9, %c0_112, %c0_113] : memref<1x18x9x8xf32, #tpu.memory_space<vmem>>, vector<1x1x9x8xf32>
    %124 = vector.shape_cast %123 : vector<1x1x9x8xf32> to vector<9x8xf32>
    %c0_114 = arith.constant 0 : index
    %c9_115 = arith.constant 9 : index
    %c0_116 = arith.constant 0 : index
    %c0_117 = arith.constant 0 : index
    %125 = vector.load %arg2[%c0_114, %c9_115, %c0_116, %c0_117] : memref<1x18x9x8xf32, #tpu.memory_space<vmem>>, vector<1x1x9x8xf32>
    %126 = vector.shape_cast %125 : vector<1x1x9x8xf32> to vector<9x8xf32>
    %127 = vector.extract_strided_slice %124 {offsets = [0, 0], sizes = [8, 8], strides = [1, 1]} : vector<9x8xf32> to vector<8x8xf32>
    %128 = vector.extract_strided_slice %126 {offsets = [0, 0], sizes = [8, 8], strides = [1, 1]} : vector<9x8xf32> to vector<8x8xf32>
    %129 = vector.extract_strided_slice %124 {offsets = [1, 0], sizes = [8, 8], strides = [1, 1]} : vector<9x8xf32> to vector<8x8xf32>
    %130 = vector.extract_strided_slice %126 {offsets = [1, 0], sizes = [8, 8], strides = [1, 1]} : vector<9x8xf32> to vector<8x8xf32>
    %131 = tpu.concatenate %103, %104, %105, %106, %111, %112, %113, %114, %119, %120, %121, %122, %127, %128, %129, %130 in 1 : vector<8x8xf32>, vector<8x8xf32>, vector<8x8xf32>, vector<8x8xf32>, vector<8x8xf32>, vector<8x8xf32>, vector<8x8xf32>, vector<8x8xf32>, vector<8x8xf32>, vector<8x8xf32>, vector<8x8xf32>, vector<8x8xf32>, vector<8x8xf32>, vector<8x8xf32>, vector<8x8xf32>, vector<8x8xf32> -> vector<8x128xf32>
    %c0_118 = arith.constant 0 : index
    %c8_119 = arith.constant 8 : index
    %c0_120 = arith.constant 0 : index
    %c0_121 = arith.constant 0 : index
    %132 = vector.load %arg1[%c0_118, %c8_119, %c0_120, %c0_121] : memref<1x18x9x8xf32, #tpu.memory_space<vmem>>, vector<1x1x9x8xf32>
    %133 = vector.shape_cast %132 : vector<1x1x9x8xf32> to vector<9x8xf32>
    %c0_122 = arith.constant 0 : index
    %c8_123 = arith.constant 8 : index
    %c0_124 = arith.constant 0 : index
    %c0_125 = arith.constant 0 : index
    %134 = vector.load %arg2[%c0_122, %c8_123, %c0_124, %c0_125] : memref<1x18x9x8xf32, #tpu.memory_space<vmem>>, vector<1x1x9x8xf32>
    %135 = vector.shape_cast %134 : vector<1x1x9x8xf32> to vector<9x8xf32>
    %136 = vector.extract_strided_slice %133 {offsets = [0, 0], sizes = [8, 8], strides = [1, 1]} : vector<9x8xf32> to vector<8x8xf32>
    %137 = vector.extract_strided_slice %135 {offsets = [0, 0], sizes = [8, 8], strides = [1, 1]} : vector<9x8xf32> to vector<8x8xf32>
    %138 = vector.extract_strided_slice %133 {offsets = [1, 0], sizes = [8, 8], strides = [1, 1]} : vector<9x8xf32> to vector<8x8xf32>
    %139 = vector.extract_strided_slice %135 {offsets = [1, 0], sizes = [8, 8], strides = [1, 1]} : vector<9x8xf32> to vector<8x8xf32>
    %c0_126 = arith.constant 0 : index
    %c9_127 = arith.constant 9 : index
    %c0_128 = arith.constant 0 : index
    %c0_129 = arith.constant 0 : index
    %140 = vector.load %arg1[%c0_126, %c9_127, %c0_128, %c0_129] : memref<1x18x9x8xf32, #tpu.memory_space<vmem>>, vector<1x1x9x8xf32>
    %141 = vector.shape_cast %140 : vector<1x1x9x8xf32> to vector<9x8xf32>
    %c0_130 = arith.constant 0 : index
    %c9_131 = arith.constant 9 : index
    %c0_132 = arith.constant 0 : index
    %c0_133 = arith.constant 0 : index
    %142 = vector.load %arg2[%c0_130, %c9_131, %c0_132, %c0_133] : memref<1x18x9x8xf32, #tpu.memory_space<vmem>>, vector<1x1x9x8xf32>
    %143 = vector.shape_cast %142 : vector<1x1x9x8xf32> to vector<9x8xf32>
    %144 = vector.extract_strided_slice %141 {offsets = [0, 0], sizes = [8, 8], strides = [1, 1]} : vector<9x8xf32> to vector<8x8xf32>
    %145 = vector.extract_strided_slice %143 {offsets = [0, 0], sizes = [8, 8], strides = [1, 1]} : vector<9x8xf32> to vector<8x8xf32>
    %146 = vector.extract_strided_slice %141 {offsets = [1, 0], sizes = [8, 8], strides = [1, 1]} : vector<9x8xf32> to vector<8x8xf32>
    %147 = vector.extract_strided_slice %143 {offsets = [1, 0], sizes = [8, 8], strides = [1, 1]} : vector<9x8xf32> to vector<8x8xf32>
    %c0_134 = arith.constant 0 : index
    %c10 = arith.constant 10 : index
    %c0_135 = arith.constant 0 : index
    %c0_136 = arith.constant 0 : index
    %148 = vector.load %arg1[%c0_134, %c10, %c0_135, %c0_136] : memref<1x18x9x8xf32, #tpu.memory_space<vmem>>, vector<1x1x9x8xf32>
    %149 = vector.shape_cast %148 : vector<1x1x9x8xf32> to vector<9x8xf32>
    %c0_137 = arith.constant 0 : index
    %c10_138 = arith.constant 10 : index
    %c0_139 = arith.constant 0 : index
    %c0_140 = arith.constant 0 : index
    %150 = vector.load %arg2[%c0_137, %c10_138, %c0_139, %c0_140] : memref<1x18x9x8xf32, #tpu.memory_space<vmem>>, vector<1x1x9x8xf32>
    %151 = vector.shape_cast %150 : vector<1x1x9x8xf32> to vector<9x8xf32>
    %152 = vector.extract_strided_slice %149 {offsets = [0, 0], sizes = [8, 8], strides = [1, 1]} : vector<9x8xf32> to vector<8x8xf32>
    %153 = vector.extract_strided_slice %151 {offsets = [0, 0], sizes = [8, 8], strides = [1, 1]} : vector<9x8xf32> to vector<8x8xf32>
    %154 = vector.extract_strided_slice %149 {offsets = [1, 0], sizes = [8, 8], strides = [1, 1]} : vector<9x8xf32> to vector<8x8xf32>
    %155 = vector.extract_strided_slice %151 {offsets = [1, 0], sizes = [8, 8], strides = [1, 1]} : vector<9x8xf32> to vector<8x8xf32>
    %c0_141 = arith.constant 0 : index
    %c11 = arith.constant 11 : index
    %c0_142 = arith.constant 0 : index
    %c0_143 = arith.constant 0 : index
    %156 = vector.load %arg1[%c0_141, %c11, %c0_142, %c0_143] : memref<1x18x9x8xf32, #tpu.memory_space<vmem>>, vector<1x1x9x8xf32>
    %157 = vector.shape_cast %156 : vector<1x1x9x8xf32> to vector<9x8xf32>
    %c0_144 = arith.constant 0 : index
    %c11_145 = arith.constant 11 : index
    %c0_146 = arith.constant 0 : index
    %c0_147 = arith.constant 0 : index
    %158 = vector.load %arg2[%c0_144, %c11_145, %c0_146, %c0_147] : memref<1x18x9x8xf32, #tpu.memory_space<vmem>>, vector<1x1x9x8xf32>
    %159 = vector.shape_cast %158 : vector<1x1x9x8xf32> to vector<9x8xf32>
    %160 = vector.extract_strided_slice %157 {offsets = [0, 0], sizes = [8, 8], strides = [1, 1]} : vector<9x8xf32> to vector<8x8xf32>
    %161 = vector.extract_strided_slice %159 {offsets = [0, 0], sizes = [8, 8], strides = [1, 1]} : vector<9x8xf32> to vector<8x8xf32>
    %162 = vector.extract_strided_slice %157 {offsets = [1, 0], sizes = [8, 8], strides = [1, 1]} : vector<9x8xf32> to vector<8x8xf32>
    %163 = vector.extract_strided_slice %159 {offsets = [1, 0], sizes = [8, 8], strides = [1, 1]} : vector<9x8xf32> to vector<8x8xf32>
    %164 = tpu.concatenate %136, %137, %138, %139, %144, %145, %146, %147, %152, %153, %154, %155, %160, %161, %162, %163 in 1 : vector<8x8xf32>, vector<8x8xf32>, vector<8x8xf32>, vector<8x8xf32>, vector<8x8xf32>, vector<8x8xf32>, vector<8x8xf32>, vector<8x8xf32>, vector<8x8xf32>, vector<8x8xf32>, vector<8x8xf32>, vector<8x8xf32>, vector<8x8xf32>, vector<8x8xf32>, vector<8x8xf32>, vector<8x8xf32> -> vector<8x128xf32>
    %c0_148 = arith.constant 0 : index
    %c10_149 = arith.constant 10 : index
    %c0_150 = arith.constant 0 : index
    %c0_151 = arith.constant 0 : index
    %165 = vector.load %arg1[%c0_148, %c10_149, %c0_150, %c0_151] : memref<1x18x9x8xf32, #tpu.memory_space<vmem>>, vector<1x1x9x8xf32>
    %166 = vector.shape_cast %165 : vector<1x1x9x8xf32> to vector<9x8xf32>
    %c0_152 = arith.constant 0 : index
    %c10_153 = arith.constant 10 : index
    %c0_154 = arith.constant 0 : index
    %c0_155 = arith.constant 0 : index
    %167 = vector.load %arg2[%c0_152, %c10_153, %c0_154, %c0_155] : memref<1x18x9x8xf32, #tpu.memory_space<vmem>>, vector<1x1x9x8xf32>
    %168 = vector.shape_cast %167 : vector<1x1x9x8xf32> to vector<9x8xf32>
    %169 = vector.extract_strided_slice %166 {offsets = [0, 0], sizes = [8, 8], strides = [1, 1]} : vector<9x8xf32> to vector<8x8xf32>
    %170 = vector.extract_strided_slice %168 {offsets = [0, 0], sizes = [8, 8], strides = [1, 1]} : vector<9x8xf32> to vector<8x8xf32>
    %171 = vector.extract_strided_slice %166 {offsets = [1, 0], sizes = [8, 8], strides = [1, 1]} : vector<9x8xf32> to vector<8x8xf32>
    %172 = vector.extract_strided_slice %168 {offsets = [1, 0], sizes = [8, 8], strides = [1, 1]} : vector<9x8xf32> to vector<8x8xf32>
    %c0_156 = arith.constant 0 : index
    %c11_157 = arith.constant 11 : index
    %c0_158 = arith.constant 0 : index
    %c0_159 = arith.constant 0 : index
    %173 = vector.load %arg1[%c0_156, %c11_157, %c0_158, %c0_159] : memref<1x18x9x8xf32, #tpu.memory_space<vmem>>, vector<1x1x9x8xf32>
    %174 = vector.shape_cast %173 : vector<1x1x9x8xf32> to vector<9x8xf32>
    %c0_160 = arith.constant 0 : index
    %c11_161 = arith.constant 11 : index
    %c0_162 = arith.constant 0 : index
    %c0_163 = arith.constant 0 : index
    %175 = vector.load %arg2[%c0_160, %c11_161, %c0_162, %c0_163] : memref<1x18x9x8xf32, #tpu.memory_space<vmem>>, vector<1x1x9x8xf32>
    %176 = vector.shape_cast %175 : vector<1x1x9x8xf32> to vector<9x8xf32>
    %177 = vector.extract_strided_slice %174 {offsets = [0, 0], sizes = [8, 8], strides = [1, 1]} : vector<9x8xf32> to vector<8x8xf32>
    %178 = vector.extract_strided_slice %176 {offsets = [0, 0], sizes = [8, 8], strides = [1, 1]} : vector<9x8xf32> to vector<8x8xf32>
    %179 = vector.extract_strided_slice %174 {offsets = [1, 0], sizes = [8, 8], strides = [1, 1]} : vector<9x8xf32> to vector<8x8xf32>
    %180 = vector.extract_strided_slice %176 {offsets = [1, 0], sizes = [8, 8], strides = [1, 1]} : vector<9x8xf32> to vector<8x8xf32>
    %c0_164 = arith.constant 0 : index
    %c12 = arith.constant 12 : index
    %c0_165 = arith.constant 0 : index
    %c0_166 = arith.constant 0 : index
    %181 = vector.load %arg1[%c0_164, %c12, %c0_165, %c0_166] : memref<1x18x9x8xf32, #tpu.memory_space<vmem>>, vector<1x1x9x8xf32>
    %182 = vector.shape_cast %181 : vector<1x1x9x8xf32> to vector<9x8xf32>
    %c0_167 = arith.constant 0 : index
    %c12_168 = arith.constant 12 : index
    %c0_169 = arith.constant 0 : index
    %c0_170 = arith.constant 0 : index
    %183 = vector.load %arg2[%c0_167, %c12_168, %c0_169, %c0_170] : memref<1x18x9x8xf32, #tpu.memory_space<vmem>>, vector<1x1x9x8xf32>
    %184 = vector.shape_cast %183 : vector<1x1x9x8xf32> to vector<9x8xf32>
    %185 = vector.extract_strided_slice %182 {offsets = [0, 0], sizes = [8, 8], strides = [1, 1]} : vector<9x8xf32> to vector<8x8xf32>
    %186 = vector.extract_strided_slice %184 {offsets = [0, 0], sizes = [8, 8], strides = [1, 1]} : vector<9x8xf32> to vector<8x8xf32>
    %187 = vector.extract_strided_slice %182 {offsets = [1, 0], sizes = [8, 8], strides = [1, 1]} : vector<9x8xf32> to vector<8x8xf32>
    %188 = vector.extract_strided_slice %184 {offsets = [1, 0], sizes = [8, 8], strides = [1, 1]} : vector<9x8xf32> to vector<8x8xf32>
    %c0_171 = arith.constant 0 : index
    %c13 = arith.constant 13 : index
    %c0_172 = arith.constant 0 : index
    %c0_173 = arith.constant 0 : index
    %189 = vector.load %arg1[%c0_171, %c13, %c0_172, %c0_173] : memref<1x18x9x8xf32, #tpu.memory_space<vmem>>, vector<1x1x9x8xf32>
    %190 = vector.shape_cast %189 : vector<1x1x9x8xf32> to vector<9x8xf32>
    %c0_174 = arith.constant 0 : index
    %c13_175 = arith.constant 13 : index
    %c0_176 = arith.constant 0 : index
    %c0_177 = arith.constant 0 : index
    %191 = vector.load %arg2[%c0_174, %c13_175, %c0_176, %c0_177] : memref<1x18x9x8xf32, #tpu.memory_space<vmem>>, vector<1x1x9x8xf32>
    %192 = vector.shape_cast %191 : vector<1x1x9x8xf32> to vector<9x8xf32>
    %193 = vector.extract_strided_slice %190 {offsets = [0, 0], sizes = [8, 8], strides = [1, 1]} : vector<9x8xf32> to vector<8x8xf32>
    %194 = vector.extract_strided_slice %192 {offsets = [0, 0], sizes = [8, 8], strides = [1, 1]} : vector<9x8xf32> to vector<8x8xf32>
    %195 = vector.extract_strided_slice %190 {offsets = [1, 0], sizes = [8, 8], strides = [1, 1]} : vector<9x8xf32> to vector<8x8xf32>
    %196 = vector.extract_strided_slice %192 {offsets = [1, 0], sizes = [8, 8], strides = [1, 1]} : vector<9x8xf32> to vector<8x8xf32>
    %197 = tpu.concatenate %169, %170, %171, %172, %177, %178, %179, %180, %185, %186, %187, %188, %193, %194, %195, %196 in 1 : vector<8x8xf32>, vector<8x8xf32>, vector<8x8xf32>, vector<8x8xf32>, vector<8x8xf32>, vector<8x8xf32>, vector<8x8xf32>, vector<8x8xf32>, vector<8x8xf32>, vector<8x8xf32>, vector<8x8xf32>, vector<8x8xf32>, vector<8x8xf32>, vector<8x8xf32>, vector<8x8xf32>, vector<8x8xf32> -> vector<8x128xf32>
    %c0_178 = arith.constant 0 : index
    %c12_179 = arith.constant 12 : index
    %c0_180 = arith.constant 0 : index
    %c0_181 = arith.constant 0 : index
    %198 = vector.load %arg1[%c0_178, %c12_179, %c0_180, %c0_181] : memref<1x18x9x8xf32, #tpu.memory_space<vmem>>, vector<1x1x9x8xf32>
    %199 = vector.shape_cast %198 : vector<1x1x9x8xf32> to vector<9x8xf32>
    %c0_182 = arith.constant 0 : index
    %c12_183 = arith.constant 12 : index
    %c0_184 = arith.constant 0 : index
    %c0_185 = arith.constant 0 : index
    %200 = vector.load %arg2[%c0_182, %c12_183, %c0_184, %c0_185] : memref<1x18x9x8xf32, #tpu.memory_space<vmem>>, vector<1x1x9x8xf32>
    %201 = vector.shape_cast %200 : vector<1x1x9x8xf32> to vector<9x8xf32>
    %202 = vector.extract_strided_slice %199 {offsets = [0, 0], sizes = [8, 8], strides = [1, 1]} : vector<9x8xf32> to vector<8x8xf32>
    %203 = vector.extract_strided_slice %201 {offsets = [0, 0], sizes = [8, 8], strides = [1, 1]} : vector<9x8xf32> to vector<8x8xf32>
    %204 = vector.extract_strided_slice %199 {offsets = [1, 0], sizes = [8, 8], strides = [1, 1]} : vector<9x8xf32> to vector<8x8xf32>
    %205 = vector.extract_strided_slice %201 {offsets = [1, 0], sizes = [8, 8], strides = [1, 1]} : vector<9x8xf32> to vector<8x8xf32>
    %c0_186 = arith.constant 0 : index
    %c13_187 = arith.constant 13 : index
    %c0_188 = arith.constant 0 : index
    %c0_189 = arith.constant 0 : index
    %206 = vector.load %arg1[%c0_186, %c13_187, %c0_188, %c0_189] : memref<1x18x9x8xf32, #tpu.memory_space<vmem>>, vector<1x1x9x8xf32>
    %207 = vector.shape_cast %206 : vector<1x1x9x8xf32> to vector<9x8xf32>
    %c0_190 = arith.constant 0 : index
    %c13_191 = arith.constant 13 : index
    %c0_192 = arith.constant 0 : index
    %c0_193 = arith.constant 0 : index
    %208 = vector.load %arg2[%c0_190, %c13_191, %c0_192, %c0_193] : memref<1x18x9x8xf32, #tpu.memory_space<vmem>>, vector<1x1x9x8xf32>
    %209 = vector.shape_cast %208 : vector<1x1x9x8xf32> to vector<9x8xf32>
    %210 = vector.extract_strided_slice %207 {offsets = [0, 0], sizes = [8, 8], strides = [1, 1]} : vector<9x8xf32> to vector<8x8xf32>
    %211 = vector.extract_strided_slice %209 {offsets = [0, 0], sizes = [8, 8], strides = [1, 1]} : vector<9x8xf32> to vector<8x8xf32>
    %212 = vector.extract_strided_slice %207 {offsets = [1, 0], sizes = [8, 8], strides = [1, 1]} : vector<9x8xf32> to vector<8x8xf32>
    %213 = vector.extract_strided_slice %209 {offsets = [1, 0], sizes = [8, 8], strides = [1, 1]} : vector<9x8xf32> to vector<8x8xf32>
    %c0_194 = arith.constant 0 : index
    %c14 = arith.constant 14 : index
    %c0_195 = arith.constant 0 : index
    %c0_196 = arith.constant 0 : index
    %214 = vector.load %arg1[%c0_194, %c14, %c0_195, %c0_196] : memref<1x18x9x8xf32, #tpu.memory_space<vmem>>, vector<1x1x9x8xf32>
    %215 = vector.shape_cast %214 : vector<1x1x9x8xf32> to vector<9x8xf32>
    %c0_197 = arith.constant 0 : index
    %c14_198 = arith.constant 14 : index
    %c0_199 = arith.constant 0 : index
    %c0_200 = arith.constant 0 : index
    %216 = vector.load %arg2[%c0_197, %c14_198, %c0_199, %c0_200] : memref<1x18x9x8xf32, #tpu.memory_space<vmem>>, vector<1x1x9x8xf32>
    %217 = vector.shape_cast %216 : vector<1x1x9x8xf32> to vector<9x8xf32>
    %218 = vector.extract_strided_slice %215 {offsets = [0, 0], sizes = [8, 8], strides = [1, 1]} : vector<9x8xf32> to vector<8x8xf32>
    %219 = vector.extract_strided_slice %217 {offsets = [0, 0], sizes = [8, 8], strides = [1, 1]} : vector<9x8xf32> to vector<8x8xf32>
    %220 = vector.extract_strided_slice %215 {offsets = [1, 0], sizes = [8, 8], strides = [1, 1]} : vector<9x8xf32> to vector<8x8xf32>
    %221 = vector.extract_strided_slice %217 {offsets = [1, 0], sizes = [8, 8], strides = [1, 1]} : vector<9x8xf32> to vector<8x8xf32>
    %c0_201 = arith.constant 0 : index
    %c15 = arith.constant 15 : index
    %c0_202 = arith.constant 0 : index
    %c0_203 = arith.constant 0 : index
    %222 = vector.load %arg1[%c0_201, %c15, %c0_202, %c0_203] : memref<1x18x9x8xf32, #tpu.memory_space<vmem>>, vector<1x1x9x8xf32>
    %223 = vector.shape_cast %222 : vector<1x1x9x8xf32> to vector<9x8xf32>
    %c0_204 = arith.constant 0 : index
    %c15_205 = arith.constant 15 : index
    %c0_206 = arith.constant 0 : index
    %c0_207 = arith.constant 0 : index
    %224 = vector.load %arg2[%c0_204, %c15_205, %c0_206, %c0_207] : memref<1x18x9x8xf32, #tpu.memory_space<vmem>>, vector<1x1x9x8xf32>
    %225 = vector.shape_cast %224 : vector<1x1x9x8xf32> to vector<9x8xf32>
    %226 = vector.extract_strided_slice %223 {offsets = [0, 0], sizes = [8, 8], strides = [1, 1]} : vector<9x8xf32> to vector<8x8xf32>
    %227 = vector.extract_strided_slice %225 {offsets = [0, 0], sizes = [8, 8], strides = [1, 1]} : vector<9x8xf32> to vector<8x8xf32>
    %228 = vector.extract_strided_slice %223 {offsets = [1, 0], sizes = [8, 8], strides = [1, 1]} : vector<9x8xf32> to vector<8x8xf32>
    %229 = vector.extract_strided_slice %225 {offsets = [1, 0], sizes = [8, 8], strides = [1, 1]} : vector<9x8xf32> to vector<8x8xf32>
    %230 = tpu.concatenate %202, %203, %204, %205, %210, %211, %212, %213, %218, %219, %220, %221, %226, %227, %228, %229 in 1 : vector<8x8xf32>, vector<8x8xf32>, vector<8x8xf32>, vector<8x8xf32>, vector<8x8xf32>, vector<8x8xf32>, vector<8x8xf32>, vector<8x8xf32>, vector<8x8xf32>, vector<8x8xf32>, vector<8x8xf32>, vector<8x8xf32>, vector<8x8xf32>, vector<8x8xf32>, vector<8x8xf32>, vector<8x8xf32> -> vector<8x128xf32>
    %c0_208 = arith.constant 0 : index
    %c14_209 = arith.constant 14 : index
    %c0_210 = arith.constant 0 : index
    %c0_211 = arith.constant 0 : index
    %231 = vector.load %arg1[%c0_208, %c14_209, %c0_210, %c0_211] : memref<1x18x9x8xf32, #tpu.memory_space<vmem>>, vector<1x1x9x8xf32>
    %232 = vector.shape_cast %231 : vector<1x1x9x8xf32> to vector<9x8xf32>
    %c0_212 = arith.constant 0 : index
    %c14_213 = arith.constant 14 : index
    %c0_214 = arith.constant 0 : index
    %c0_215 = arith.constant 0 : index
    %233 = vector.load %arg2[%c0_212, %c14_213, %c0_214, %c0_215] : memref<1x18x9x8xf32, #tpu.memory_space<vmem>>, vector<1x1x9x8xf32>
    %234 = vector.shape_cast %233 : vector<1x1x9x8xf32> to vector<9x8xf32>
    %235 = vector.extract_strided_slice %232 {offsets = [0, 0], sizes = [8, 8], strides = [1, 1]} : vector<9x8xf32> to vector<8x8xf32>
    %236 = vector.extract_strided_slice %234 {offsets = [0, 0], sizes = [8, 8], strides = [1, 1]} : vector<9x8xf32> to vector<8x8xf32>
    %237 = vector.extract_strided_slice %232 {offsets = [1, 0], sizes = [8, 8], strides = [1, 1]} : vector<9x8xf32> to vector<8x8xf32>
    %238 = vector.extract_strided_slice %234 {offsets = [1, 0], sizes = [8, 8], strides = [1, 1]} : vector<9x8xf32> to vector<8x8xf32>
    %c0_216 = arith.constant 0 : index
    %c15_217 = arith.constant 15 : index
    %c0_218 = arith.constant 0 : index
    %c0_219 = arith.constant 0 : index
    %239 = vector.load %arg1[%c0_216, %c15_217, %c0_218, %c0_219] : memref<1x18x9x8xf32, #tpu.memory_space<vmem>>, vector<1x1x9x8xf32>
    %240 = vector.shape_cast %239 : vector<1x1x9x8xf32> to vector<9x8xf32>
    %c0_220 = arith.constant 0 : index
    %c15_221 = arith.constant 15 : index
    %c0_222 = arith.constant 0 : index
    %c0_223 = arith.constant 0 : index
    %241 = vector.load %arg2[%c0_220, %c15_221, %c0_222, %c0_223] : memref<1x18x9x8xf32, #tpu.memory_space<vmem>>, vector<1x1x9x8xf32>
    %242 = vector.shape_cast %241 : vector<1x1x9x8xf32> to vector<9x8xf32>
    %243 = vector.extract_strided_slice %240 {offsets = [0, 0], sizes = [8, 8], strides = [1, 1]} : vector<9x8xf32> to vector<8x8xf32>
    %244 = vector.extract_strided_slice %242 {offsets = [0, 0], sizes = [8, 8], strides = [1, 1]} : vector<9x8xf32> to vector<8x8xf32>
    %245 = vector.extract_strided_slice %240 {offsets = [1, 0], sizes = [8, 8], strides = [1, 1]} : vector<9x8xf32> to vector<8x8xf32>
    %246 = vector.extract_strided_slice %242 {offsets = [1, 0], sizes = [8, 8], strides = [1, 1]} : vector<9x8xf32> to vector<8x8xf32>
    %c0_224 = arith.constant 0 : index
    %c16 = arith.constant 16 : index
    %c0_225 = arith.constant 0 : index
    %c0_226 = arith.constant 0 : index
    %247 = vector.load %arg1[%c0_224, %c16, %c0_225, %c0_226] : memref<1x18x9x8xf32, #tpu.memory_space<vmem>>, vector<1x1x9x8xf32>
    %248 = vector.shape_cast %247 : vector<1x1x9x8xf32> to vector<9x8xf32>
    %c0_227 = arith.constant 0 : index
    %c16_228 = arith.constant 16 : index
    %c0_229 = arith.constant 0 : index
    %c0_230 = arith.constant 0 : index
    %249 = vector.load %arg2[%c0_227, %c16_228, %c0_229, %c0_230] : memref<1x18x9x8xf32, #tpu.memory_space<vmem>>, vector<1x1x9x8xf32>
    %250 = vector.shape_cast %249 : vector<1x1x9x8xf32> to vector<9x8xf32>
    %251 = vector.extract_strided_slice %248 {offsets = [0, 0], sizes = [8, 8], strides = [1, 1]} : vector<9x8xf32> to vector<8x8xf32>
    %252 = vector.extract_strided_slice %250 {offsets = [0, 0], sizes = [8, 8], strides = [1, 1]} : vector<9x8xf32> to vector<8x8xf32>
    %253 = vector.extract_strided_slice %248 {offsets = [1, 0], sizes = [8, 8], strides = [1, 1]} : vector<9x8xf32> to vector<8x8xf32>
    %254 = vector.extract_strided_slice %250 {offsets = [1, 0], sizes = [8, 8], strides = [1, 1]} : vector<9x8xf32> to vector<8x8xf32>
    %c0_231 = arith.constant 0 : index
    %c17 = arith.constant 17 : index
    %c0_232 = arith.constant 0 : index
    %c0_233 = arith.constant 0 : index
    %255 = vector.load %arg1[%c0_231, %c17, %c0_232, %c0_233] : memref<1x18x9x8xf32, #tpu.memory_space<vmem>>, vector<1x1x9x8xf32>
    %256 = vector.shape_cast %255 : vector<1x1x9x8xf32> to vector<9x8xf32>
    %c0_234 = arith.constant 0 : index
    %c17_235 = arith.constant 17 : index
    %c0_236 = arith.constant 0 : index
    %c0_237 = arith.constant 0 : index
    %257 = vector.load %arg2[%c0_234, %c17_235, %c0_236, %c0_237] : memref<1x18x9x8xf32, #tpu.memory_space<vmem>>, vector<1x1x9x8xf32>
    %258 = vector.shape_cast %257 : vector<1x1x9x8xf32> to vector<9x8xf32>
    %259 = vector.extract_strided_slice %256 {offsets = [0, 0], sizes = [8, 8], strides = [1, 1]} : vector<9x8xf32> to vector<8x8xf32>
    %260 = vector.extract_strided_slice %258 {offsets = [0, 0], sizes = [8, 8], strides = [1, 1]} : vector<9x8xf32> to vector<8x8xf32>
    %261 = vector.extract_strided_slice %256 {offsets = [1, 0], sizes = [8, 8], strides = [1, 1]} : vector<9x8xf32> to vector<8x8xf32>
    %262 = vector.extract_strided_slice %258 {offsets = [1, 0], sizes = [8, 8], strides = [1, 1]} : vector<9x8xf32> to vector<8x8xf32>
    %263 = tpu.concatenate %235, %236, %237, %238, %243, %244, %245, %246, %251, %252, %253, %254, %259, %260, %261, %262 in 1 : vector<8x8xf32>, vector<8x8xf32>, vector<8x8xf32>, vector<8x8xf32>, vector<8x8xf32>, vector<8x8xf32>, vector<8x8xf32>, vector<8x8xf32>, vector<8x8xf32>, vector<8x8xf32>, vector<8x8xf32>, vector<8x8xf32>, vector<8x8xf32>, vector<8x8xf32>, vector<8x8xf32>, vector<8x8xf32> -> vector<8x128xf32>
    %264 = tpu.concatenate %32, %65, %98, %131, %164, %197, %230, %263 in 0 : vector<8x128xf32>, vector<8x128xf32>, vector<8x128xf32>, vector<8x128xf32>, vector<8x128xf32>, vector<8x128xf32>, vector<8x128xf32>, vector<8x128xf32> -> vector<64x128xf32>
    %265 = arith.truncf %264 : vector<64x128xf32> to vector<64x128xbf16>
    %c0_238 = arith.constant 0 : index
    %c0_239 = arith.constant 0 : index
    %266 = vector.load %arg3[%c0_238, %c0_239] : memref<128x8xbf16, #tpu.memory_space<vmem>>, vector<128x8xbf16>
    %cst = arith.constant dense<0.000000e+00> : vector<64x8xf32>
    %267 = tpu.matmul %265, %266, %cst {dimension_numbers = #tpu.dot_dimension_numbers<[1], [0], [0], [1], [0, 0, 1, 1], [], []>} : vector<64x128xbf16>, vector<128x8xbf16>, vector<64x8xf32> -> vector<64x8xf32>
    %c0_240 = arith.constant 0 : index
    %c0_241 = arith.constant 0 : index
    %268 = vector.load %arg6[%c0_240, %c0_241] : memref<1x8xf32, #tpu.memory_space<vmem>>, vector<1x8xf32>
    %269 = vector.broadcast %268 : vector<1x8xf32> to vector<64x8xf32>
    %270 = arith.addf %267, %269 : vector<64x8xf32>
    %cst_242 = arith.constant 0.000000e+00 : f32
    %271 = vector.broadcast %cst_242 : f32 to vector<64x8xf32>
    %272 = arith.cmpf oge, %270, %271 : vector<64x8xf32>
    %cst_243 = arith.constant 0.00999999977 : f32
    %273 = vector.broadcast %cst_243 : f32 to vector<64x8xf32>
    %274 = arith.mulf %273, %270 : vector<64x8xf32>
    %275 = arith.select %272, %270, %274 : vector<64x8xi1>, vector<64x8xf32>
    %cst_244 = arith.constant 0.000000e+00 : f32
    %276 = vector.broadcast %cst_244 : f32 to vector<5x8xf32>
    %c0_245 = arith.constant 0 : index
    %c0_246 = arith.constant 0 : index
    %c0_247 = arith.constant 0 : index
    %277 = vector.load %arg11[%c0_245, %c0_246, %c0_247] : memref<10x5x8xf32, #tpu.memory_space<vmem>>, vector<1x5x8xf32>
    %278 = vector.shape_cast %277 : vector<1x5x8xf32> to vector<5x8xf32>
    %279 = vector.shape_cast %276 : vector<5x8xf32> to vector<1x5x8xf32>
    tpu.vector_store %arg11[%c0_245, %c0_246, %c0_247], %279 {strides = array<i32>} : memref<10x5x8xf32, #tpu.memory_space<vmem>>, vector<1x5x8xf32>,
    %c9_248 = arith.constant 9 : index
    %c0_249 = arith.constant 0 : index
    %c0_250 = arith.constant 0 : index
    %280 = vector.load %arg11[%c9_248, %c0_249, %c0_250] : memref<10x5x8xf32, #tpu.memory_space<vmem>>, vector<1x5x8xf32>
    %281 = vector.shape_cast %280 : vector<1x5x8xf32> to vector<5x8xf32>
    %282 = vector.shape_cast %276 : vector<5x8xf32> to vector<1x5x8xf32>
    tpu.vector_store %arg11[%c9_248, %c0_249, %c0_250], %282 {strides = array<i32>} : memref<10x5x8xf32, #tpu.memory_space<vmem>>, vector<1x5x8xf32>,
    %c0_251 = arith.constant 0 : index
    %c0_252 = arith.constant 0 : index
    %c0_253 = arith.constant 0 : index
    %283 = vector.load %arg12[%c0_251, %c0_252, %c0_253] : memref<10x5x8xf32, #tpu.memory_space<vmem>>, vector<1x5x8xf32>
    %284 = vector.shape_cast %283 : vector<1x5x8xf32> to vector<5x8xf32>
    %285 = vector.shape_cast %276 : vector<5x8xf32> to vector<1x5x8xf32>
    tpu.vector_store %arg12[%c0_251, %c0_252, %c0_253], %285 {strides = array<i32>} : memref<10x5x8xf32, #tpu.memory_space<vmem>>, vector<1x5x8xf32>,
    %c9_254 = arith.constant 9 : index
    %c0_255 = arith.constant 0 : index
    %c0_256 = arith.constant 0 : index
    %286 = vector.load %arg12[%c9_254, %c0_255, %c0_256] : memref<10x5x8xf32, #tpu.memory_space<vmem>>, vector<1x5x8xf32>
    %287 = vector.shape_cast %286 : vector<1x5x8xf32> to vector<5x8xf32>
    %288 = vector.shape_cast %276 : vector<5x8xf32> to vector<1x5x8xf32>
    tpu.vector_store %arg12[%c9_254, %c0_255, %c0_256], %288 {strides = array<i32>} : memref<10x5x8xf32, #tpu.memory_space<vmem>>, vector<1x5x8xf32>,
    %cst_257 = arith.constant 0.000000e+00 : f32
    %289 = vector.broadcast %cst_257 : f32 to vector<10x1x8xf32>
    %c0_258 = arith.constant 0 : index
    %c0_259 = arith.constant 0 : index
    %c0_260 = arith.constant 0 : index
    %290 = vector.load %arg11[%c0_258, %c0_259, %c0_260] : memref<10x5x8xf32, #tpu.memory_space<vmem>>, vector<10x1x8xf32>
    tpu.vector_store %arg11[%c0_258, %c0_259, %c0_260], %289 {strides = array<i32>} : memref<10x5x8xf32, #tpu.memory_space<vmem>>, vector<10x1x8xf32>,
    %c0_261 = arith.constant 0 : index
    %c4_262 = arith.constant 4 : index
    %c0_263 = arith.constant 0 : index
    %291 = vector.load %arg12[%c0_261, %c4_262, %c0_263] : memref<10x5x8xf32, #tpu.memory_space<vmem>>, vector<10x1x8xf32>
    tpu.vector_store %arg12[%c0_261, %c4_262, %c0_263], %289 {strides = array<i32>} : memref<10x5x8xf32, #tpu.memory_space<vmem>>, vector<10x1x8xf32>,
    %292 = tpu.iota {dimensions = array<i32: 0>} : vector<4x8xi32>
    %293 = tpu.iota {dimensions = array<i32: 1>} : vector<4x8xi32>
    %c2_i32 = arith.constant 2 : i32
    %294 = vector.broadcast %c2_i32 : i32 to vector<4x8xi32>
    %295 = arith.muli %294, %292 : vector<4x8xi32>
    %296 = arith.cmpi eq, %293, %295 : vector<4x8xi32>
    %cst_264 = arith.constant 1.000000e+00 : f32
    %cst_265 = arith.constant 0.000000e+00 : f32
    %297 = vector.broadcast %cst_264 : f32 to vector<4x8xf32>
    %298 = vector.broadcast %cst_265 : f32 to vector<4x8xf32>
    %299 = arith.select %296, %297, %298 : vector<4x8xi1>, vector<4x8xf32>
    %c2_i32_266 = arith.constant 2 : i32
    %300 = vector.broadcast %c2_i32_266 : i32 to vector<4x8xi32>
    %301 = arith.muli %300, %292 : vector<4x8xi32>
    %c1_i32 = arith.constant 1 : i32
    %302 = vector.broadcast %c1_i32 : i32 to vector<4x8xi32>
    %303 = arith.addi %301, %302 : vector<4x8xi32>
    %304 = arith.cmpi eq, %293, %303 : vector<4x8xi32>
    %cst_267 = arith.constant 1.000000e+00 : f32
    %cst_268 = arith.constant 0.000000e+00 : f32
    %305 = vector.broadcast %cst_267 : f32 to vector<4x8xf32>
    %306 = vector.broadcast %cst_268 : f32 to vector<4x8xf32>
    %307 = arith.select %304, %305, %306 : vector<4x8xi1>, vector<4x8xf32>
    %308 = vector.extract_strided_slice %275 {offsets = [0, 0], sizes = [8, 8], strides = [1, 1]} : vector<64x8xf32> to vector<8x8xf32>
    %cst_269 = arith.constant dense<0.000000e+00> : vector<4x8xf32>
    %309 = tpu.matmul %299, %308, %cst_269 {dimension_numbers = #tpu.dot_dimension_numbers<[1], [0], [0], [1], [0, 0, 1, 1], [], []>} : vector<4x8xf32>, vector<8x8xf32>, vector<4x8xf32> -> vector<4x8xf32>
    %cst_270 = arith.constant dense<0.000000e+00> : vector<4x8xf32>
    %310 = tpu.matmul %307, %308, %cst_270 {dimension_numbers = #tpu.dot_dimension_numbers<[1], [0], [0], [1], [0, 0, 1, 1], [], []>} : vector<4x8xf32>, vector<8x8xf32>, vector<4x8xf32> -> vector<4x8xf32>
    %c1_271 = arith.constant 1 : index
    %c0_272 = arith.constant 0 : index
    %c0_273 = arith.constant 0 : index
    %311 = vector.load %arg12[%c1_271, %c0_272, %c0_273] : memref<10x5x8xf32, #tpu.memory_space<vmem>>, vector<1x4x8xf32>
    %312 = vector.shape_cast %311 : vector<1x4x8xf32> to vector<4x8xf32>
    %313 = vector.shape_cast %309 : vector<4x8xf32> to vector<1x4x8xf32>
    tpu.vector_store %arg12[%c1_271, %c0_272, %c0_273], %313 {strides = array<i32>} : memref<10x5x8xf32, #tpu.memory_space<vmem>>, vector<1x4x8xf32>,
    %c1_274 = arith.constant 1 : index
    %c1_275 = arith.constant 1 : index
    %c0_276 = arith.constant 0 : index
    %314 = vector.load %arg11[%c1_274, %c1_275, %c0_276] : memref<10x5x8xf32, #tpu.memory_space<vmem>>, vector<1x4x8xf32>
    %315 = vector.shape_cast %314 : vector<1x4x8xf32> to vector<4x8xf32>
    %316 = vector.shape_cast %310 : vector<4x8xf32> to vector<1x4x8xf32>
    tpu.vector_store %arg11[%c1_274, %c1_275, %c0_276], %316 {strides = array<i32>} : memref<10x5x8xf32, #tpu.memory_space<vmem>>, vector<1x4x8xf32>,
    %317 = vector.extract_strided_slice %275 {offsets = [8, 0], sizes = [8, 8], strides = [1, 1]} : vector<64x8xf32> to vector<8x8xf32>
    %cst_277 = arith.constant dense<0.000000e+00> : vector<4x8xf32>
    %318 = tpu.matmul %299, %317, %cst_277 {dimension_numbers = #tpu.dot_dimension_numbers<[1], [0], [0], [1], [0, 0, 1, 1], [], []>} : vector<4x8xf32>, vector<8x8xf32>, vector<4x8xf32> -> vector<4x8xf32>
    %cst_278 = arith.constant dense<0.000000e+00> : vector<4x8xf32>
    %319 = tpu.matmul %307, %317, %cst_278 {dimension_numbers = #tpu.dot_dimension_numbers<[1], [0], [0], [1], [0, 0, 1, 1], [], []>} : vector<4x8xf32>, vector<8x8xf32>, vector<4x8xf32> -> vector<4x8xf32>
    %c2_279 = arith.constant 2 : index
    %c0_280 = arith.constant 0 : index
    %c0_281 = arith.constant 0 : index
    %320 = vector.load %arg12[%c2_279, %c0_280, %c0_281] : memref<10x5x8xf32, #tpu.memory_space<vmem>>, vector<1x4x8xf32>
    %321 = vector.shape_cast %320 : vector<1x4x8xf32> to vector<4x8xf32>
    %322 = vector.shape_cast %318 : vector<4x8xf32> to vector<1x4x8xf32>
    tpu.vector_store %arg12[%c2_279, %c0_280, %c0_281], %322 {strides = array<i32>} : memref<10x5x8xf32, #tpu.memory_space<vmem>>, vector<1x4x8xf32>,
    %c2_282 = arith.constant 2 : index
    %c1_283 = arith.constant 1 : index
    %c0_284 = arith.constant 0 : index
    %323 = vector.load %arg11[%c2_282, %c1_283, %c0_284] : memref<10x5x8xf32, #tpu.memory_space<vmem>>, vector<1x4x8xf32>
    %324 = vector.shape_cast %323 : vector<1x4x8xf32> to vector<4x8xf32>
    %325 = vector.shape_cast %319 : vector<4x8xf32> to vector<1x4x8xf32>
    tpu.vector_store %arg11[%c2_282, %c1_283, %c0_284], %325 {strides = array<i32>} : memref<10x5x8xf32, #tpu.memory_space<vmem>>, vector<1x4x8xf32>,
    %326 = vector.extract_strided_slice %275 {offsets = [16, 0], sizes = [8, 8], strides = [1, 1]} : vector<64x8xf32> to vector<8x8xf32>
    %cst_285 = arith.constant dense<0.000000e+00> : vector<4x8xf32>
    %327 = tpu.matmul %299, %326, %cst_285 {dimension_numbers = #tpu.dot_dimension_numbers<[1], [0], [0], [1], [0, 0, 1, 1], [], []>} : vector<4x8xf32>, vector<8x8xf32>, vector<4x8xf32> -> vector<4x8xf32>
    %cst_286 = arith.constant dense<0.000000e+00> : vector<4x8xf32>
    %328 = tpu.matmul %307, %326, %cst_286 {dimension_numbers = #tpu.dot_dimension_numbers<[1], [0], [0], [1], [0, 0, 1, 1], [], []>} : vector<4x8xf32>, vector<8x8xf32>, vector<4x8xf32> -> vector<4x8xf32>
    %c3_287 = arith.constant 3 : index
    %c0_288 = arith.constant 0 : index
    %c0_289 = arith.constant 0 : index
    %329 = vector.load %arg12[%c3_287, %c0_288, %c0_289] : memref<10x5x8xf32, #tpu.memory_space<vmem>>, vector<1x4x8xf32>
    %330 = vector.shape_cast %329 : vector<1x4x8xf32> to vector<4x8xf32>
    %331 = vector.shape_cast %327 : vector<4x8xf32> to vector<1x4x8xf32>
    tpu.vector_store %arg12[%c3_287, %c0_288, %c0_289], %331 {strides = array<i32>} : memref<10x5x8xf32, #tpu.memory_space<vmem>>, vector<1x4x8xf32>,
    %c3_290 = arith.constant 3 : index
    %c1_291 = arith.constant 1 : index
    %c0_292 = arith.constant 0 : index
    %332 = vector.load %arg11[%c3_290, %c1_291, %c0_292] : memref<10x5x8xf32, #tpu.memory_space<vmem>>, vector<1x4x8xf32>
    %333 = vector.shape_cast %332 : vector<1x4x8xf32> to vector<4x8xf32>
    %334 = vector.shape_cast %328 : vector<4x8xf32> to vector<1x4x8xf32>
    tpu.vector_store %arg11[%c3_290, %c1_291, %c0_292], %334 {strides = array<i32>} : memref<10x5x8xf32, #tpu.memory_space<vmem>>, vector<1x4x8xf32>,
    %335 = vector.extract_strided_slice %275 {offsets = [24, 0], sizes = [8, 8], strides = [1, 1]} : vector<64x8xf32> to vector<8x8xf32>
    %cst_293 = arith.constant dense<0.000000e+00> : vector<4x8xf32>
    %336 = tpu.matmul %299, %335, %cst_293 {dimension_numbers = #tpu.dot_dimension_numbers<[1], [0], [0], [1], [0, 0, 1, 1], [], []>} : vector<4x8xf32>, vector<8x8xf32>, vector<4x8xf32> -> vector<4x8xf32>
    %cst_294 = arith.constant dense<0.000000e+00> : vector<4x8xf32>
    %337 = tpu.matmul %307, %335, %cst_294 {dimension_numbers = #tpu.dot_dimension_numbers<[1], [0], [0], [1], [0, 0, 1, 1], [], []>} : vector<4x8xf32>, vector<8x8xf32>, vector<4x8xf32> -> vector<4x8xf32>
    %c4_295 = arith.constant 4 : index
    %c0_296 = arith.constant 0 : index
    %c0_297 = arith.constant 0 : index
    %338 = vector.load %arg12[%c4_295, %c0_296, %c0_297] : memref<10x5x8xf32, #tpu.memory_space<vmem>>, vector<1x4x8xf32>
    %339 = vector.shape_cast %338 : vector<1x4x8xf32> to vector<4x8xf32>
    %340 = vector.shape_cast %336 : vector<4x8xf32> to vector<1x4x8xf32>
    tpu.vector_store %arg12[%c4_295, %c0_296, %c0_297], %340 {strides = array<i32>} : memref<10x5x8xf32, #tpu.memory_space<vmem>>, vector<1x4x8xf32>,
    %c4_298 = arith.constant 4 : index
    %c1_299 = arith.constant 1 : index
    %c0_300 = arith.constant 0 : index
    %341 = vector.load %arg11[%c4_298, %c1_299, %c0_300] : memref<10x5x8xf32, #tpu.memory_space<vmem>>, vector<1x4x8xf32>
    %342 = vector.shape_cast %341 : vector<1x4x8xf32> to vector<4x8xf32>
    %343 = vector.shape_cast %337 : vector<4x8xf32> to vector<1x4x8xf32>
    tpu.vector_store %arg11[%c4_298, %c1_299, %c0_300], %343 {strides = array<i32>} : memref<10x5x8xf32, #tpu.memory_space<vmem>>, vector<1x4x8xf32>,
    %344 = vector.extract_strided_slice %275 {offsets = [32, 0], sizes = [8, 8], strides = [1, 1]} : vector<64x8xf32> to vector<8x8xf32>
    %cst_301 = arith.constant dense<0.000000e+00> : vector<4x8xf32>
    %345 = tpu.matmul %299, %344, %cst_301 {dimension_numbers = #tpu.dot_dimension_numbers<[1], [0], [0], [1], [0, 0, 1, 1], [], []>} : vector<4x8xf32>, vector<8x8xf32>, vector<4x8xf32> -> vector<4x8xf32>
    %cst_302 = arith.constant dense<0.000000e+00> : vector<4x8xf32>
    %346 = tpu.matmul %307, %344, %cst_302 {dimension_numbers = #tpu.dot_dimension_numbers<[1], [0], [0], [1], [0, 0, 1, 1], [], []>} : vector<4x8xf32>, vector<8x8xf32>, vector<4x8xf32> -> vector<4x8xf32>
    %c5_303 = arith.constant 5 : index
    %c0_304 = arith.constant 0 : index
    %c0_305 = arith.constant 0 : index
    %347 = vector.load %arg12[%c5_303, %c0_304, %c0_305] : memref<10x5x8xf32, #tpu.memory_space<vmem>>, vector<1x4x8xf32>
    %348 = vector.shape_cast %347 : vector<1x4x8xf32> to vector<4x8xf32>
    %349 = vector.shape_cast %345 : vector<4x8xf32> to vector<1x4x8xf32>
    tpu.vector_store %arg12[%c5_303, %c0_304, %c0_305], %349 {strides = array<i32>} : memref<10x5x8xf32, #tpu.memory_space<vmem>>, vector<1x4x8xf32>,
    %c5_306 = arith.constant 5 : index
    %c1_307 = arith.constant 1 : index
    %c0_308 = arith.constant 0 : index
    %350 = vector.load %arg11[%c5_306, %c1_307, %c0_308] : memref<10x5x8xf32, #tpu.memory_space<vmem>>, vector<1x4x8xf32>
    %351 = vector.shape_cast %350 : vector<1x4x8xf32> to vector<4x8xf32>
    %352 = vector.shape_cast %346 : vector<4x8xf32> to vector<1x4x8xf32>
    tpu.vector_store %arg11[%c5_306, %c1_307, %c0_308], %352 {strides = array<i32>} : memref<10x5x8xf32, #tpu.memory_space<vmem>>, vector<1x4x8xf32>,
    %353 = vector.extract_strided_slice %275 {offsets = [40, 0], sizes = [8, 8], strides = [1, 1]} : vector<64x8xf32> to vector<8x8xf32>
    %cst_309 = arith.constant dense<0.000000e+00> : vector<4x8xf32>
    %354 = tpu.matmul %299, %353, %cst_309 {dimension_numbers = #tpu.dot_dimension_numbers<[1], [0], [0], [1], [0, 0, 1, 1], [], []>} : vector<4x8xf32>, vector<8x8xf32>, vector<4x8xf32> -> vector<4x8xf32>
    %cst_310 = arith.constant dense<0.000000e+00> : vector<4x8xf32>
    %355 = tpu.matmul %307, %353, %cst_310 {dimension_numbers = #tpu.dot_dimension_numbers<[1], [0], [0], [1], [0, 0, 1, 1], [], []>} : vector<4x8xf32>, vector<8x8xf32>, vector<4x8xf32> -> vector<4x8xf32>
    %c6_311 = arith.constant 6 : index
    %c0_312 = arith.constant 0 : index
    %c0_313 = arith.constant 0 : index
    %356 = vector.load %arg12[%c6_311, %c0_312, %c0_313] : memref<10x5x8xf32, #tpu.memory_space<vmem>>, vector<1x4x8xf32>
    %357 = vector.shape_cast %356 : vector<1x4x8xf32> to vector<4x8xf32>
    %358 = vector.shape_cast %354 : vector<4x8xf32> to vector<1x4x8xf32>
    tpu.vector_store %arg12[%c6_311, %c0_312, %c0_313], %358 {strides = array<i32>} : memref<10x5x8xf32, #tpu.memory_space<vmem>>, vector<1x4x8xf32>,
    %c6_314 = arith.constant 6 : index
    %c1_315 = arith.constant 1 : index
    %c0_316 = arith.constant 0 : index
    %359 = vector.load %arg11[%c6_314, %c1_315, %c0_316] : memref<10x5x8xf32, #tpu.memory_space<vmem>>, vector<1x4x8xf32>
    %360 = vector.shape_cast %359 : vector<1x4x8xf32> to vector<4x8xf32>
    %361 = vector.shape_cast %355 : vector<4x8xf32> to vector<1x4x8xf32>
    tpu.vector_store %arg11[%c6_314, %c1_315, %c0_316], %361 {strides = array<i32>} : memref<10x5x8xf32, #tpu.memory_space<vmem>>, vector<1x4x8xf32>,
    %362 = vector.extract_strided_slice %275 {offsets = [48, 0], sizes = [8, 8], strides = [1, 1]} : vector<64x8xf32> to vector<8x8xf32>
    %cst_317 = arith.constant dense<0.000000e+00> : vector<4x8xf32>
    %363 = tpu.matmul %299, %362, %cst_317 {dimension_numbers = #tpu.dot_dimension_numbers<[1], [0], [0], [1], [0, 0, 1, 1], [], []>} : vector<4x8xf32>, vector<8x8xf32>, vector<4x8xf32> -> vector<4x8xf32>
    %cst_318 = arith.constant dense<0.000000e+00> : vector<4x8xf32>
    %364 = tpu.matmul %307, %362, %cst_318 {dimension_numbers = #tpu.dot_dimension_numbers<[1], [0], [0], [1], [0, 0, 1, 1], [], []>} : vector<4x8xf32>, vector<8x8xf32>, vector<4x8xf32> -> vector<4x8xf32>
    %c7_319 = arith.constant 7 : index
    %c0_320 = arith.constant 0 : index
    %c0_321 = arith.constant 0 : index
    %365 = vector.load %arg12[%c7_319, %c0_320, %c0_321] : memref<10x5x8xf32, #tpu.memory_space<vmem>>, vector<1x4x8xf32>
    %366 = vector.shape_cast %365 : vector<1x4x8xf32> to vector<4x8xf32>
    %367 = vector.shape_cast %363 : vector<4x8xf32> to vector<1x4x8xf32>
    tpu.vector_store %arg12[%c7_319, %c0_320, %c0_321], %367 {strides = array<i32>} : memref<10x5x8xf32, #tpu.memory_space<vmem>>, vector<1x4x8xf32>,
    %c7_322 = arith.constant 7 : index
    %c1_323 = arith.constant 1 : index
    %c0_324 = arith.constant 0 : index
    %368 = vector.load %arg11[%c7_322, %c1_323, %c0_324] : memref<10x5x8xf32, #tpu.memory_space<vmem>>, vector<1x4x8xf32>
    %369 = vector.shape_cast %368 : vector<1x4x8xf32> to vector<4x8xf32>
    %370 = vector.shape_cast %364 : vector<4x8xf32> to vector<1x4x8xf32>
    tpu.vector_store %arg11[%c7_322, %c1_323, %c0_324], %370 {strides = array<i32>} : memref<10x5x8xf32, #tpu.memory_space<vmem>>, vector<1x4x8xf32>,
    %371 = vector.extract_strided_slice %275 {offsets = [56, 0], sizes = [8, 8], strides = [1, 1]} : vector<64x8xf32> to vector<8x8xf32>
    %cst_325 = arith.constant dense<0.000000e+00> : vector<4x8xf32>
    %372 = tpu.matmul %299, %371, %cst_325 {dimension_numbers = #tpu.dot_dimension_numbers<[1], [0], [0], [1], [0, 0, 1, 1], [], []>} : vector<4x8xf32>, vector<8x8xf32>, vector<4x8xf32> -> vector<4x8xf32>
    %cst_326 = arith.constant dense<0.000000e+00> : vector<4x8xf32>
    %373 = tpu.matmul %307, %371, %cst_326 {dimension_numbers = #tpu.dot_dimension_numbers<[1], [0], [0], [1], [0, 0, 1, 1], [], []>} : vector<4x8xf32>, vector<8x8xf32>, vector<4x8xf32> -> vector<4x8xf32>
    %c8_327 = arith.constant 8 : index
    %c0_328 = arith.constant 0 : index
    %c0_329 = arith.constant 0 : index
    %374 = vector.load %arg12[%c8_327, %c0_328, %c0_329] : memref<10x5x8xf32, #tpu.memory_space<vmem>>, vector<1x4x8xf32>
    %375 = vector.shape_cast %374 : vector<1x4x8xf32> to vector<4x8xf32>
    %376 = vector.shape_cast %372 : vector<4x8xf32> to vector<1x4x8xf32>
    tpu.vector_store %arg12[%c8_327, %c0_328, %c0_329], %376 {strides = array<i32>} : memref<10x5x8xf32, #tpu.memory_space<vmem>>, vector<1x4x8xf32>,
    %c8_330 = arith.constant 8 : index
    %c1_331 = arith.constant 1 : index
    %c0_332 = arith.constant 0 : index
    %377 = vector.load %arg11[%c8_330, %c1_331, %c0_332] : memref<10x5x8xf32, #tpu.memory_space<vmem>>, vector<1x4x8xf32>
    %378 = vector.shape_cast %377 : vector<1x4x8xf32> to vector<4x8xf32>
    %379 = vector.shape_cast %373 : vector<4x8xf32> to vector<1x4x8xf32>
    tpu.vector_store %arg11[%c8_330, %c1_331, %c0_332], %379 {strides = array<i32>} : memref<10x5x8xf32, #tpu.memory_space<vmem>>, vector<1x4x8xf32>,
    %c0_333 = arith.constant 0 : index
    %c0_334 = arith.constant 0 : index
    %c0_335 = arith.constant 0 : index
    %380 = vector.load %arg11[%c0_333, %c0_334, %c0_335] : memref<10x5x8xf32, #tpu.memory_space<vmem>>, vector<1x5x8xf32>
    %381 = vector.shape_cast %380 : vector<1x5x8xf32> to vector<5x8xf32>
    %c0_336 = arith.constant 0 : index
    %c0_337 = arith.constant 0 : index
    %c0_338 = arith.constant 0 : index
    %382 = vector.load %arg12[%c0_336, %c0_337, %c0_338] : memref<10x5x8xf32, #tpu.memory_space<vmem>>, vector<1x5x8xf32>
    %383 = vector.shape_cast %382 : vector<1x5x8xf32> to vector<5x8xf32>
    %384 = vector.extract_strided_slice %381 {offsets = [0, 0], sizes = [4, 8], strides = [1, 1]} : vector<5x8xf32> to vector<4x8xf32>
    %385 = vector.extract_strided_slice %383 {offsets = [0, 0], sizes = [4, 8], strides = [1, 1]} : vector<5x8xf32> to vector<4x8xf32>
    %386 = vector.extract_strided_slice %381 {offsets = [1, 0], sizes = [4, 8], strides = [1, 1]} : vector<5x8xf32> to vector<4x8xf32>
    %387 = vector.extract_strided_slice %383 {offsets = [1, 0], sizes = [4, 8], strides = [1, 1]} : vector<5x8xf32> to vector<4x8xf32>
    %c1_339 = arith.constant 1 : index
    %c0_340 = arith.constant 0 : index
    %c0_341 = arith.constant 0 : index
    %388 = vector.load %arg11[%c1_339, %c0_340, %c0_341] : memref<10x5x8xf32, #tpu.memory_space<vmem>>, vector<1x5x8xf32>
    %389 = vector.shape_cast %388 : vector<1x5x8xf32> to vector<5x8xf32>
    %c1_342 = arith.constant 1 : index
    %c0_343 = arith.constant 0 : index
    %c0_344 = arith.constant 0 : index
    %390 = vector.load %arg12[%c1_342, %c0_343, %c0_344] : memref<10x5x8xf32, #tpu.memory_space<vmem>>, vector<1x5x8xf32>
    %391 = vector.shape_cast %390 : vector<1x5x8xf32> to vector<5x8xf32>
    %392 = vector.extract_strided_slice %389 {offsets = [0, 0], sizes = [4, 8], strides = [1, 1]} : vector<5x8xf32> to vector<4x8xf32>
    %393 = vector.extract_strided_slice %391 {offsets = [0, 0], sizes = [4, 8], strides = [1, 1]} : vector<5x8xf32> to vector<4x8xf32>
    %394 = vector.extract_strided_slice %389 {offsets = [1, 0], sizes = [4, 8], strides = [1, 1]} : vector<5x8xf32> to vector<4x8xf32>
    %395 = vector.extract_strided_slice %391 {offsets = [1, 0], sizes = [4, 8], strides = [1, 1]} : vector<5x8xf32> to vector<4x8xf32>
    %c2_345 = arith.constant 2 : index
    %c0_346 = arith.constant 0 : index
    %c0_347 = arith.constant 0 : index
    %396 = vector.load %arg11[%c2_345, %c0_346, %c0_347] : memref<10x5x8xf32, #tpu.memory_space<vmem>>, vector<1x5x8xf32>
    %397 = vector.shape_cast %396 : vector<1x5x8xf32> to vector<5x8xf32>
    %c2_348 = arith.constant 2 : index
    %c0_349 = arith.constant 0 : index
    %c0_350 = arith.constant 0 : index
    %398 = vector.load %arg12[%c2_348, %c0_349, %c0_350] : memref<10x5x8xf32, #tpu.memory_space<vmem>>, vector<1x5x8xf32>
    %399 = vector.shape_cast %398 : vector<1x5x8xf32> to vector<5x8xf32>
    %400 = vector.extract_strided_slice %397 {offsets = [0, 0], sizes = [4, 8], strides = [1, 1]} : vector<5x8xf32> to vector<4x8xf32>
    %401 = vector.extract_strided_slice %399 {offsets = [0, 0], sizes = [4, 8], strides = [1, 1]} : vector<5x8xf32> to vector<4x8xf32>
    %402 = vector.extract_strided_slice %397 {offsets = [1, 0], sizes = [4, 8], strides = [1, 1]} : vector<5x8xf32> to vector<4x8xf32>
    %403 = vector.extract_strided_slice %399 {offsets = [1, 0], sizes = [4, 8], strides = [1, 1]} : vector<5x8xf32> to vector<4x8xf32>
    %c3_351 = arith.constant 3 : index
    %c0_352 = arith.constant 0 : index
    %c0_353 = arith.constant 0 : index
    %404 = vector.load %arg11[%c3_351, %c0_352, %c0_353] : memref<10x5x8xf32, #tpu.memory_space<vmem>>, vector<1x5x8xf32>
    %405 = vector.shape_cast %404 : vector<1x5x8xf32> to vector<5x8xf32>
    %c3_354 = arith.constant 3 : index
    %c0_355 = arith.constant 0 : index
    %c0_356 = arith.constant 0 : index
    %406 = vector.load %arg12[%c3_354, %c0_355, %c0_356] : memref<10x5x8xf32, #tpu.memory_space<vmem>>, vector<1x5x8xf32>
    %407 = vector.shape_cast %406 : vector<1x5x8xf32> to vector<5x8xf32>
    %408 = vector.extract_strided_slice %405 {offsets = [0, 0], sizes = [4, 8], strides = [1, 1]} : vector<5x8xf32> to vector<4x8xf32>
    %409 = vector.extract_strided_slice %407 {offsets = [0, 0], sizes = [4, 8], strides = [1, 1]} : vector<5x8xf32> to vector<4x8xf32>
    %410 = vector.extract_strided_slice %405 {offsets = [1, 0], sizes = [4, 8], strides = [1, 1]} : vector<5x8xf32> to vector<4x8xf32>
    %411 = vector.extract_strided_slice %407 {offsets = [1, 0], sizes = [4, 8], strides = [1, 1]} : vector<5x8xf32> to vector<4x8xf32>
    %412 = tpu.concatenate %384, %385, %386, %387, %392, %393, %394, %395, %400, %401, %402, %403, %408, %409, %410, %411 in 1 : vector<4x8xf32>, vector<4x8xf32>, vector<4x8xf32>, vector<4x8xf32>, vector<4x8xf32>, vector<4x8xf32>, vector<4x8xf32>, vector<4x8xf32>, vector<4x8xf32>, vector<4x8xf32>, vector<4x8xf32>, vector<4x8xf32>, vector<4x8xf32>, vector<4x8xf32>, vector<4x8xf32>, vector<4x8xf32> -> vector<4x128xf32>
    %c2_357 = arith.constant 2 : index
    %c0_358 = arith.constant 0 : index
    %c0_359 = arith.constant 0 : index
    %413 = vector.load %arg11[%c2_357, %c0_358, %c0_359] : memref<10x5x8xf32, #tpu.memory_space<vmem>>, vector<1x5x8xf32>
    %414 = vector.shape_cast %413 : vector<1x5x8xf32> to vector<5x8xf32>
    %c2_360 = arith.constant 2 : index
    %c0_361 = arith.constant 0 : index
    %c0_362 = arith.constant 0 : index
    %415 = vector.load %arg12[%c2_360, %c0_361, %c0_362] : memref<10x5x8xf32, #tpu.memory_space<vmem>>, vector<1x5x8xf32>
    %416 = vector.shape_cast %415 : vector<1x5x8xf32> to vector<5x8xf32>
    %417 = vector.extract_strided_slice %414 {offsets = [0, 0], sizes = [4, 8], strides = [1, 1]} : vector<5x8xf32> to vector<4x8xf32>
    %418 = vector.extract_strided_slice %416 {offsets = [0, 0], sizes = [4, 8], strides = [1, 1]} : vector<5x8xf32> to vector<4x8xf32>
    %419 = vector.extract_strided_slice %414 {offsets = [1, 0], sizes = [4, 8], strides = [1, 1]} : vector<5x8xf32> to vector<4x8xf32>
    %420 = vector.extract_strided_slice %416 {offsets = [1, 0], sizes = [4, 8], strides = [1, 1]} : vector<5x8xf32> to vector<4x8xf32>
    %c3_363 = arith.constant 3 : index
    %c0_364 = arith.constant 0 : index
    %c0_365 = arith.constant 0 : index
    %421 = vector.load %arg11[%c3_363, %c0_364, %c0_365] : memref<10x5x8xf32, #tpu.memory_space<vmem>>, vector<1x5x8xf32>
    %422 = vector.shape_cast %421 : vector<1x5x8xf32> to vector<5x8xf32>
    %c3_366 = arith.constant 3 : index
    %c0_367 = arith.constant 0 : index
    %c0_368 = arith.constant 0 : index
    %423 = vector.load %arg12[%c3_366, %c0_367, %c0_368] : memref<10x5x8xf32, #tpu.memory_space<vmem>>, vector<1x5x8xf32>
    %424 = vector.shape_cast %423 : vector<1x5x8xf32> to vector<5x8xf32>
    %425 = vector.extract_strided_slice %422 {offsets = [0, 0], sizes = [4, 8], strides = [1, 1]} : vector<5x8xf32> to vector<4x8xf32>
    %426 = vector.extract_strided_slice %424 {offsets = [0, 0], sizes = [4, 8], strides = [1, 1]} : vector<5x8xf32> to vector<4x8xf32>
    %427 = vector.extract_strided_slice %422 {offsets = [1, 0], sizes = [4, 8], strides = [1, 1]} : vector<5x8xf32> to vector<4x8xf32>
    %428 = vector.extract_strided_slice %424 {offsets = [1, 0], sizes = [4, 8], strides = [1, 1]} : vector<5x8xf32> to vector<4x8xf32>
    %c4_369 = arith.constant 4 : index
    %c0_370 = arith.constant 0 : index
    %c0_371 = arith.constant 0 : index
    %429 = vector.load %arg11[%c4_369, %c0_370, %c0_371] : memref<10x5x8xf32, #tpu.memory_space<vmem>>, vector<1x5x8xf32>
    %430 = vector.shape_cast %429 : vector<1x5x8xf32> to vector<5x8xf32>
    %c4_372 = arith.constant 4 : index
    %c0_373 = arith.constant 0 : index
    %c0_374 = arith.constant 0 : index
    %431 = vector.load %arg12[%c4_372, %c0_373, %c0_374] : memref<10x5x8xf32, #tpu.memory_space<vmem>>, vector<1x5x8xf32>
    %432 = vector.shape_cast %431 : vector<1x5x8xf32> to vector<5x8xf32>
    %433 = vector.extract_strided_slice %430 {offsets = [0, 0], sizes = [4, 8], strides = [1, 1]} : vector<5x8xf32> to vector<4x8xf32>
    %434 = vector.extract_strided_slice %432 {offsets = [0, 0], sizes = [4, 8], strides = [1, 1]} : vector<5x8xf32> to vector<4x8xf32>
    %435 = vector.extract_strided_slice %430 {offsets = [1, 0], sizes = [4, 8], strides = [1, 1]} : vector<5x8xf32> to vector<4x8xf32>
    %436 = vector.extract_strided_slice %432 {offsets = [1, 0], sizes = [4, 8], strides = [1, 1]} : vector<5x8xf32> to vector<4x8xf32>
    %c5_375 = arith.constant 5 : index
    %c0_376 = arith.constant 0 : index
    %c0_377 = arith.constant 0 : index
    %437 = vector.load %arg11[%c5_375, %c0_376, %c0_377] : memref<10x5x8xf32, #tpu.memory_space<vmem>>, vector<1x5x8xf32>
    %438 = vector.shape_cast %437 : vector<1x5x8xf32> to vector<5x8xf32>
    %c5_378 = arith.constant 5 : index
    %c0_379 = arith.constant 0 : index
    %c0_380 = arith.constant 0 : index
    %439 = vector.load %arg12[%c5_378, %c0_379, %c0_380] : memref<10x5x8xf32, #tpu.memory_space<vmem>>, vector<1x5x8xf32>
    %440 = vector.shape_cast %439 : vector<1x5x8xf32> to vector<5x8xf32>
    %441 = vector.extract_strided_slice %438 {offsets = [0, 0], sizes = [4, 8], strides = [1, 1]} : vector<5x8xf32> to vector<4x8xf32>
    %442 = vector.extract_strided_slice %440 {offsets = [0, 0], sizes = [4, 8], strides = [1, 1]} : vector<5x8xf32> to vector<4x8xf32>
    %443 = vector.extract_strided_slice %438 {offsets = [1, 0], sizes = [4, 8], strides = [1, 1]} : vector<5x8xf32> to vector<4x8xf32>
    %444 = vector.extract_strided_slice %440 {offsets = [1, 0], sizes = [4, 8], strides = [1, 1]} : vector<5x8xf32> to vector<4x8xf32>
    %445 = tpu.concatenate %417, %418, %419, %420, %425, %426, %427, %428, %433, %434, %435, %436, %441, %442, %443, %444 in 1 : vector<4x8xf32>, vector<4x8xf32>, vector<4x8xf32>, vector<4x8xf32>, vector<4x8xf32>, vector<4x8xf32>, vector<4x8xf32>, vector<4x8xf32>, vector<4x8xf32>, vector<4x8xf32>, vector<4x8xf32>, vector<4x8xf32>, vector<4x8xf32>, vector<4x8xf32>, vector<4x8xf32>, vector<4x8xf32> -> vector<4x128xf32>
    %c4_381 = arith.constant 4 : index
    %c0_382 = arith.constant 0 : index
    %c0_383 = arith.constant 0 : index
    %446 = vector.load %arg11[%c4_381, %c0_382, %c0_383] : memref<10x5x8xf32, #tpu.memory_space<vmem>>, vector<1x5x8xf32>
    %447 = vector.shape_cast %446 : vector<1x5x8xf32> to vector<5x8xf32>
    %c4_384 = arith.constant 4 : index
    %c0_385 = arith.constant 0 : index
    %c0_386 = arith.constant 0 : index
    %448 = vector.load %arg12[%c4_384, %c0_385, %c0_386] : memref<10x5x8xf32, #tpu.memory_space<vmem>>, vector<1x5x8xf32>
    %449 = vector.shape_cast %448 : vector<1x5x8xf32> to vector<5x8xf32>
    %450 = vector.extract_strided_slice %447 {offsets = [0, 0], sizes = [4, 8], strides = [1, 1]} : vector<5x8xf32> to vector<4x8xf32>
    %451 = vector.extract_strided_slice %449 {offsets = [0, 0], sizes = [4, 8], strides = [1, 1]} : vector<5x8xf32> to vector<4x8xf32>
    %452 = vector.extract_strided_slice %447 {offsets = [1, 0], sizes = [4, 8], strides = [1, 1]} : vector<5x8xf32> to vector<4x8xf32>
    %453 = vector.extract_strided_slice %449 {offsets = [1, 0], sizes = [4, 8], strides = [1, 1]} : vector<5x8xf32> to vector<4x8xf32>
    %c5_387 = arith.constant 5 : index
    %c0_388 = arith.constant 0 : index
    %c0_389 = arith.constant 0 : index
    %454 = vector.load %arg11[%c5_387, %c0_388, %c0_389] : memref<10x5x8xf32, #tpu.memory_space<vmem>>, vector<1x5x8xf32>
    %455 = vector.shape_cast %454 : vector<1x5x8xf32> to vector<5x8xf32>
    %c5_390 = arith.constant 5 : index
    %c0_391 = arith.constant 0 : index
    %c0_392 = arith.constant 0 : index
    %456 = vector.load %arg12[%c5_390, %c0_391, %c0_392] : memref<10x5x8xf32, #tpu.memory_space<vmem>>, vector<1x5x8xf32>
    %457 = vector.shape_cast %456 : vector<1x5x8xf32> to vector<5x8xf32>
    %458 = vector.extract_strided_slice %455 {offsets = [0, 0], sizes = [4, 8], strides = [1, 1]} : vector<5x8xf32> to vector<4x8xf32>
    %459 = vector.extract_strided_slice %457 {offsets = [0, 0], sizes = [4, 8], strides = [1, 1]} : vector<5x8xf32> to vector<4x8xf32>
    %460 = vector.extract_strided_slice %455 {offsets = [1, 0], sizes = [4, 8], strides = [1, 1]} : vector<5x8xf32> to vector<4x8xf32>
    %461 = vector.extract_strided_slice %457 {offsets = [1, 0], sizes = [4, 8], strides = [1, 1]} : vector<5x8xf32> to vector<4x8xf32>
    %c6_393 = arith.constant 6 : index
    %c0_394 = arith.constant 0 : index
    %c0_395 = arith.constant 0 : index
    %462 = vector.load %arg11[%c6_393, %c0_394, %c0_395] : memref<10x5x8xf32, #tpu.memory_space<vmem>>, vector<1x5x8xf32>
    %463 = vector.shape_cast %462 : vector<1x5x8xf32> to vector<5x8xf32>
    %c6_396 = arith.constant 6 : index
    %c0_397 = arith.constant 0 : index
    %c0_398 = arith.constant 0 : index
    %464 = vector.load %arg12[%c6_396, %c0_397, %c0_398] : memref<10x5x8xf32, #tpu.memory_space<vmem>>, vector<1x5x8xf32>
    %465 = vector.shape_cast %464 : vector<1x5x8xf32> to vector<5x8xf32>
    %466 = vector.extract_strided_slice %463 {offsets = [0, 0], sizes = [4, 8], strides = [1, 1]} : vector<5x8xf32> to vector<4x8xf32>
    %467 = vector.extract_strided_slice %465 {offsets = [0, 0], sizes = [4, 8], strides = [1, 1]} : vector<5x8xf32> to vector<4x8xf32>
    %468 = vector.extract_strided_slice %463 {offsets = [1, 0], sizes = [4, 8], strides = [1, 1]} : vector<5x8xf32> to vector<4x8xf32>
    %469 = vector.extract_strided_slice %465 {offsets = [1, 0], sizes = [4, 8], strides = [1, 1]} : vector<5x8xf32> to vector<4x8xf32>
    %c7_399 = arith.constant 7 : index
    %c0_400 = arith.constant 0 : index
    %c0_401 = arith.constant 0 : index
    %470 = vector.load %arg11[%c7_399, %c0_400, %c0_401] : memref<10x5x8xf32, #tpu.memory_space<vmem>>, vector<1x5x8xf32>
    %471 = vector.shape_cast %470 : vector<1x5x8xf32> to vector<5x8xf32>
    %c7_402 = arith.constant 7 : index
    %c0_403 = arith.constant 0 : index
    %c0_404 = arith.constant 0 : index
    %472 = vector.load %arg12[%c7_402, %c0_403, %c0_404] : memref<10x5x8xf32, #tpu.memory_space<vmem>>, vector<1x5x8xf32>
    %473 = vector.shape_cast %472 : vector<1x5x8xf32> to vector<5x8xf32>
    %474 = vector.extract_strided_slice %471 {offsets = [0, 0], sizes = [4, 8], strides = [1, 1]} : vector<5x8xf32> to vector<4x8xf32>
    %475 = vector.extract_strided_slice %473 {offsets = [0, 0], sizes = [4, 8], strides = [1, 1]} : vector<5x8xf32> to vector<4x8xf32>
    %476 = vector.extract_strided_slice %471 {offsets = [1, 0], sizes = [4, 8], strides = [1, 1]} : vector<5x8xf32> to vector<4x8xf32>
    %477 = vector.extract_strided_slice %473 {offsets = [1, 0], sizes = [4, 8], strides = [1, 1]} : vector<5x8xf32> to vector<4x8xf32>
    %478 = tpu.concatenate %450, %451, %452, %453, %458, %459, %460, %461, %466, %467, %468, %469, %474, %475, %476, %477 in 1 : vector<4x8xf32>, vector<4x8xf32>, vector<4x8xf32>, vector<4x8xf32>, vector<4x8xf32>, vector<4x8xf32>, vector<4x8xf32>, vector<4x8xf32>, vector<4x8xf32>, vector<4x8xf32>, vector<4x8xf32>, vector<4x8xf32>, vector<4x8xf32>, vector<4x8xf32>, vector<4x8xf32>, vector<4x8xf32> -> vector<4x128xf32>
    %c6_405 = arith.constant 6 : index
    %c0_406 = arith.constant 0 : index
    %c0_407 = arith.constant 0 : index
    %479 = vector.load %arg11[%c6_405, %c0_406, %c0_407] : memref<10x5x8xf32, #tpu.memory_space<vmem>>, vector<1x5x8xf32>
    %480 = vector.shape_cast %479 : vector<1x5x8xf32> to vector<5x8xf32>
    %c6_408 = arith.constant 6 : index
    %c0_409 = arith.constant 0 : index
    %c0_410 = arith.constant 0 : index
    %481 = vector.load %arg12[%c6_408, %c0_409, %c0_410] : memref<10x5x8xf32, #tpu.memory_space<vmem>>, vector<1x5x8xf32>
    %482 = vector.shape_cast %481 : vector<1x5x8xf32> to vector<5x8xf32>
    %483 = vector.extract_strided_slice %480 {offsets = [0, 0], sizes = [4, 8], strides = [1, 1]} : vector<5x8xf32> to vector<4x8xf32>
    %484 = vector.extract_strided_slice %482 {offsets = [0, 0], sizes = [4, 8], strides = [1, 1]} : vector<5x8xf32> to vector<4x8xf32>
    %485 = vector.extract_strided_slice %480 {offsets = [1, 0], sizes = [4, 8], strides = [1, 1]} : vector<5x8xf32> to vector<4x8xf32>
    %486 = vector.extract_strided_slice %482 {offsets = [1, 0], sizes = [4, 8], strides = [1, 1]} : vector<5x8xf32> to vector<4x8xf32>
    %c7_411 = arith.constant 7 : index
    %c0_412 = arith.constant 0 : index
    %c0_413 = arith.constant 0 : index
    %487 = vector.load %arg11[%c7_411, %c0_412, %c0_413] : memref<10x5x8xf32, #tpu.memory_space<vmem>>, vector<1x5x8xf32>
    %488 = vector.shape_cast %487 : vector<1x5x8xf32> to vector<5x8xf32>
    %c7_414 = arith.constant 7 : index
    %c0_415 = arith.constant 0 : index
    %c0_416 = arith.constant 0 : index
    %489 = vector.load %arg12[%c7_414, %c0_415, %c0_416] : memref<10x5x8xf32, #tpu.memory_space<vmem>>, vector<1x5x8xf32>
    %490 = vector.shape_cast %489 : vector<1x5x8xf32> to vector<5x8xf32>
    %491 = vector.extract_strided_slice %488 {offsets = [0, 0], sizes = [4, 8], strides = [1, 1]} : vector<5x8xf32> to vector<4x8xf32>
    %492 = vector.extract_strided_slice %490 {offsets = [0, 0], sizes = [4, 8], strides = [1, 1]} : vector<5x8xf32> to vector<4x8xf32>
    %493 = vector.extract_strided_slice %488 {offsets = [1, 0], sizes = [4, 8], strides = [1, 1]} : vector<5x8xf32> to vector<4x8xf32>
    %494 = vector.extract_strided_slice %490 {offsets = [1, 0], sizes = [4, 8], strides = [1, 1]} : vector<5x8xf32> to vector<4x8xf32>
    %c8_417 = arith.constant 8 : index
    %c0_418 = arith.constant 0 : index
    %c0_419 = arith.constant 0 : index
    %495 = vector.load %arg11[%c8_417, %c0_418, %c0_419] : memref<10x5x8xf32, #tpu.memory_space<vmem>>, vector<1x5x8xf32>
    %496 = vector.shape_cast %495 : vector<1x5x8xf32> to vector<5x8xf32>
    %c8_420 = arith.constant 8 : index
    %c0_421 = arith.constant 0 : index
    %c0_422 = arith.constant 0 : index
    %497 = vector.load %arg12[%c8_420, %c0_421, %c0_422] : memref<10x5x8xf32, #tpu.memory_space<vmem>>, vector<1x5x8xf32>
    %498 = vector.shape_cast %497 : vector<1x5x8xf32> to vector<5x8xf32>
    %499 = vector.extract_strided_slice %496 {offsets = [0, 0], sizes = [4, 8], strides = [1, 1]} : vector<5x8xf32> to vector<4x8xf32>
    %500 = vector.extract_strided_slice %498 {offsets = [0, 0], sizes = [4, 8], strides = [1, 1]} : vector<5x8xf32> to vector<4x8xf32>
    %501 = vector.extract_strided_slice %496 {offsets = [1, 0], sizes = [4, 8], strides = [1, 1]} : vector<5x8xf32> to vector<4x8xf32>
    %502 = vector.extract_strided_slice %498 {offsets = [1, 0], sizes = [4, 8], strides = [1, 1]} : vector<5x8xf32> to vector<4x8xf32>
    %c9_423 = arith.constant 9 : index
    %c0_424 = arith.constant 0 : index
    %c0_425 = arith.constant 0 : index
    %503 = vector.load %arg11[%c9_423, %c0_424, %c0_425] : memref<10x5x8xf32, #tpu.memory_space<vmem>>, vector<1x5x8xf32>
    %504 = vector.shape_cast %503 : vector<1x5x8xf32> to vector<5x8xf32>
    %c9_426 = arith.constant 9 : index
    %c0_427 = arith.constant 0 : index
    %c0_428 = arith.constant 0 : index
    %505 = vector.load %arg12[%c9_426, %c0_427, %c0_428] : memref<10x5x8xf32, #tpu.memory_space<vmem>>, vector<1x5x8xf32>
    %506 = vector.shape_cast %505 : vector<1x5x8xf32> to vector<5x8xf32>
    %507 = vector.extract_strided_slice %504 {offsets = [0, 0], sizes = [4, 8], strides = [1, 1]} : vector<5x8xf32> to vector<4x8xf32>
    %508 = vector.extract_strided_slice %506 {offsets = [0, 0], sizes = [4, 8], strides = [1, 1]} : vector<5x8xf32> to vector<4x8xf32>
    %509 = vector.extract_strided_slice %504 {offsets = [1, 0], sizes = [4, 8], strides = [1, 1]} : vector<5x8xf32> to vector<4x8xf32>
    %510 = vector.extract_strided_slice %506 {offsets = [1, 0], sizes = [4, 8], strides = [1, 1]} : vector<5x8xf32> to vector<4x8xf32>
    %511 = tpu.concatenate %483, %484, %485, %486, %491, %492, %493, %494, %499, %500, %501, %502, %507, %508, %509, %510 in 1 : vector<4x8xf32>, vector<4x8xf32>, vector<4x8xf32>, vector<4x8xf32>, vector<4x8xf32>, vector<4x8xf32>, vector<4x8xf32>, vector<4x8xf32>, vector<4x8xf32>, vector<4x8xf32>, vector<4x8xf32>, vector<4x8xf32>, vector<4x8xf32>, vector<4x8xf32>, vector<4x8xf32>, vector<4x8xf32> -> vector<4x128xf32>
    %512 = tpu.concatenate %412, %445, %478, %511 in 0 : vector<4x128xf32>, vector<4x128xf32>, vector<4x128xf32>, vector<4x128xf32> -> vector<16x128xf32>
    %513 = arith.truncf %512 : vector<16x128xf32> to vector<16x128xbf16>
    %c0_429 = arith.constant 0 : index
    %c0_430 = arith.constant 0 : index
    %514 = vector.load %arg4[%c0_429, %c0_430] : memref<128x16xbf16, #tpu.memory_space<vmem>>, vector<128x16xbf16>
    %cst_431 = arith.constant dense<0.000000e+00> : vector<16x16xf32>
    %515 = tpu.matmul %513, %514, %cst_431 {dimension_numbers = #tpu.dot_dimension_numbers<[1], [0], [0], [1], [0, 0, 1, 1], [], []>} : vector<16x128xbf16>, vector<128x16xbf16>, vector<16x16xf32> -> vector<16x16xf32>
    %c0_432 = arith.constant 0 : index
    %c0_433 = arith.constant 0 : index
    %516 = vector.load %arg7[%c0_432, %c0_433] : memref<1x16xf32, #tpu.memory_space<vmem>>, vector<1x16xf32>
    %517 = vector.broadcast %516 : vector<1x16xf32> to vector<16x16xf32>
    %518 = arith.addf %515, %517 : vector<16x16xf32>
    %cst_434 = arith.constant 0.000000e+00 : f32
    %519 = vector.broadcast %cst_434 : f32 to vector<16x16xf32>
    %520 = arith.cmpf oge, %518, %519 : vector<16x16xf32>
    %cst_435 = arith.constant 0.00999999977 : f32
    %521 = vector.broadcast %cst_435 : f32 to vector<16x16xf32>
    %522 = arith.mulf %521, %518 : vector<16x16xf32>
    %523 = arith.select %520, %518, %522 : vector<16x16xi1>, vector<16x16xf32>
    %cst_436 = arith.constant 0.000000e+00 : f32
    %524 = vector.broadcast %cst_436 : f32 to vector<3x16xf32>
    %c0_437 = arith.constant 0 : index
    %c0_438 = arith.constant 0 : index
    %c0_439 = arith.constant 0 : index
    %525 = vector.load %arg13[%c0_437, %c0_438, %c0_439] : memref<6x3x16xf32, #tpu.memory_space<vmem>>, vector<1x3x16xf32>
    %526 = vector.shape_cast %525 : vector<1x3x16xf32> to vector<3x16xf32>
    %527 = vector.shape_cast %524 : vector<3x16xf32> to vector<1x3x16xf32>
    tpu.vector_store %arg13[%c0_437, %c0_438, %c0_439], %527 {strides = array<i32>} : memref<6x3x16xf32, #tpu.memory_space<vmem>>, vector<1x3x16xf32>,
    %c5_440 = arith.constant 5 : index
    %c0_441 = arith.constant 0 : index
    %c0_442 = arith.constant 0 : index
    %528 = vector.load %arg13[%c5_440, %c0_441, %c0_442] : memref<6x3x16xf32, #tpu.memory_space<vmem>>, vector<1x3x16xf32>
    %529 = vector.shape_cast %528 : vector<1x3x16xf32> to vector<3x16xf32>
    %530 = vector.shape_cast %524 : vector<3x16xf32> to vector<1x3x16xf32>
    tpu.vector_store %arg13[%c5_440, %c0_441, %c0_442], %530 {strides = array<i32>} : memref<6x3x16xf32, #tpu.memory_space<vmem>>, vector<1x3x16xf32>,
    %c0_443 = arith.constant 0 : index
    %c0_444 = arith.constant 0 : index
    %c0_445 = arith.constant 0 : index
    %531 = vector.load %arg14[%c0_443, %c0_444, %c0_445] : memref<6x3x16xf32, #tpu.memory_space<vmem>>, vector<1x3x16xf32>
    %532 = vector.shape_cast %531 : vector<1x3x16xf32> to vector<3x16xf32>
    %533 = vector.shape_cast %524 : vector<3x16xf32> to vector<1x3x16xf32>
    tpu.vector_store %arg14[%c0_443, %c0_444, %c0_445], %533 {strides = array<i32>} : memref<6x3x16xf32, #tpu.memory_space<vmem>>, vector<1x3x16xf32>,
    %c5_446 = arith.constant 5 : index
    %c0_447 = arith.constant 0 : index
    %c0_448 = arith.constant 0 : index
    %534 = vector.load %arg14[%c5_446, %c0_447, %c0_448] : memref<6x3x16xf32, #tpu.memory_space<vmem>>, vector<1x3x16xf32>
    %535 = vector.shape_cast %534 : vector<1x3x16xf32> to vector<3x16xf32>
    %536 = vector.shape_cast %524 : vector<3x16xf32> to vector<1x3x16xf32>
    tpu.vector_store %arg14[%c5_446, %c0_447, %c0_448], %536 {strides = array<i32>} : memref<6x3x16xf32, #tpu.memory_space<vmem>>, vector<1x3x16xf32>,
    %cst_449 = arith.constant 0.000000e+00 : f32
    %537 = vector.broadcast %cst_449 : f32 to vector<6x1x16xf32>
    %c0_450 = arith.constant 0 : index
    %c0_451 = arith.constant 0 : index
    %c0_452 = arith.constant 0 : index
    %538 = vector.load %arg13[%c0_450, %c0_451, %c0_452] : memref<6x3x16xf32, #tpu.memory_space<vmem>>, vector<6x1x16xf32>
    tpu.vector_store %arg13[%c0_450, %c0_451, %c0_452], %537 {strides = array<i32>} : memref<6x3x16xf32, #tpu.memory_space<vmem>>, vector<6x1x16xf32>,
    %c0_453 = arith.constant 0 : index
    %c2_454 = arith.constant 2 : index
    %c0_455 = arith.constant 0 : index
    %539 = vector.load %arg14[%c0_453, %c2_454, %c0_455] : memref<6x3x16xf32, #tpu.memory_space<vmem>>, vector<6x1x16xf32>
    tpu.vector_store %arg14[%c0_453, %c2_454, %c0_455], %537 {strides = array<i32>} : memref<6x3x16xf32, #tpu.memory_space<vmem>>, vector<6x1x16xf32>,
    %540 = tpu.iota {dimensions = array<i32: 0>} : vector<2x4xi32>
    %541 = tpu.iota {dimensions = array<i32: 1>} : vector<2x4xi32>
    %c2_i32_456 = arith.constant 2 : i32
    %542 = vector.broadcast %c2_i32_456 : i32 to vector<2x4xi32>
    %543 = arith.muli %542, %540 : vector<2x4xi32>
    %544 = arith.cmpi eq, %541, %543 : vector<2x4xi32>
    %cst_457 = arith.constant 1.000000e+00 : f32
    %cst_458 = arith.constant 0.000000e+00 : f32
    %545 = vector.broadcast %cst_457 : f32 to vector<2x4xf32>
    %546 = vector.broadcast %cst_458 : f32 to vector<2x4xf32>
    %547 = arith.select %544, %545, %546 : vector<2x4xi1>, vector<2x4xf32>
    %c2_i32_459 = arith.constant 2 : i32
    %548 = vector.broadcast %c2_i32_459 : i32 to vector<2x4xi32>
    %549 = arith.muli %548, %540 : vector<2x4xi32>
    %c1_i32_460 = arith.constant 1 : i32
    %550 = vector.broadcast %c1_i32_460 : i32 to vector<2x4xi32>
    %551 = arith.addi %549, %550 : vector<2x4xi32>
    %552 = arith.cmpi eq, %541, %551 : vector<2x4xi32>
    %cst_461 = arith.constant 1.000000e+00 : f32
    %cst_462 = arith.constant 0.000000e+00 : f32
    %553 = vector.broadcast %cst_461 : f32 to vector<2x4xf32>
    %554 = vector.broadcast %cst_462 : f32 to vector<2x4xf32>
    %555 = arith.select %552, %553, %554 : vector<2x4xi1>, vector<2x4xf32>
    %556 = vector.extract_strided_slice %523 {offsets = [0, 0], sizes = [4, 16], strides = [1, 1]} : vector<16x16xf32> to vector<4x16xf32>
    %cst_463 = arith.constant dense<0.000000e+00> : vector<2x16xf32>
    %557 = tpu.matmul %547, %556, %cst_463 {dimension_numbers = #tpu.dot_dimension_numbers<[1], [0], [0], [1], [0, 0, 1, 1], [], []>} : vector<2x4xf32>, vector<4x16xf32>, vector<2x16xf32> -> vector<2x16xf32>
    %cst_464 = arith.constant dense<0.000000e+00> : vector<2x16xf32>
    %558 = tpu.matmul %555, %556, %cst_464 {dimension_numbers = #tpu.dot_dimension_numbers<[1], [0], [0], [1], [0, 0, 1, 1], [], []>} : vector<2x4xf32>, vector<4x16xf32>, vector<2x16xf32> -> vector<2x16xf32>
    %c1_465 = arith.constant 1 : index
    %c0_466 = arith.constant 0 : index
    %c0_467 = arith.constant 0 : index
    %559 = vector.load %arg14[%c1_465, %c0_466, %c0_467] : memref<6x3x16xf32, #tpu.memory_space<vmem>>, vector<1x2x16xf32>
    %560 = vector.shape_cast %559 : vector<1x2x16xf32> to vector<2x16xf32>
    %561 = vector.shape_cast %557 : vector<2x16xf32> to vector<1x2x16xf32>
    tpu.vector_store %arg14[%c1_465, %c0_466, %c0_467], %561 {strides = array<i32>} : memref<6x3x16xf32, #tpu.memory_space<vmem>>, vector<1x2x16xf32>,
    %c1_468 = arith.constant 1 : index
    %c1_469 = arith.constant 1 : index
    %c0_470 = arith.constant 0 : index
    %562 = vector.load %arg13[%c1_468, %c1_469, %c0_470] : memref<6x3x16xf32, #tpu.memory_space<vmem>>, vector<1x2x16xf32>
    %563 = vector.shape_cast %562 : vector<1x2x16xf32> to vector<2x16xf32>
    %564 = vector.shape_cast %558 : vector<2x16xf32> to vector<1x2x16xf32>
    tpu.vector_store %arg13[%c1_468, %c1_469, %c0_470], %564 {strides = array<i32>} : memref<6x3x16xf32, #tpu.memory_space<vmem>>, vector<1x2x16xf32>,
    %565 = vector.extract_strided_slice %523 {offsets = [4, 0], sizes = [4, 16], strides = [1, 1]} : vector<16x16xf32> to vector<4x16xf32>
    %cst_471 = arith.constant dense<0.000000e+00> : vector<2x16xf32>
    %566 = tpu.matmul %547, %565, %cst_471 {dimension_numbers = #tpu.dot_dimension_numbers<[1], [0], [0], [1], [0, 0, 1, 1], [], []>} : vector<2x4xf32>, vector<4x16xf32>, vector<2x16xf32> -> vector<2x16xf32>
    %cst_472 = arith.constant dense<0.000000e+00> : vector<2x16xf32>
    %567 = tpu.matmul %555, %565, %cst_472 {dimension_numbers = #tpu.dot_dimension_numbers<[1], [0], [0], [1], [0, 0, 1, 1], [], []>} : vector<2x4xf32>, vector<4x16xf32>, vector<2x16xf32> -> vector<2x16xf32>
    %c2_473 = arith.constant 2 : index
    %c0_474 = arith.constant 0 : index
    %c0_475 = arith.constant 0 : index
    %568 = vector.load %arg14[%c2_473, %c0_474, %c0_475] : memref<6x3x16xf32, #tpu.memory_space<vmem>>, vector<1x2x16xf32>
    %569 = vector.shape_cast %568 : vector<1x2x16xf32> to vector<2x16xf32>
    %570 = vector.shape_cast %566 : vector<2x16xf32> to vector<1x2x16xf32>
    tpu.vector_store %arg14[%c2_473, %c0_474, %c0_475], %570 {strides = array<i32>} : memref<6x3x16xf32, #tpu.memory_space<vmem>>, vector<1x2x16xf32>,
    %c2_476 = arith.constant 2 : index
    %c1_477 = arith.constant 1 : index
    %c0_478 = arith.constant 0 : index
    %571 = vector.load %arg13[%c2_476, %c1_477, %c0_478] : memref<6x3x16xf32, #tpu.memory_space<vmem>>, vector<1x2x16xf32>
    %572 = vector.shape_cast %571 : vector<1x2x16xf32> to vector<2x16xf32>
    %573 = vector.shape_cast %567 : vector<2x16xf32> to vector<1x2x16xf32>
    tpu.vector_store %arg13[%c2_476, %c1_477, %c0_478], %573 {strides = array<i32>} : memref<6x3x16xf32, #tpu.memory_space<vmem>>, vector<1x2x16xf32>,
    %574 = vector.extract_strided_slice %523 {offsets = [8, 0], sizes = [4, 16], strides = [1, 1]} : vector<16x16xf32> to vector<4x16xf32>
    %cst_479 = arith.constant dense<0.000000e+00> : vector<2x16xf32>
    %575 = tpu.matmul %547, %574, %cst_479 {dimension_numbers = #tpu.dot_dimension_numbers<[1], [0], [0], [1], [0, 0, 1, 1], [], []>} : vector<2x4xf32>, vector<4x16xf32>, vector<2x16xf32> -> vector<2x16xf32>
    %cst_480 = arith.constant dense<0.000000e+00> : vector<2x16xf32>
    %576 = tpu.matmul %555, %574, %cst_480 {dimension_numbers = #tpu.dot_dimension_numbers<[1], [0], [0], [1], [0, 0, 1, 1], [], []>} : vector<2x4xf32>, vector<4x16xf32>, vector<2x16xf32> -> vector<2x16xf32>
    %c3_481 = arith.constant 3 : index
    %c0_482 = arith.constant 0 : index
    %c0_483 = arith.constant 0 : index
    %577 = vector.load %arg14[%c3_481, %c0_482, %c0_483] : memref<6x3x16xf32, #tpu.memory_space<vmem>>, vector<1x2x16xf32>
    %578 = vector.shape_cast %577 : vector<1x2x16xf32> to vector<2x16xf32>
    %579 = vector.shape_cast %575 : vector<2x16xf32> to vector<1x2x16xf32>
    tpu.vector_store %arg14[%c3_481, %c0_482, %c0_483], %579 {strides = array<i32>} : memref<6x3x16xf32, #tpu.memory_space<vmem>>, vector<1x2x16xf32>,
    %c3_484 = arith.constant 3 : index
    %c1_485 = arith.constant 1 : index
    %c0_486 = arith.constant 0 : index
    %580 = vector.load %arg13[%c3_484, %c1_485, %c0_486] : memref<6x3x16xf32, #tpu.memory_space<vmem>>, vector<1x2x16xf32>
    %581 = vector.shape_cast %580 : vector<1x2x16xf32> to vector<2x16xf32>
    %582 = vector.shape_cast %576 : vector<2x16xf32> to vector<1x2x16xf32>
    tpu.vector_store %arg13[%c3_484, %c1_485, %c0_486], %582 {strides = array<i32>} : memref<6x3x16xf32, #tpu.memory_space<vmem>>, vector<1x2x16xf32>,
    %583 = vector.extract_strided_slice %523 {offsets = [12, 0], sizes = [4, 16], strides = [1, 1]} : vector<16x16xf32> to vector<4x16xf32>
    %cst_487 = arith.constant dense<0.000000e+00> : vector<2x16xf32>
    %584 = tpu.matmul %547, %583, %cst_487 {dimension_numbers = #tpu.dot_dimension_numbers<[1], [0], [0], [1], [0, 0, 1, 1], [], []>} : vector<2x4xf32>, vector<4x16xf32>, vector<2x16xf32> -> vector<2x16xf32>
    %cst_488 = arith.constant dense<0.000000e+00> : vector<2x16xf32>
    %585 = tpu.matmul %555, %583, %cst_488 {dimension_numbers = #tpu.dot_dimension_numbers<[1], [0], [0], [1], [0, 0, 1, 1], [], []>} : vector<2x4xf32>, vector<4x16xf32>, vector<2x16xf32> -> vector<2x16xf32>
    %c4_489 = arith.constant 4 : index
    %c0_490 = arith.constant 0 : index
    %c0_491 = arith.constant 0 : index
    %586 = vector.load %arg14[%c4_489, %c0_490, %c0_491] : memref<6x3x16xf32, #tpu.memory_space<vmem>>, vector<1x2x16xf32>
    %587 = vector.shape_cast %586 : vector<1x2x16xf32> to vector<2x16xf32>
    %588 = vector.shape_cast %584 : vector<2x16xf32> to vector<1x2x16xf32>
    tpu.vector_store %arg14[%c4_489, %c0_490, %c0_491], %588 {strides = array<i32>} : memref<6x3x16xf32, #tpu.memory_space<vmem>>, vector<1x2x16xf32>,
    %c4_492 = arith.constant 4 : index
    %c1_493 = arith.constant 1 : index
    %c0_494 = arith.constant 0 : index
    %589 = vector.load %arg13[%c4_492, %c1_493, %c0_494] : memref<6x3x16xf32, #tpu.memory_space<vmem>>, vector<1x2x16xf32>
    %590 = vector.shape_cast %589 : vector<1x2x16xf32> to vector<2x16xf32>
    %591 = vector.shape_cast %585 : vector<2x16xf32> to vector<1x2x16xf32>
    tpu.vector_store %arg13[%c4_492, %c1_493, %c0_494], %591 {strides = array<i32>} : memref<6x3x16xf32, #tpu.memory_space<vmem>>, vector<1x2x16xf32>,
    %c0_495 = arith.constant 0 : index
    %c0_496 = arith.constant 0 : index
    %c0_497 = arith.constant 0 : index
    %592 = vector.load %arg13[%c0_495, %c0_496, %c0_497] : memref<6x3x16xf32, #tpu.memory_space<vmem>>, vector<1x3x16xf32>
    %593 = vector.shape_cast %592 : vector<1x3x16xf32> to vector<3x16xf32>
    %c0_498 = arith.constant 0 : index
    %c0_499 = arith.constant 0 : index
    %c0_500 = arith.constant 0 : index
    %594 = vector.load %arg14[%c0_498, %c0_499, %c0_500] : memref<6x3x16xf32, #tpu.memory_space<vmem>>, vector<1x3x16xf32>
    %595 = vector.shape_cast %594 : vector<1x3x16xf32> to vector<3x16xf32>
    %596 = vector.extract_strided_slice %593 {offsets = [0, 0], sizes = [2, 16], strides = [1, 1]} : vector<3x16xf32> to vector<2x16xf32>
    %597 = vector.extract_strided_slice %595 {offsets = [0, 0], sizes = [2, 16], strides = [1, 1]} : vector<3x16xf32> to vector<2x16xf32>
    %598 = vector.extract_strided_slice %593 {offsets = [1, 0], sizes = [2, 16], strides = [1, 1]} : vector<3x16xf32> to vector<2x16xf32>
    %599 = vector.extract_strided_slice %595 {offsets = [1, 0], sizes = [2, 16], strides = [1, 1]} : vector<3x16xf32> to vector<2x16xf32>
    %c1_501 = arith.constant 1 : index
    %c0_502 = arith.constant 0 : index
    %c0_503 = arith.constant 0 : index
    %600 = vector.load %arg13[%c1_501, %c0_502, %c0_503] : memref<6x3x16xf32, #tpu.memory_space<vmem>>, vector<1x3x16xf32>
    %601 = vector.shape_cast %600 : vector<1x3x16xf32> to vector<3x16xf32>
    %c1_504 = arith.constant 1 : index
    %c0_505 = arith.constant 0 : index
    %c0_506 = arith.constant 0 : index
    %602 = vector.load %arg14[%c1_504, %c0_505, %c0_506] : memref<6x3x16xf32, #tpu.memory_space<vmem>>, vector<1x3x16xf32>
    %603 = vector.shape_cast %602 : vector<1x3x16xf32> to vector<3x16xf32>
    %604 = vector.extract_strided_slice %601 {offsets = [0, 0], sizes = [2, 16], strides = [1, 1]} : vector<3x16xf32> to vector<2x16xf32>
    %605 = vector.extract_strided_slice %603 {offsets = [0, 0], sizes = [2, 16], strides = [1, 1]} : vector<3x16xf32> to vector<2x16xf32>
    %606 = vector.extract_strided_slice %601 {offsets = [1, 0], sizes = [2, 16], strides = [1, 1]} : vector<3x16xf32> to vector<2x16xf32>
    %607 = vector.extract_strided_slice %603 {offsets = [1, 0], sizes = [2, 16], strides = [1, 1]} : vector<3x16xf32> to vector<2x16xf32>
    %c2_507 = arith.constant 2 : index
    %c0_508 = arith.constant 0 : index
    %c0_509 = arith.constant 0 : index
    %608 = vector.load %arg13[%c2_507, %c0_508, %c0_509] : memref<6x3x16xf32, #tpu.memory_space<vmem>>, vector<1x3x16xf32>
    %609 = vector.shape_cast %608 : vector<1x3x16xf32> to vector<3x16xf32>
    %c2_510 = arith.constant 2 : index
    %c0_511 = arith.constant 0 : index
    %c0_512 = arith.constant 0 : index
    %610 = vector.load %arg14[%c2_510, %c0_511, %c0_512] : memref<6x3x16xf32, #tpu.memory_space<vmem>>, vector<1x3x16xf32>
    %611 = vector.shape_cast %610 : vector<1x3x16xf32> to vector<3x16xf32>
    %612 = vector.extract_strided_slice %609 {offsets = [0, 0], sizes = [2, 16], strides = [1, 1]} : vector<3x16xf32> to vector<2x16xf32>
    %613 = vector.extract_strided_slice %611 {offsets = [0, 0], sizes = [2, 16], strides = [1, 1]} : vector<3x16xf32> to vector<2x16xf32>
    %614 = vector.extract_strided_slice %609 {offsets = [1, 0], sizes = [2, 16], strides = [1, 1]} : vector<3x16xf32> to vector<2x16xf32>
    %615 = vector.extract_strided_slice %611 {offsets = [1, 0], sizes = [2, 16], strides = [1, 1]} : vector<3x16xf32> to vector<2x16xf32>
    %c3_513 = arith.constant 3 : index
    %c0_514 = arith.constant 0 : index
    %c0_515 = arith.constant 0 : index
    %616 = vector.load %arg13[%c3_513, %c0_514, %c0_515] : memref<6x3x16xf32, #tpu.memory_space<vmem>>, vector<1x3x16xf32>
    %617 = vector.shape_cast %616 : vector<1x3x16xf32> to vector<3x16xf32>
    %c3_516 = arith.constant 3 : index
    %c0_517 = arith.constant 0 : index
    %c0_518 = arith.constant 0 : index
    %618 = vector.load %arg14[%c3_516, %c0_517, %c0_518] : memref<6x3x16xf32, #tpu.memory_space<vmem>>, vector<1x3x16xf32>
    %619 = vector.shape_cast %618 : vector<1x3x16xf32> to vector<3x16xf32>
    %620 = vector.extract_strided_slice %617 {offsets = [0, 0], sizes = [2, 16], strides = [1, 1]} : vector<3x16xf32> to vector<2x16xf32>
    %621 = vector.extract_strided_slice %619 {offsets = [0, 0], sizes = [2, 16], strides = [1, 1]} : vector<3x16xf32> to vector<2x16xf32>
    %622 = vector.extract_strided_slice %617 {offsets = [1, 0], sizes = [2, 16], strides = [1, 1]} : vector<3x16xf32> to vector<2x16xf32>
    %623 = vector.extract_strided_slice %619 {offsets = [1, 0], sizes = [2, 16], strides = [1, 1]} : vector<3x16xf32> to vector<2x16xf32>
    %624 = tpu.concatenate %596, %597, %598, %599, %604, %605, %606, %607, %612, %613, %614, %615, %620, %621, %622, %623 in 1 : vector<2x16xf32>, vector<2x16xf32>, vector<2x16xf32>, vector<2x16xf32>, vector<2x16xf32>, vector<2x16xf32>, vector<2x16xf32>, vector<2x16xf32>, vector<2x16xf32>, vector<2x16xf32>, vector<2x16xf32>, vector<2x16xf32>, vector<2x16xf32>, vector<2x16xf32>, vector<2x16xf32>, vector<2x16xf32> -> vector<2x256xf32>
    %c2_519 = arith.constant 2 : index
    %c0_520 = arith.constant 0 : index
    %c0_521 = arith.constant 0 : index
    %625 = vector.load %arg13[%c2_519, %c0_520, %c0_521] : memref<6x3x16xf32, #tpu.memory_space<vmem>>, vector<1x3x16xf32>
    %626 = vector.shape_cast %625 : vector<1x3x16xf32> to vector<3x16xf32>
    %c2_522 = arith.constant 2 : index
    %c0_523 = arith.constant 0 : index
    %c0_524 = arith.constant 0 : index
    %627 = vector.load %arg14[%c2_522, %c0_523, %c0_524] : memref<6x3x16xf32, #tpu.memory_space<vmem>>, vector<1x3x16xf32>
    %628 = vector.shape_cast %627 : vector<1x3x16xf32> to vector<3x16xf32>
    %629 = vector.extract_strided_slice %626 {offsets = [0, 0], sizes = [2, 16], strides = [1, 1]} : vector<3x16xf32> to vector<2x16xf32>
    %630 = vector.extract_strided_slice %628 {offsets = [0, 0], sizes = [2, 16], strides = [1, 1]} : vector<3x16xf32> to vector<2x16xf32>
    %631 = vector.extract_strided_slice %626 {offsets = [1, 0], sizes = [2, 16], strides = [1, 1]} : vector<3x16xf32> to vector<2x16xf32>
    %632 = vector.extract_strided_slice %628 {offsets = [1, 0], sizes = [2, 16], strides = [1, 1]} : vector<3x16xf32> to vector<2x16xf32>
    %c3_525 = arith.constant 3 : index
    %c0_526 = arith.constant 0 : index
    %c0_527 = arith.constant 0 : index
    %633 = vector.load %arg13[%c3_525, %c0_526, %c0_527] : memref<6x3x16xf32, #tpu.memory_space<vmem>>, vector<1x3x16xf32>
    %634 = vector.shape_cast %633 : vector<1x3x16xf32> to vector<3x16xf32>
    %c3_528 = arith.constant 3 : index
    %c0_529 = arith.constant 0 : index
    %c0_530 = arith.constant 0 : index
    %635 = vector.load %arg14[%c3_528, %c0_529, %c0_530] : memref<6x3x16xf32, #tpu.memory_space<vmem>>, vector<1x3x16xf32>
    %636 = vector.shape_cast %635 : vector<1x3x16xf32> to vector<3x16xf32>
    %637 = vector.extract_strided_slice %634 {offsets = [0, 0], sizes = [2, 16], strides = [1, 1]} : vector<3x16xf32> to vector<2x16xf32>
    %638 = vector.extract_strided_slice %636 {offsets = [0, 0], sizes = [2, 16], strides = [1, 1]} : vector<3x16xf32> to vector<2x16xf32>
    %639 = vector.extract_strided_slice %634 {offsets = [1, 0], sizes = [2, 16], strides = [1, 1]} : vector<3x16xf32> to vector<2x16xf32>
    %640 = vector.extract_strided_slice %636 {offsets = [1, 0], sizes = [2, 16], strides = [1, 1]} : vector<3x16xf32> to vector<2x16xf32>
    %c4_531 = arith.constant 4 : index
    %c0_532 = arith.constant 0 : index
    %c0_533 = arith.constant 0 : index
    %641 = vector.load %arg13[%c4_531, %c0_532, %c0_533] : memref<6x3x16xf32, #tpu.memory_space<vmem>>, vector<1x3x16xf32>
    %642 = vector.shape_cast %641 : vector<1x3x16xf32> to vector<3x16xf32>
    %c4_534 = arith.constant 4 : index
    %c0_535 = arith.constant 0 : index
    %c0_536 = arith.constant 0 : index
    %643 = vector.load %arg14[%c4_534, %c0_535, %c0_536] : memref<6x3x16xf32, #tpu.memory_space<vmem>>, vector<1x3x16xf32>
    %644 = vector.shape_cast %643 : vector<1x3x16xf32> to vector<3x16xf32>
    %645 = vector.extract_strided_slice %642 {offsets = [0, 0], sizes = [2, 16], strides = [1, 1]} : vector<3x16xf32> to vector<2x16xf32>
    %646 = vector.extract_strided_slice %644 {offsets = [0, 0], sizes = [2, 16], strides = [1, 1]} : vector<3x16xf32> to vector<2x16xf32>
    %647 = vector.extract_strided_slice %642 {offsets = [1, 0], sizes = [2, 16], strides = [1, 1]} : vector<3x16xf32> to vector<2x16xf32>
    %648 = vector.extract_strided_slice %644 {offsets = [1, 0], sizes = [2, 16], strides = [1, 1]} : vector<3x16xf32> to vector<2x16xf32>
    %c5_537 = arith.constant 5 : index
    %c0_538 = arith.constant 0 : index
    %c0_539 = arith.constant 0 : index
    %649 = vector.load %arg13[%c5_537, %c0_538, %c0_539] : memref<6x3x16xf32, #tpu.memory_space<vmem>>, vector<1x3x16xf32>
    %650 = vector.shape_cast %649 : vector<1x3x16xf32> to vector<3x16xf32>
    %c5_540 = arith.constant 5 : index
    %c0_541 = arith.constant 0 : index
    %c0_542 = arith.constant 0 : index
    %651 = vector.load %arg14[%c5_540, %c0_541, %c0_542] : memref<6x3x16xf32, #tpu.memory_space<vmem>>, vector<1x3x16xf32>
    %652 = vector.shape_cast %651 : vector<1x3x16xf32> to vector<3x16xf32>
    %653 = vector.extract_strided_slice %650 {offsets = [0, 0], sizes = [2, 16], strides = [1, 1]} : vector<3x16xf32> to vector<2x16xf32>
    %654 = vector.extract_strided_slice %652 {offsets = [0, 0], sizes = [2, 16], strides = [1, 1]} : vector<3x16xf32> to vector<2x16xf32>
    %655 = vector.extract_strided_slice %650 {offsets = [1, 0], sizes = [2, 16], strides = [1, 1]} : vector<3x16xf32> to vector<2x16xf32>
    %656 = vector.extract_strided_slice %652 {offsets = [1, 0], sizes = [2, 16], strides = [1, 1]} : vector<3x16xf32> to vector<2x16xf32>
    %657 = tpu.concatenate %629, %630, %631, %632, %637, %638, %639, %640, %645, %646, %647, %648, %653, %654, %655, %656 in 1 : vector<2x16xf32>, vector<2x16xf32>, vector<2x16xf32>, vector<2x16xf32>, vector<2x16xf32>, vector<2x16xf32>, vector<2x16xf32>, vector<2x16xf32>, vector<2x16xf32>, vector<2x16xf32>, vector<2x16xf32>, vector<2x16xf32>, vector<2x16xf32>, vector<2x16xf32>, vector<2x16xf32>, vector<2x16xf32> -> vector<2x256xf32>
    %658 = tpu.concatenate %624, %657 in 0 : vector<2x256xf32>, vector<2x256xf32> -> vector<4x256xf32>
    %659 = arith.truncf %658 : vector<4x256xf32> to vector<4x256xbf16>
    %c0_543 = arith.constant 0 : index
    %c0_544 = arith.constant 0 : index
    %660 = vector.load %arg5[%c0_543, %c0_544] : memref<256x32xbf16, #tpu.memory_space<vmem>>, vector<256x32xbf16>
    %cst_545 = arith.constant dense<0.000000e+00> : vector<4x32xf32>
    %661 = tpu.matmul %659, %660, %cst_545 {dimension_numbers = #tpu.dot_dimension_numbers<[1], [0], [0], [1], [0, 0, 1, 1], [], []>} : vector<4x256xbf16>, vector<256x32xbf16>, vector<4x32xf32> -> vector<4x32xf32>
    %c0_546 = arith.constant 0 : index
    %c0_547 = arith.constant 0 : index
    %662 = vector.load %arg8[%c0_546, %c0_547] : memref<1x32xf32, #tpu.memory_space<vmem>>, vector<1x32xf32>
    %663 = vector.broadcast %662 : vector<1x32xf32> to vector<4x32xf32>
    %664 = arith.addf %661, %663 : vector<4x32xf32>
    %cst_548 = arith.constant 0.000000e+00 : f32
    %665 = vector.broadcast %cst_548 : f32 to vector<4x32xf32>
    %666 = arith.cmpf oge, %664, %665 : vector<4x32xf32>
    %cst_549 = arith.constant 0.00999999977 : f32
    %667 = vector.broadcast %cst_549 : f32 to vector<4x32xf32>
    %668 = arith.mulf %667, %664 : vector<4x32xf32>
    %669 = arith.select %666, %664, %668 : vector<4x32xi1>, vector<4x32xf32>
    %cst_550 = arith.constant 0.000000e+00 : f32
    %670 = vector.broadcast %cst_550 : f32 to vector<4x32xf32>
    %c0_551 = arith.constant 0 : index
    %c0_552 = arith.constant 0 : index
    %c0_553 = arith.constant 0 : index
    %671 = vector.load %arg15[%c0_551, %c0_552, %c0_553] : memref<4x4x32xf32, #tpu.memory_space<vmem>>, vector<1x4x32xf32>
    %672 = vector.shape_cast %671 : vector<1x4x32xf32> to vector<4x32xf32>
    %673 = vector.shape_cast %670 : vector<4x32xf32> to vector<1x4x32xf32>
    tpu.vector_store %arg15[%c0_551, %c0_552, %c0_553], %673 {strides = array<i32>} : memref<4x4x32xf32, #tpu.memory_space<vmem>>, vector<1x4x32xf32>,
    %c3_554 = arith.constant 3 : index
    %c0_555 = arith.constant 0 : index
    %c0_556 = arith.constant 0 : index
    %674 = vector.load %arg15[%c3_554, %c0_555, %c0_556] : memref<4x4x32xf32, #tpu.memory_space<vmem>>, vector<1x4x32xf32>
    %675 = vector.shape_cast %674 : vector<1x4x32xf32> to vector<4x32xf32>
    %676 = vector.shape_cast %670 : vector<4x32xf32> to vector<1x4x32xf32>
    tpu.vector_store %arg15[%c3_554, %c0_555, %c0_556], %676 {strides = array<i32>} : memref<4x4x32xf32, #tpu.memory_space<vmem>>, vector<1x4x32xf32>,
    %cst_557 = arith.constant 0.000000e+00 : f32
    %677 = vector.broadcast %cst_557 : f32 to vector<4x1x32xf32>
    %c0_558 = arith.constant 0 : index
    %c0_559 = arith.constant 0 : index
    %c0_560 = arith.constant 0 : index
    %678 = vector.load %arg15[%c0_558, %c0_559, %c0_560] : memref<4x4x32xf32, #tpu.memory_space<vmem>>, vector<4x1x32xf32>
    tpu.vector_store %arg15[%c0_558, %c0_559, %c0_560], %677 {strides = array<i32>} : memref<4x4x32xf32, #tpu.memory_space<vmem>>, vector<4x1x32xf32>,
    %c0_561 = arith.constant 0 : index
    %c3_562 = arith.constant 3 : index
    %c0_563 = arith.constant 0 : index
    %679 = vector.load %arg15[%c0_561, %c3_562, %c0_563] : memref<4x4x32xf32, #tpu.memory_space<vmem>>, vector<4x1x32xf32>
    tpu.vector_store %arg15[%c0_561, %c3_562, %c0_563], %677 {strides = array<i32>} : memref<4x4x32xf32, #tpu.memory_space<vmem>>, vector<4x1x32xf32>,
    %680 = vector.extract_strided_slice %669 {offsets = [0, 0], sizes = [2, 32], strides = [1, 1]} : vector<4x32xf32> to vector<2x32xf32>
    %c1_564 = arith.constant 1 : index
    %c1_565 = arith.constant 1 : index
    %c0_566 = arith.constant 0 : index
    %681 = vector.load %arg15[%c1_564, %c1_565, %c0_566] : memref<4x4x32xf32, #tpu.memory_space<vmem>>, vector<1x2x32xf32>
    %682 = vector.shape_cast %681 : vector<1x2x32xf32> to vector<2x32xf32>
    %683 = vector.shape_cast %680 : vector<2x32xf32> to vector<1x2x32xf32>
    tpu.vector_store %arg15[%c1_564, %c1_565, %c0_566], %683 {strides = array<i32>} : memref<4x4x32xf32, #tpu.memory_space<vmem>>, vector<1x2x32xf32>,
    %684 = vector.extract_strided_slice %669 {offsets = [2, 0], sizes = [2, 32], strides = [1, 1]} : vector<4x32xf32> to vector<2x32xf32>
    %c2_567 = arith.constant 2 : index
    %c1_568 = arith.constant 1 : index
    %c0_569 = arith.constant 0 : index
    %685 = vector.load %arg15[%c2_567, %c1_568, %c0_569] : memref<4x4x32xf32, #tpu.memory_space<vmem>>, vector<1x2x32xf32>
    %686 = vector.shape_cast %685 : vector<1x2x32xf32> to vector<2x32xf32>
    %687 = vector.shape_cast %684 : vector<2x32xf32> to vector<1x2x32xf32>
    tpu.vector_store %arg15[%c2_567, %c1_568, %c0_569], %687 {strides = array<i32>} : memref<4x4x32xf32, #tpu.memory_space<vmem>>, vector<1x2x32xf32>,
    %c0_570 = arith.constant 0 : index
    %c0_571 = arith.constant 0 : index
    %c0_572 = arith.constant 0 : index
    %688 = vector.load %arg15[%c0_570, %c0_571, %c0_572] : memref<4x4x32xf32, #tpu.memory_space<vmem>>, vector<1x4x32xf32>
    %689 = vector.shape_cast %688 : vector<1x4x32xf32> to vector<4x32xf32>
    %690 = vector.extract_strided_slice %689 {offsets = [0, 0], sizes = [2, 32], strides = [1, 1]} : vector<4x32xf32> to vector<2x32xf32>
    %691 = vector.extract_strided_slice %689 {offsets = [1, 0], sizes = [2, 32], strides = [1, 1]} : vector<4x32xf32> to vector<2x32xf32>
    %692 = vector.extract_strided_slice %689 {offsets = [2, 0], sizes = [2, 32], strides = [1, 1]} : vector<4x32xf32> to vector<2x32xf32>
    %c1_573 = arith.constant 1 : index
    %c0_574 = arith.constant 0 : index
    %c0_575 = arith.constant 0 : index
    %693 = vector.load %arg15[%c1_573, %c0_574, %c0_575] : memref<4x4x32xf32, #tpu.memory_space<vmem>>, vector<1x4x32xf32>
    %694 = vector.shape_cast %693 : vector<1x4x32xf32> to vector<4x32xf32>
    %695 = vector.extract_strided_slice %694 {offsets = [0, 0], sizes = [2, 32], strides = [1, 1]} : vector<4x32xf32> to vector<2x32xf32>
    %696 = vector.extract_strided_slice %694 {offsets = [1, 0], sizes = [2, 32], strides = [1, 1]} : vector<4x32xf32> to vector<2x32xf32>
    %697 = vector.extract_strided_slice %694 {offsets = [2, 0], sizes = [2, 32], strides = [1, 1]} : vector<4x32xf32> to vector<2x32xf32>
    %c2_576 = arith.constant 2 : index
    %c0_577 = arith.constant 0 : index
    %c0_578 = arith.constant 0 : index
    %698 = vector.load %arg15[%c2_576, %c0_577, %c0_578] : memref<4x4x32xf32, #tpu.memory_space<vmem>>, vector<1x4x32xf32>
    %699 = vector.shape_cast %698 : vector<1x4x32xf32> to vector<4x32xf32>
    %700 = vector.extract_strided_slice %699 {offsets = [0, 0], sizes = [2, 32], strides = [1, 1]} : vector<4x32xf32> to vector<2x32xf32>
    %701 = vector.extract_strided_slice %699 {offsets = [1, 0], sizes = [2, 32], strides = [1, 1]} : vector<4x32xf32> to vector<2x32xf32>
    %702 = vector.extract_strided_slice %699 {offsets = [2, 0], sizes = [2, 32], strides = [1, 1]} : vector<4x32xf32> to vector<2x32xf32>
    %703 = tpu.concatenate %690, %691, %692, %695, %696, %697, %700, %701, %702 in 1 : vector<2x32xf32>, vector<2x32xf32>, vector<2x32xf32>, vector<2x32xf32>, vector<2x32xf32>, vector<2x32xf32>, vector<2x32xf32>, vector<2x32xf32>, vector<2x32xf32> -> vector<2x288xf32>
    %c1_579 = arith.constant 1 : index
    %c0_580 = arith.constant 0 : index
    %c0_581 = arith.constant 0 : index
    %704 = vector.load %arg15[%c1_579, %c0_580, %c0_581] : memref<4x4x32xf32, #tpu.memory_space<vmem>>, vector<1x4x32xf32>
    %705 = vector.shape_cast %704 : vector<1x4x32xf32> to vector<4x32xf32>
    %706 = vector.extract_strided_slice %705 {offsets = [0, 0], sizes = [2, 32], strides = [1, 1]} : vector<4x32xf32> to vector<2x32xf32>
    %707 = vector.extract_strided_slice %705 {offsets = [1, 0], sizes = [2, 32], strides = [1, 1]} : vector<4x32xf32> to vector<2x32xf32>
    %708 = vector.extract_strided_slice %705 {offsets = [2, 0], sizes = [2, 32], strides = [1, 1]} : vector<4x32xf32> to vector<2x32xf32>
    %c2_582 = arith.constant 2 : index
    %c0_583 = arith.constant 0 : index
    %c0_584 = arith.constant 0 : index
    %709 = vector.load %arg15[%c2_582, %c0_583, %c0_584] : memref<4x4x32xf32, #tpu.memory_space<vmem>>, vector<1x4x32xf32>
    %710 = vector.shape_cast %709 : vector<1x4x32xf32> to vector<4x32xf32>
    %711 = vector.extract_strided_slice %710 {offsets = [0, 0], sizes = [2, 32], strides = [1, 1]} : vector<4x32xf32> to vector<2x32xf32>
    %712 = vector.extract_strided_slice %710 {offsets = [1, 0], sizes = [2, 32], strides = [1, 1]} : vector<4x32xf32> to vector<2x32xf32>
    %713 = vector.extract_strided_slice %710 {offsets = [2, 0], sizes = [2, 32], strides = [1, 1]} : vector<4x32xf32> to vector<2x32xf32>
    %c3_585 = arith.constant 3 : index
    %c0_586 = arith.constant 0 : index
    %c0_587 = arith.constant 0 : index
    %714 = vector.load %arg15[%c3_585, %c0_586, %c0_587] : memref<4x4x32xf32, #tpu.memory_space<vmem>>, vector<1x4x32xf32>
    %715 = vector.shape_cast %714 : vector<1x4x32xf32> to vector<4x32xf32>
    %716 = vector.extract_strided_slice %715 {offsets = [0, 0], sizes = [2, 32], strides = [1, 1]} : vector<4x32xf32> to vector<2x32xf32>
    %717 = vector.extract_strided_slice %715 {offsets = [1, 0], sizes = [2, 32], strides = [1, 1]} : vector<4x32xf32> to vector<2x32xf32>
    %718 = vector.extract_strided_slice %715 {offsets = [2, 0], sizes = [2, 32], strides = [1, 1]} : vector<4x32xf32> to vector<2x32xf32>
    %719 = tpu.concatenate %706, %707, %708, %711, %712, %713, %716, %717, %718 in 1 : vector<2x32xf32>, vector<2x32xf32>, vector<2x32xf32>, vector<2x32xf32>, vector<2x32xf32>, vector<2x32xf32>, vector<2x32xf32>, vector<2x32xf32>, vector<2x32xf32> -> vector<2x288xf32>
    %720 = tpu.concatenate %703, %719 in 0 : vector<2x288xf32>, vector<2x288xf32> -> vector<4x288xf32>
    %721 = arith.truncf %720 : vector<4x288xf32> to vector<4x288xbf16>
    %c0_588 = arith.constant 0 : index
    %c0_589 = arith.constant 0 : index
    %722 = vector.load %arg9[%c0_588, %c0_589] : memref<288x128xbf16, #tpu.memory_space<vmem>>, vector<288x128xbf16>
    %cst_590 = arith.constant dense<0.000000e+00> : vector<4x128xf32>
    %723 = tpu.matmul %721, %722, %cst_590 {dimension_numbers = #tpu.dot_dimension_numbers<[1], [0], [0], [1], [0, 0, 1, 1], [], []>} : vector<4x288xbf16>, vector<288x128xbf16>, vector<4x128xf32> -> vector<4x128xf32>
    %724 = vector.extract_strided_slice %723 {offsets = [0, 0], sizes = [2, 128], strides = [1, 1]} : vector<4x128xf32> to vector<2x128xf32>
    %c0_591 = arith.constant 0 : index
    %c0_592 = arith.constant 0 : index
    %c0_593 = arith.constant 0 : index
    %c0_594 = arith.constant 0 : index
    %725 = vector.load %arg10[%c0_591, %c0_592, %c0_593, %c0_594] : memref<1x2x2x128xf32, #tpu.memory_space<vmem>>, vector<1x1x2x128xf32>
    %726 = vector.shape_cast %725 : vector<1x1x2x128xf32> to vector<2x128xf32>
    %727 = vector.shape_cast %724 : vector<2x128xf32> to vector<1x1x2x128xf32>
    tpu.vector_store %arg10[%c0_591, %c0_592, %c0_593, %c0_594], %727 {strides = array<i32>} : memref<1x2x2x128xf32, #tpu.memory_space<vmem>>, vector<1x1x2x128xf32>,
    %728 = vector.extract_strided_slice %723 {offsets = [2, 0], sizes = [2, 128], strides = [1, 1]} : vector<4x128xf32> to vector<2x128xf32>
    %c0_595 = arith.constant 0 : index
    %c1_596 = arith.constant 1 : index
    %c0_597 = arith.constant 0 : index
    %c0_598 = arith.constant 0 : index
    %729 = vector.load %arg10[%c0_595, %c1_596, %c0_597, %c0_598] : memref<1x2x2x128xf32, #tpu.memory_space<vmem>>, vector<1x1x2x128xf32>
    %730 = vector.shape_cast %729 : vector<1x1x2x128xf32> to vector<2x128xf32>
    %731 = vector.shape_cast %728 : vector<2x128xf32> to vector<1x1x2x128xf32>
    tpu.vector_store %arg10[%c0_595, %c1_596, %c0_597, %c0_598], %731 {strides = array<i32>} : memref<1x2x2x128xf32, #tpu.memory_space<vmem>>, vector<1x1x2x128xf32>,
    return
  }
  func.func @transform_0(%arg0: i32) -> (i32, i32, i32, i32) {
    %c0_i32 = arith.constant 0 : i32
    %c0_i32_0 = arith.constant 0 : i32
    %c0_i32_1 = arith.constant 0 : i32
    %c0_i32_2 = arith.constant 0 : i32
    return %arg0, %c0_i32, %c0_i32_0, %c0_i32_1 : i32, i32, i32, i32
  }
  func.func @transform_1(%arg0: i32) -> (i32, i32, i32, i32) {
    %c0_i32 = arith.constant 0 : i32
    %c0_i32_0 = arith.constant 0 : i32
    %c0_i32_1 = arith.constant 0 : i32
    %c0_i32_2 = arith.constant 0 : i32
    return %arg0, %c0_i32, %c0_i32_0, %c0_i32_1 : i32, i32, i32, i32
  }
  func.func @transform_2(%arg0: i32) -> (i32, i32) {
    %c0_i32 = arith.constant 0 : i32
    %c0_i32_0 = arith.constant 0 : i32
    %c0_i32_1 = arith.constant 0 : i32
    return %c0_i32, %c0_i32_0 : i32, i32
  }
  func.func @transform_3(%arg0: i32) -> (i32, i32) {
    %c0_i32 = arith.constant 0 : i32
    %c0_i32_0 = arith.constant 0 : i32
    %c0_i32_1 = arith.constant 0 : i32
    return %c0_i32, %c0_i32_0 : i32, i32
  }
  func.func @transform_4(%arg0: i32) -> (i32, i32) {
    %c0_i32 = arith.constant 0 : i32
    %c0_i32_0 = arith.constant 0 : i32
    %c0_i32_1 = arith.constant 0 : i32
    return %c0_i32, %c0_i32_0 : i32, i32
  }
  func.func @transform_5(%arg0: i32) -> (i32, i32) {
    %c0_i32 = arith.constant 0 : i32
    %c0_i32_0 = arith.constant 0 : i32
    %c0_i32_1 = arith.constant 0 : i32
    return %c0_i32, %c0_i32_0 : i32, i32
  }
  func.func @transform_6(%arg0: i32) -> (i32, i32) {
    %c0_i32 = arith.constant 0 : i32
    %c0_i32_0 = arith.constant 0 : i32
    %c0_i32_1 = arith.constant 0 : i32
    return %c0_i32, %c0_i32_0 : i32, i32
  }
  func.func @transform_7(%arg0: i32) -> (i32, i32) {
    %c0_i32 = arith.constant 0 : i32
    %c0_i32_0 = arith.constant 0 : i32
    %c0_i32_1 = arith.constant 0 : i32
    return %c0_i32, %c0_i32_0 : i32, i32
  }
  func.func @transform_8(%arg0: i32) -> (i32, i32) {
    %c0_i32 = arith.constant 0 : i32
    %c0_i32_0 = arith.constant 0 : i32
    %c0_i32_1 = arith.constant 0 : i32
    return %c0_i32, %c0_i32_0 : i32, i32
  }
  func.func @transform_9(%arg0: i32) -> (i32, i32, i32, i32) {
    %c0_i32 = arith.constant 0 : i32
    %c0_i32_0 = arith.constant 0 : i32
    %c0_i32_1 = arith.constant 0 : i32
    %c0_i32_2 = arith.constant 0 : i32
    return %arg0, %c0_i32, %c0_i32_0, %c0_i32_1 : i32, i32, i32, i32
  }
}

</mosaic_0001>

<llo_original>
// kernel: tpu_custom_call.1
$region0: #{tpu_custom_call.1}
  #allocation0 [shape = 'u32[]', space=smem, size = 0x4, offset = 0x4, fixed_abs, tag = 'smem constant byte address 0x4 - core index']
  #allocation1 [shape = 'u32[72,128]{1,0:T(1,128)}', space=vmem, size = 0x9000, scoped, tag = 'internal scratch']
  #allocation2 [shape = 'f32[10,5,8]{2,1,0:T(8,128)}', space=vmem, size = 0xa000, scoped, tag = 'scratch operand']
  #allocation3 [shape = 'f32[10,5,8]{2,1,0:T(8,128)}', space=vmem, size = 0xa000, scoped, tag = 'scratch operand']
  #allocation4 [shape = 'f32[6,3,16]{2,1,0:T(4,128)}', space=vmem, size = 0x3000, scoped, tag = 'scratch operand']
  #allocation5 [shape = 'f32[6,3,16]{2,1,0:T(4,128)}', space=vmem, size = 0x3000, scoped, tag = 'scratch operand']
  #allocation6 [shape = 'f32[4,4,32]{2,1,0:T(4,128)}', space=vmem, size = 0x2000, scoped, tag = 'scratch operand']
  %s0 = inlined_call_operand.vmem [shape: f32[2,18,9,8], index: 0, kind: input, shape index: {}]
  %s1 = inlined_call_operand.vmem [shape: f32[2,18,9,8], index: 1, kind: input, shape index: {}]
  %s2 = inlined_call_operand.vmem [shape: bf16[128,8], index: 2, kind: input, shape index: {}]
  %s3 = inlined_call_operand.vmem [shape: bf16[128,16], index: 3, kind: input, shape index: {}]
  %s4 = inlined_call_operand.vmem [shape: bf16[256,32], index: 4, kind: input, shape index: {}]
  %s5 = inlined_call_operand.vmem [shape: f32[1,8], index: 5, kind: input, shape index: {}]
  %s6 = inlined_call_operand.vmem [shape: f32[1,16], index: 6, kind: input, shape index: {}]
  %s7 = inlined_call_operand.vmem [shape: f32[1,32], index: 7, kind: input, shape index: {}]
  %s8 = inlined_call_operand.vmem [shape: bf16[288,128], index: 8, kind: input, shape index: {}]
  %s9 = inlined_call_operand.hbm [shape: f32[2,2,2,128], index: 9, kind: output, shape index: {}]
  %s10 = sld [smem:[#allocation0]]
  $region69: #{tpu_custom_call.1} parent=0
    _
  %s12 = ssub.s32 1, %s10
  %s13 = scalar_select 0, %s12, %s10
  $region1: #{tpu_custom_call.1} parent=0
    #allocation7 [shape = 'u8[4096]{0}', space=vmem, size = 0x1000, scoped, tag = 'output window, operand 0']
    #allocation8 [shape = 's32[2]{0}', space=sflag, size = 0x8, scoped, tag = 'scoped memory for tpu_custom_call.1']
    %14 = vsyncpa [#allocation8], 0
    %s15 = scalar_lea.sflag [#allocation8], 1
    %16 = vsyncpa %s15, 0
    loop: start=0, step=1, limit=4
    $region2: #{tpu_custom_call.1} parent=1 // loop_pre_header
      _
    $region3: #{tpu_custom_call.1} parent=1 // loop_header
      %s18 = sphi 0, %s22
      %p19 = scmp.ge.s32.totalorder %s18, 4
      %s28 = sphi 0, %s30
      %s31 = sphi 0, %s28
      %s32 = sphi 0, %s31
      %s48 = sphi 0, %s32
      %s54 = sphi 0, %s56
      %s57 = sphi 0, %s54
      %s58 = sphi 0, %s57
      %s74 = sphi 0, %s58
      %s78 = sphi 0, %s78
      %s80 = sphi 0, %s78
      %s81 = sphi 0, %s80
      %s95 = sphi 0, %s81
      %s99 = sphi 0, %s99
      %s101 = sphi 0, %s99
      %s102 = sphi 0, %s101
      %s116 = sphi 0, %s102
      %s120 = sphi 0, %s120
      %s122 = sphi 0, %s120
      %s123 = sphi 0, %s122
      %s137 = sphi 0, %s123
      %s141 = sphi 0, %s141
      %s143 = sphi 0, %s141
      %s144 = sphi 0, %s143
      %s158 = sphi 0, %s144
      %s162 = sphi 0, %s162
      %s164 = sphi 0, %s162
      %s165 = sphi 0, %s164
      %s179 = sphi 0, %s165
      %s183 = sphi 0, %s183
      %s185 = sphi 0, %s183
      %s186 = sphi 0, %s185
      %s200 = sphi 0, %s186
      %s204 = sphi 0, %s204
      %s206 = sphi 0, %s204
      %s207 = sphi 0, %s206
      %s221 = sphi 0, %s207
      %s227 = sphi 0, %s229
      %s230 = sphi 0, %s227
      %s231 = sphi 0, %s230
      %s247 = sphi 0, %s231
    $region4: #{tpu_custom_call.1} parent=1 // loop_header_branch
      %21 = sbr.rel (%p19) target = $region8
    $region5: #{tpu_custom_call.1} parent=1 // loop_body
      %s23 = ssub.s32 %s18, 1
      %s24 = ssub.s32 %s18, 2
      %s25 = sadd.s32 %s18, 1
      %s26 = ssub.s32 %s18, %s25
      %p27 = scmp.eq.s32.totalorder %s26, 0
      %s29 = sadd.s32 %s28, 1
      %s30 = scalar_select %p27, %s28, %s29
      %p33 = pneg %p27
      %p34 = scmp.eq.s32.totalorder %s18, 1
      %p35 = por %p33, %p34
      %p36 = scmp.ne.s32.totalorder %s28, %s31
      %p37 = scmp.eq.s32.totalorder %s18, 0
      %p38 = por %p36, %p37
      %p39 = scmp.ne.s32.totalorder %s28, %s31
      %p40 = scmp.eq.s32.totalorder %s23, 1
      %p41 = por %p39, %p40
      %p42 = scmp.ne.s32.totalorder %s31, %s32
      %p43 = scmp.eq.s32.totalorder %s23, 0
      %p44 = por %p42, %p43
      %p45 = scmp.ne.s32.totalorder %s31, %s32
      %p46 = scmp.eq.s32.totalorder %s24, 1
      %p47 = por %p45, %p46
      %p49 = scmp.ne.s32.totalorder %s32, %s48
      %p50 = scmp.eq.s32.totalorder %s24, 0
      %p51 = por %p49, %p50
      %s52 = ssub.s32 %s18, %s25
      %p53 = scmp.eq.s32.totalorder %s52, 0
      %s55 = sadd.s32 %s54, 1
      %s56 = scalar_select %p53, %s54, %s55
      %p59 = pneg %p53
      %p60 = scmp.eq.s32.totalorder %s18, 1
      %p61 = por %p59, %p60
      %p62 = scmp.ne.s32.totalorder %s54, %s57
      %p63 = scmp.eq.s32.totalorder %s18, 0
      %p64 = por %p62, %p63
      %p65 = scmp.ne.s32.totalorder %s54, %s57
      %p66 = scmp.eq.s32.totalorder %s23, 1
      %p67 = por %p65, %p66
      %p68 = scmp.ne.s32.totalorder %s57, %s58
      %p69 = scmp.eq.s32.totalorder %s23, 0
      %p70 = por %p68, %p69
      %p71 = scmp.ne.s32.totalorder %s57, %s58
      %p72 = scmp.eq.s32.totalorder %s24, 1
      %p73 = por %p71, %p72
      %p75 = scmp.ne.s32.totalorder %s58, %s74
      %p76 = scmp.eq.s32.totalorder %s24, 0
      %p77 = por %p75, %p76
      %s79 = sadd.s32 %s78, 1
      %p82 = scmp.eq.s32.totalorder %s18, 1
      %p83 = scmp.ne.s32.totalorder %s78, %s80
      %p84 = scmp.eq.s32.totalorder %s18, 0
      %p85 = por %p83, %p84
      %p86 = scmp.ne.s32.totalorder %s78, %s80
      %p87 = scmp.eq.s32.totalorder %s23, 1
      %p88 = por %p86, %p87
      %p89 = scmp.ne.s32.totalorder %s80, %s81
      %p90 = scmp.eq.s32.totalorder %s23, 0
      %p91 = por %p89, %p90
      %p92 = scmp.ne.s32.totalorder %s80, %s81
      %p93 = scmp.eq.s32.totalorder %s24, 1
      %p94 = por %p92, %p93
      %p96 = scmp.ne.s32.totalorder %s81, %s95
      %p97 = scmp.eq.s32.totalorder %s24, 0
      %p98 = por %p96, %p97
      %s100 = sadd.s32 %s99, 1
      %p103 = scmp.eq.s32.totalorder %s18, 1
      %p104 = scmp.ne.s32.totalorder %s99, %s101
      %p105 = scmp.eq.s32.totalorder %s18, 0
      %p106 = por %p104, %p105
      %p107 = scmp.ne.s32.totalorder %s99, %s101
      %p108 = scmp.eq.s32.totalorder %s23, 1
      %p109 = por %p107, %p108
      %p110 = scmp.ne.s32.totalorder %s101, %s102
      %p111 = scmp.eq.s32.totalorder %s23, 0
      %p112 = por %p110, %p111
      %p113 = scmp.ne.s32.totalorder %s101, %s102
      %p114 = scmp.eq.s32.totalorder %s24, 1
      %p115 = por %p113, %p114
      %p117 = scmp.ne.s32.totalorder %s102, %s116
      %p118 = scmp.eq.s32.totalorder %s24, 0
      %p119 = por %p117, %p118
      %s121 = sadd.s32 %s120, 1
      %p124 = scmp.eq.s32.totalorder %s18, 1
      %p125 = scmp.ne.s32.totalorder %s120, %s122
      %p126 = scmp.eq.s32.totalorder %s18, 0
      %p127 = por %p125, %p126
      %p128 = scmp.ne.s32.totalorder %s120, %s122
      %p129 = scmp.eq.s32.totalorder %s23, 1
      %p130 = por %p128, %p129
      %p131 = scmp.ne.s32.totalorder %s122, %s123
      %p132 = scmp.eq.s32.totalorder %s23, 0
      %p133 = por %p131, %p132
      %p134 = scmp.ne.s32.totalorder %s122, %s123
      %p135 = scmp.eq.s32.totalorder %s24, 1
      %p136 = por %p134, %p135
      %p138 = scmp.ne.s32.totalorder %s123, %s137
      %p139 = scmp.eq.s32.totalorder %s24, 0
      %p140 = por %p138, %p139
      %s142 = sadd.s32 %s141, 1
      %p145 = scmp.eq.s32.totalorder %s18, 1
      %p146 = scmp.ne.s32.totalorder %s141, %s143
      %p147 = scmp.eq.s32.totalorder %s18, 0
      %p148 = por %p146, %p147
      %p149 = scmp.ne.s32.totalorder %s141, %s143
      %p150 = scmp.eq.s32.totalorder %s23, 1
      %p151 = por %p149, %p150
      %p152 = scmp.ne.s32.totalorder %s143, %s144
      %p153 = scmp.eq.s32.totalorder %s23, 0
      %p154 = por %p152, %p153
      %p155 = scmp.ne.s32.totalorder %s143, %s144
      %p156 = scmp.eq.s32.totalorder %s24, 1
      %p157 = por %p155, %p156
      %p159 = scmp.ne.s32.totalorder %s144, %s158
      %p160 = scmp.eq.s32.totalorder %s24, 0
      %p161 = por %p159, %p160
      %s163 = sadd.s32 %s162, 1
      %p166 = scmp.eq.s32.totalorder %s18, 1
      %p167 = scmp.ne.s32.totalorder %s162, %s164
      %p168 = scmp.eq.s32.totalorder %s18, 0
      %p169 = por %p167, %p168
      %p170 = scmp.ne.s32.totalorder %s162, %s164
      %p171 = scmp.eq.s32.totalorder %s23, 1
      %p172 = por %p170, %p171
      %p173 = scmp.ne.s32.totalorder %s164, %s165
      %p174 = scmp.eq.s32.totalorder %s23, 0
      %p175 = por %p173, %p174
      %p176 = scmp.ne.s32.totalorder %s164, %s165
      %p177 = scmp.eq.s32.totalorder %s24, 1
      %p178 = por %p176, %p177
      %p180 = scmp.ne.s32.totalorder %s165, %s179
      %p181 = scmp.eq.s32.totalorder %s24, 0
      %p182 = por %p180, %p181
      %s184 = sadd.s32 %s183, 1
      %p187 = scmp.eq.s32.totalorder %s18, 1
      %p188 = scmp.ne.s32.totalorder %s183, %s185
      %p189 = scmp.eq.s32.totalorder %s18, 0
      %p190 = por %p188, %p189
      %p191 = scmp.ne.s32.totalorder %s183, %s185
      %p192 = scmp.eq.s32.totalorder %s23, 1
      %p193 = por %p191, %p192
      %p194 = scmp.ne.s32.totalorder %s185, %s186
      %p195 = scmp.eq.s32.totalorder %s23, 0
      %p196 = por %p194, %p195
      %p197 = scmp.ne.s32.totalorder %s185, %s186
      %p198 = scmp.eq.s32.totalorder %s24, 1
      %p199 = por %p197, %p198
      %p201 = scmp.ne.s32.totalorder %s186, %s200
      %p202 = scmp.eq.s32.totalorder %s24, 0
      %p203 = por %p201, %p202
      %s205 = sadd.s32 %s204, 1
      %p208 = scmp.eq.s32.totalorder %s18, 1
      %p209 = scmp.ne.s32.totalorder %s204, %s206
      %p210 = scmp.eq.s32.totalorder %s18, 0
      %p211 = por %p209, %p210
      %p212 = scmp.ne.s32.totalorder %s204, %s206
      %p213 = scmp.eq.s32.totalorder %s23, 1
      %p214 = por %p212, %p213
      %p215 = scmp.ne.s32.totalorder %s206, %s207
      %p216 = scmp.eq.s32.totalorder %s23, 0
      %p217 = por %p215, %p216
      %p218 = scmp.ne.s32.totalorder %s206, %s207
      %p219 = scmp.eq.s32.totalorder %s24, 1
      %p220 = por %p218, %p219
      %p222 = scmp.ne.s32.totalorder %s207, %s221
      %p223 = scmp.eq.s32.totalorder %s24, 0
      %p224 = por %p222, %p223
      %s225 = ssub.s32 %s18, %s25
      %p226 = scmp.eq.s32.totalorder %s225, 0
      %s228 = sadd.s32 %s227, 1
      %s229 = scalar_select %p226, %s227, %s228
      %p232 = pneg %p226
      %p233 = scmp.eq.s32.totalorder %s18, 1
      %p234 = por %p232, %p233
      %p235 = scmp.ne.s32.totalorder %s227, %s230
      %p236 = scmp.eq.s32.totalorder %s18, 0
      %p237 = por %p235, %p236
      %p238 = scmp.ne.s32.totalorder %s227, %s230
      %p239 = scmp.eq.s32.totalorder %s23, 1
      %p240 = por %p238, %p239
      %p241 = scmp.ne.s32.totalorder %s230, %s231
      %p242 = scmp.eq.s32.totalorder %s23, 0
      %p243 = por %p241, %p242
      %p244 = scmp.ne.s32.totalorder %s230, %s231
      %p245 = scmp.eq.s32.totalorder %s24, 1
      %p246 = por %p244, %p245
      %p248 = scmp.ne.s32.totalorder %s231, %s247
      %p249 = scmp.eq.s32.totalorder %s24, 0
      %p250 = por %p248, %p249
      %p251 = scmp.le.s32.totalorder 1, %s18
      %p252 = scmp.lt.s32.totalorder %s18, 3
      %p253 = pnand %p251, %p252
      %p254 = pneg %p253
      // Predicated region
      $region9: #{tpu_custom_call.1} parent=5 // pred_check
        _
      $region10: #{tpu_custom_call.1} parent=5 // pred_check_branch
        %256 = sbr.rel (%p253) target = $region12
      $region11: #{tpu_custom_call.1} parent=5 // pred_region
        %s257 = ssub.s32 %s18, 1
        // Predicated region
        $region13: #{tpu_custom_call.1} parent=11 // pred_check
          %p258 = pneg %p91
        $region14: #{tpu_custom_call.1} parent=11 // pred_check_branch
          %260 = sbr.rel (%p258) target = $region16
        $region15: #{tpu_custom_call.1} parent=11 // pred_region
          _
        $region16: #{tpu_custom_call.1} parent=11 // pred_fallthru
          _
        // Predicated region
        $region17: #{tpu_custom_call.1} parent=11 // pred_check
          %p261 = pneg %p112
        $region18: #{tpu_custom_call.1} parent=11 // pred_check_branch
          %263 = sbr.rel (%p261) target = $region20
        $region19: #{tpu_custom_call.1} parent=11 // pred_region
          _
        $region20: #{tpu_custom_call.1} parent=11 // pred_fallthru
          _
        // Predicated region
        $region21: #{tpu_custom_call.1} parent=11 // pred_check
          %p264 = pneg %p133
        $region22: #{tpu_custom_call.1} parent=11 // pred_check_branch
          %266 = sbr.rel (%p264) target = $region24
        $region23: #{tpu_custom_call.1} parent=11 // pred_region
          _
        $region24: #{tpu_custom_call.1} parent=11 // pred_fallthru
          _
        // Predicated region
        $region25: #{tpu_custom_call.1} parent=11 // pred_check
          %p267 = pneg %p154
        $region26: #{tpu_custom_call.1} parent=11 // pred_check_branch
          %269 = sbr.rel (%p267) target = $region28
        $region27: #{tpu_custom_call.1} parent=11 // pred_region
          _
        $region28: #{tpu_custom_call.1} parent=11 // pred_fallthru
          _
        // Predicated region
        $region29: #{tpu_custom_call.1} parent=11 // pred_check
          %p270 = pneg %p175
        $region30: #{tpu_custom_call.1} parent=11 // pred_check_branch
          %272 = sbr.rel (%p270) target = $region32
        $region31: #{tpu_custom_call.1} parent=11 // pred_region
          _
        $region32: #{tpu_custom_call.1} parent=11 // pred_fallthru
          _
        // Predicated region
        $region33: #{tpu_custom_call.1} parent=11 // pred_check
          %p273 = pneg %p196
        $region34: #{tpu_custom_call.1} parent=11 // pred_check_branch
          %275 = sbr.rel (%p273) target = $region36
        $region35: #{tpu_custom_call.1} parent=11 // pred_region
          _
        $region36: #{tpu_custom_call.1} parent=11 // pred_fallthru
          _
        // Predicated region
        $region37: #{tpu_custom_call.1} parent=11 // pred_check
          %p276 = pneg %p217
        $region38: #{tpu_custom_call.1} parent=11 // pred_check_branch
          %278 = sbr.rel (%p276) target = $region40
        $region39: #{tpu_custom_call.1} parent=11 // pred_region
          _
        $region40: #{tpu_custom_call.1} parent=11 // pred_fallthru
          _
      $region12: #{tpu_custom_call.1} parent=5 // pred_fallthru
        _
      %p279 = scmp.lt.s32.totalorder %s18, 2
      // Predicated region
      $region41: #{tpu_custom_call.1} parent=5 // pred_check
        %p280 = pneg %p279
      $region42: #{tpu_custom_call.1} parent=5 // pred_check_branch
        %282 = sbr.rel (%p280) target = $region44
      $region43: #{tpu_custom_call.1} parent=5 // pred_region
        // Predicated region
        $region45: #{tpu_custom_call.1} parent=43 // pred_check
          %p283 = pneg %p38
        $region46: #{tpu_custom_call.1} parent=43 // pred_check_branch
          %285 = sbr.rel (%p283) target = $region48
        $region47: #{tpu_custom_call.1} parent=43 // pred_region
          %p286 = scmp.lt.s32.totalorder %s18, 1
          %s287 = scalar_select %p286, %s18, 1
          %s288 = smul.addr %s287, 36
          %s289 = smul.addr %s288, 8
          %s290 = scalar_lea.vmem %s0, %s289
        $region48: #{tpu_custom_call.1} parent=43 // pred_fallthru
          _
        // Predicated region
        $region49: #{tpu_custom_call.1} parent=43 // pred_check
          %p291 = pneg %p64
        $region50: #{tpu_custom_call.1} parent=43 // pred_check_branch
          %293 = sbr.rel (%p291) target = $region52
        $region51: #{tpu_custom_call.1} parent=43 // pred_region
          %p294 = scmp.lt.s32.totalorder %s18, 1
          %s295 = scalar_select %p294, %s18, 1
          %s296 = smul.addr %s295, 36
          %s297 = smul.addr %s296, 8
          %s298 = scalar_lea.vmem %s1, %s297
        $region52: #{tpu_custom_call.1} parent=43 // pred_fallthru
          _
      $region44: #{tpu_custom_call.1} parent=5 // pred_fallthru
        _
      %p299 = scmp.le.s32.totalorder 1, %s18
      %p300 = scmp.lt.s32.totalorder %s18, 3
      %p301 = pnand %p299, %p300
      %p302 = pneg %p301
      // Predicated region
      $region53: #{tpu_custom_call.1} parent=5 // pred_check
        _
      $region54: #{tpu_custom_call.1} parent=5 // pred_check_branch
        %304 = sbr.rel (%p301) target = $region56
      $region55: #{tpu_custom_call.1} parent=5 // pred_region
        %s305 = ssub.s32 %s18, 1
        %p306 = scmp.lt.s32.totalorder %s23, 1
        %s307 = scalar_select %p306, %s23, 1
        %s308 = smul.addr %s307, 36
        %s309 = smul.addr %s308, 8
        %s310 = scalar_lea.vmem %s0, %s309
        %p311 = pneg %p44
        %p312 = pneg %p41
        %p313 = scmp.lt.s32.totalorder %s23, 1
        %s314 = scalar_select %p313, %s23, 1
        %s315 = smul.addr %s314, 36
        %s316 = smul.addr %s315, 8
        %s317 = scalar_lea.vmem %s1, %s316
        %p318 = pneg %p70
        %p319 = pneg %p67
        %p320 = pneg %p91
        %p321 = pneg %p88
        %p322 = pneg %p112
        %p323 = pneg %p109
        %p324 = pneg %p133
        %p325 = pneg %p130
        %p326 = pneg %p154
        %p327 = pneg %p151
        %p328 = pneg %p175
        %p329 = pneg %p172
        %p330 = pneg %p196
        %p331 = pneg %p193
        %p332 = pneg %p217
        %p333 = pneg %p214
        %p334 = pneg %p243
        %p335 = pneg %p240
        %s336 = sand.u32 %s230, 1
        %s337 = scalar_lea.sflag [#allocation8], %s336
        %s338 = sand.u32 %s230, 1
        %s339 = smul.addr %s338, 4
        %s340 = scalar_lea.vmem [#allocation7], %s339
        %p341 = scmp.lt.s32.totalorder %s23, 1
        %s342 = scalar_select %p341, %s23, 1
        %s343 = smul.addr %s342, 36
        %s344 = smul.addr %s343, 8
        %s345 = scalar_lea.vmem %s0, %s344
        %p346 = scmp.lt.s32.totalorder %s23, 1
        %s347 = scalar_select %p346, %s23, 1
        %s348 = smul.addr %s347, 36
        %s349 = smul.addr %s348, 8
        %s350 = scalar_lea.vmem %s1, %s349
        %v352 = vld [vmem:[%s345] sm:$0xff]
        %v353 = vld [vmem:[%s345 + $0x8] sm:$0x1]
        %v354 = vld [vmem:[%s350] sm:$0xff]
        %v355 = vld [vmem:[%s350 + $0x8] sm:$0x1]
        %s356 = scalar_lea.vmem %s345, 16
        %v357 = vld [vmem:[%s356] sm:$0xff]
        %v358 = vld [vmem:[%s356 + $0x8] sm:$0x1]
        %s359 = scalar_lea.vmem %s350, 16
        %v360 = vld [vmem:[%s359] sm:$0xff]
        %v361 = vld [vmem:[%s359 + $0x8] sm:$0x1]
        %s362 = scalar_lea.vmem %s345, 32
        %v363 = vld [vmem:[%s362] sm:$0xff]
        %v364 = vld [vmem:[%s362 + $0x8] sm:$0x1]
        %s365 = scalar_lea.vmem %s350, 32
        %v366 = vld [vmem:[%s365] sm:$0xff]
        %v367 = vld [vmem:[%s365 + $0x8] sm:$0x1]
        %s368 = scalar_lea.vmem %s345, 48
        %v369 = vld [vmem:[%s368] sm:$0xff]
        %v370 = vld [vmem:[%s368 + $0x8] sm:$0x1]
        %s371 = scalar_lea.vmem %s350, 48
        %v372 = vld [vmem:[%s371] sm:$0xff]
        %v373 = vld [vmem:[%s371 + $0x8] sm:$0x1]
        %375 = vrot.lane.b32.xlu0 %v354, 8
        %v376 = vpop.permute.xlu0 %375
        %vm380 = vcmask 1046528
        %v381 = vrot.slane %v352, 1
        %v382 = vrot.slane %v353, 1
        %v383 = vsel %vm380, %v381, %v382
        %384 = vrot.lane.b32.xlu0 %v383, 16
        %v385 = vpop.permute.xlu0 %384
        %v388 = vrot.slane %v354, 1
        %v389 = vrot.slane %v355, 1
        %v390 = vsel %vm380, %v388, %v389
        %391 = vrot.lane.b32.xlu0 %v390, 24
        %v392 = vpop.permute.xlu0 %391
        %395 = vrot.lane.b32.xlu0 %v357, 32
        %v396 = vpop.permute.xlu0 %395
        %399 = vrot.lane.b32.xlu0 %v360, 40
        %v400 = vpop.permute.xlu0 %399
        %v403 = vrot.slane %v357, 1
        %v404 = vrot.slane %v358, 1
        %v405 = vsel %vm380, %v403, %v404
        %406 = vrot.lane.b32.xlu0 %v405, 48
        %v407 = vpop.permute.xlu0 %406
        %v410 = vrot.slane %v360, 1
        %v411 = vrot.slane %v361, 1
        %v412 = vsel %vm380, %v410, %v411
        %413 = vrot.lane.b32.xlu0 %v412, 56
        %v414 = vpop.permute.xlu0 %413
        %417 = vrot.lane.b32.xlu0 %v363, 64
        %v418 = vpop.permute.xlu0 %417
        %421 = vrot.lane.b32.xlu0 %v366, 72
        %v422 = vpop.permute.xlu0 %421
        %v425 = vrot.slane %v363, 1
        %v426 = vrot.slane %v364, 1
        %v427 = vsel %vm380, %v425, %v426
        %428 = vrot.lane.b32.xlu0 %v427, 80
        %v429 = vpop.permute.xlu0 %428
        %v432 = vrot.slane %v366, 1
        %v433 = vrot.slane %v367, 1
        %v434 = vsel %vm380, %v432, %v433
        %435 = vrot.lane.b32.xlu0 %v434, 88
        %v436 = vpop.permute.xlu0 %435
        %439 = vrot.lane.b32.xlu0 %v369, 96
        %v440 = vpop.permute.xlu0 %439
        %443 = vrot.lane.b32.xlu0 %v372, 104
        %v444 = vpop.permute.xlu0 %443
        %v447 = vrot.slane %v369, 1
        %v448 = vrot.slane %v370, 1
        %v449 = vsel %vm380, %v447, %v448
        %450 = vrot.lane.b32.xlu0 %v449, 112
        %v451 = vpop.permute.xlu0 %450
        %v454 = vrot.slane %v372, 1
        %v455 = vrot.slane %v373, 1
        %v456 = vsel %vm380, %v454, %v455
        %457 = vrot.lane.b32.xlu0 %v456, 120
        %v458 = vpop.permute.xlu0 %457
        %vm460 = vcmask 64512
        %v461 = vsel %vm460, %v352, %v376
        %vm462 = vcmask 130048
        %v463 = vsel %vm462, %v461, %v385
        %vm464 = vcmask 195584
        %v465 = vsel %vm464, %v463, %v392
        %vm466 = vcmask 261120
        %v467 = vsel %vm466, %v465, %v396
        %vm468 = vcmask 326656
        %v469 = vsel %vm468, %v467, %v400
        %vm470 = vcmask 392192
        %v471 = vsel %vm470, %v469, %v407
        %vm472 = vcmask 457728
        %v473 = vsel %vm472, %v471, %v414
        %vm474 = vcmask 523264
        %v475 = vsel %vm474, %v473, %v418
        %vm476 = vcmask 588800
        %v477 = vsel %vm476, %v475, %v422
        %vm478 = vcmask 654336
        %v479 = vsel %vm478, %v477, %v429
        %vm480 = vcmask 719872
        %v481 = vsel %vm480, %v479, %v436
        %vm482 = vcmask 785408
        %v483 = vsel %vm482, %v481, %v440
        %vm484 = vcmask 850944
        %v485 = vsel %vm484, %v483, %v444
        %vm486 = vcmask 916480
        %v487 = vsel %vm486, %v485, %v451
        %vm488 = vcmask 982016
        %v489 = vsel %vm488, %v487, %v458
        %s490 = scalar_lea.vmem %s345, 64
        %v491 = vld [vmem:[%s490] sm:$0xff]
        %v492 = vld [vmem:[%s490 + $0x8] sm:$0x1]
        %s493 = scalar_lea.vmem %s350, 64
        %v494 = vld [vmem:[%s493] sm:$0xff]
        %v495 = vld [vmem:[%s493 + $0x8] sm:$0x1]
        %s496 = scalar_lea.vmem %s345, 80
        %v497 = vld [vmem:[%s496] sm:$0xff]
        %v498 = vld [vmem:[%s496 + $0x8] sm:$0x1]
        %s499 = scalar_lea.vmem %s350, 80
        %v500 = vld [vmem:[%s499] sm:$0xff]
        %v501 = vld [vmem:[%s499 + $0x8] sm:$0x1]
        %502 = vrot.lane.b32.xlu0 %v366, 8
        %v503 = vpop.permute.xlu0 %502
        %505 = vrot.lane.b32.xlu0 %v427, 16
        %v506 = vpop.permute.xlu0 %505
        %508 = vrot.lane.b32.xlu0 %v434, 24
        %v509 = vpop.permute.xlu0 %508
        %511 = vrot.lane.b32.xlu0 %v369, 32
        %v512 = vpop.permute.xlu0 %511
        %514 = vrot.lane.b32.xlu0 %v372, 40
        %v515 = vpop.permute.xlu0 %514
        %517 = vrot.lane.b32.xlu0 %v449, 48
        %v518 = vpop.permute.xlu0 %517
        %520 = vrot.lane.b32.xlu0 %v456, 56
        %v521 = vpop.permute.xlu0 %520
        %524 = vrot.lane.b32.xlu0 %v491, 64
        %v525 = vpop.permute.xlu0 %524
        %528 = vrot.lane.b32.xlu0 %v494, 72
        %v529 = vpop.permute.xlu0 %528
        %v532 = vrot.slane %v491, 1
        %v533 = vrot.slane %v492, 1
        %v534 = vsel %vm380, %v532, %v533
        %535 = vrot.lane.b32.xlu0 %v534, 80
        %v536 = vpop.permute.xlu0 %535
        %v539 = vrot.slane %v494, 1
        %v540 = vrot.slane %v495, 1
        %v541 = vsel %vm380, %v539, %v540
        %542 = vrot.lane.b32.xlu0 %v541, 88
        %v543 = vpop.permute.xlu0 %542
        %546 = vrot.lane.b32.xlu0 %v497, 96
        %v547 = vpop.permute.xlu0 %546
        %550 = vrot.lane.b32.xlu0 %v500, 104
        %v551 = vpop.permute.xlu0 %550
        %v554 = vrot.slane %v497, 1
        %v555 = vrot.slane %v498, 1
        %v556 = vsel %vm380, %v554, %v555
        %557 = vrot.lane.b32.xlu0 %v556, 112
        %v558 = vpop.permute.xlu0 %557
        %v561 = vrot.slane %v500, 1
        %v562 = vrot.slane %v501, 1
        %v563 = vsel %vm380, %v561, %v562
        %564 = vrot.lane.b32.xlu0 %v563, 120
        %v565 = vpop.permute.xlu0 %564
        %v567 = vsel %vm460, %v363, %v503
        %v568 = vsel %vm462, %v567, %v506
        %v569 = vsel %vm464, %v568, %v509
        %v570 = vsel %vm466, %v569, %v512
        %v571 = vsel %vm468, %v570, %v515
        %v572 = vsel %vm470, %v571, %v518
        %v573 = vsel %vm472, %v572, %v521
        %v574 = vsel %vm474, %v573, %v525
        %v575 = vsel %vm476, %v574, %v529
        %v576 = vsel %vm478, %v575, %v536
        %v577 = vsel %vm480, %v576, %v543
        %v578 = vsel %vm482, %v577, %v547
        %v579 = vsel %vm484, %v578, %v551
        %v580 = vsel %vm486, %v579, %v558
        %v581 = vsel %vm488, %v580, %v565
        %s582 = scalar_lea.vmem %s345, 96
        %v583 = vld [vmem:[%s582] sm:$0xff]
        %v584 = vld [vmem:[%s582 + $0x8] sm:$0x1]
        %s585 = scalar_lea.vmem %s350, 96
        %v586 = vld [vmem:[%s585] sm:$0xff]
        %v587 = vld [vmem:[%s585 + $0x8] sm:$0x1]
        %s588 = scalar_lea.vmem %s345, 112
        %v589 = vld [vmem:[%s588] sm:$0xff]
        %v590 = vld [vmem:[%s588 + $0x8] sm:$0x1]
        %s591 = scalar_lea.vmem %s350, 112
        %v592 = vld [vmem:[%s591] sm:$0xff]
        %v593 = vld [vmem:[%s591 + $0x8] sm:$0x1]
        %594 = vrot.lane.b32.xlu0 %v494, 8
        %v595 = vpop.permute.xlu0 %594
        %597 = vrot.lane.b32.xlu0 %v534, 16
        %v598 = vpop.permute.xlu0 %597
        %600 = vrot.lane.b32.xlu0 %v541, 24
        %v601 = vpop.permute.xlu0 %600
        %603 = vrot.lane.b32.xlu0 %v497, 32
        %v604 = vpop.permute.xlu0 %603
        %606 = vrot.lane.b32.xlu0 %v500, 40
        %v607 = vpop.permute.xlu0 %606
        %609 = vrot.lane.b32.xlu0 %v556, 48
        %v610 = vpop.permute.xlu0 %609
        %612 = vrot.lane.b32.xlu0 %v563, 56
        %v613 = vpop.permute.xlu0 %612
        %616 = vrot.lane.b32.xlu0 %v583, 64
        %v617 = vpop.permute.xlu0 %616
        %620 = vrot.lane.b32.xlu0 %v586, 72
        %v621 = vpop.permute.xlu0 %620
        %v624 = vrot.slane %v583, 1
        %v625 = vrot.slane %v584, 1
        %v626 = vsel %vm380, %v624, %v625
        %627 = vrot.lane.b32.xlu0 %v626, 80
        %v628 = vpop.permute.xlu0 %627
        %v631 = vrot.slane %v586, 1
        %v632 = vrot.slane %v587, 1
        %v633 = vsel %vm380, %v631, %v632
        %634 = vrot.lane.b32.xlu0 %v633, 88
        %v635 = vpop.permute.xlu0 %634
        %638 = vrot.lane.b32.xlu0 %v589, 96
        %v639 = vpop.permute.xlu0 %638
        %642 = vrot.lane.b32.xlu0 %v592, 104
        %v643 = vpop.permute.xlu0 %642
        %v646 = vrot.slane %v589, 1
        %v647 = vrot.slane %v590, 1
        %v648 = vsel %vm380, %v646, %v647
        %649 = vrot.lane.b32.xlu0 %v648, 112
        %v650 = vpop.permute.xlu0 %649
        %v653 = vrot.slane %v592, 1
        %v654 = vrot.slane %v593, 1
        %v655 = vsel %vm380, %v653, %v654
        %656 = vrot.lane.b32.xlu0 %v655, 120
        %v657 = vpop.permute.xlu0 %656
        %v659 = vsel %vm460, %v491, %v595
        %v660 = vsel %vm462, %v659, %v598
        %v661 = vsel %vm464, %v660, %v601
        %v662 = vsel %vm466, %v661, %v604
        %v663 = vsel %vm468, %v662, %v607
        %v664 = vsel %vm470, %v663, %v610
        %v665 = vsel %vm472, %v664, %v613
        %v666 = vsel %vm474, %v665, %v617
        %v667 = vsel %vm476, %v666, %v621
        %v668 = vsel %vm478, %v667, %v628
        %v669 = vsel %vm480, %v668, %v635
        %v670 = vsel %vm482, %v669, %v639
        %v671 = vsel %vm484, %v670, %v643
        %v672 = vsel %vm486, %v671, %v650
        %v673 = vsel %vm488, %v672, %v657
        %s674 = scalar_lea.vmem %s345, 128
        %v675 = vld [vmem:[%s674] sm:$0xff]
        %v676 = vld [vmem:[%s674 + $0x8] sm:$0x1]
        %s677 = scalar_lea.vmem %s350, 128
        %v678 = vld [vmem:[%s677] sm:$0xff]
        %v679 = vld [vmem:[%s677 + $0x8] sm:$0x1]
        %s680 = scalar_lea.vmem %s345, 144
        %v681 = vld [vmem:[%s680] sm:$0xff]
        %v682 = vld [vmem:[%s680 + $0x8] sm:$0x1]
        %s683 = scalar_lea.vmem %s350, 144
        %v684 = vld [vmem:[%s683] sm:$0xff]
        %v685 = vld [vmem:[%s683 + $0x8] sm:$0x1]
        %686 = vrot.lane.b32.xlu0 %v586, 8
        %v687 = vpop.permute.xlu0 %686
        %689 = vrot.lane.b32.xlu0 %v626, 16
        %v690 = vpop.permute.xlu0 %689
        %692 = vrot.lane.b32.xlu0 %v633, 24
        %v693 = vpop.permute.xlu0 %692
        %695 = vrot.lane.b32.xlu0 %v589, 32
        %v696 = vpop.permute.xlu0 %695
        %698 = vrot.lane.b32.xlu0 %v592, 40
        %v699 = vpop.permute.xlu0 %698
        %701 = vrot.lane.b32.xlu0 %v648, 48
        %v702 = vpop.permute.xlu0 %701
        %704 = vrot.lane.b32.xlu0 %v655, 56
        %v705 = vpop.permute.xlu0 %704
        %708 = vrot.lane.b32.xlu0 %v675, 64
        %v709 = vpop.permute.xlu0 %708
        %712 = vrot.lane.b32.xlu0 %v678, 72
        %v713 = vpop.permute.xlu0 %712
        %v716 = vrot.slane %v675, 1
        %v717 = vrot.slane %v676, 1
        %v718 = vsel %vm380, %v716, %v717
        %719 = vrot.lane.b32.xlu0 %v718, 80
        %v720 = vpop.permute.xlu0 %719
        %v723 = vrot.slane %v678, 1
        %v724 = vrot.slane %v679, 1
        %v725 = vsel %vm380, %v723, %v724
        %726 = vrot.lane.b32.xlu0 %v725, 88
        %v727 = vpop.permute.xlu0 %726
        %730 = vrot.lane.b32.xlu0 %v681, 96
        %v731 = vpop.permute.xlu0 %730
        %734 = vrot.lane.b32.xlu0 %v684, 104
        %v735 = vpop.permute.xlu0 %734
        %v738 = vrot.slane %v681, 1
        %v739 = vrot.slane %v682, 1
        %v740 = vsel %vm380, %v738, %v739
        %741 = vrot.lane.b32.xlu0 %v740, 112
        %v742 = vpop.permute.xlu0 %741
        %v745 = vrot.slane %v684, 1
        %v746 = vrot.slane %v685, 1
        %v747 = vsel %vm380, %v745, %v746
        %748 = vrot.lane.b32.xlu0 %v747, 120
        %v749 = vpop.permute.xlu0 %748
        %v751 = vsel %vm460, %v583, %v687
        %v752 = vsel %vm462, %v751, %v690
        %v753 = vsel %vm464, %v752, %v693
        %v754 = vsel %vm466, %v753, %v696
        %v755 = vsel %vm468, %v754, %v699
        %v756 = vsel %vm470, %v755, %v702
        %v757 = vsel %vm472, %v756, %v705
        %v758 = vsel %vm474, %v757, %v709
        %v759 = vsel %vm476, %v758, %v713
        %v760 = vsel %vm478, %v759, %v720
        %v761 = vsel %vm480, %v760, %v727
        %v762 = vsel %vm482, %v761, %v731
        %v763 = vsel %vm484, %v762, %v735
        %v764 = vsel %vm486, %v763, %v742
        %v765 = vsel %vm488, %v764, %v749
        %s766 = scalar_lea.vmem %s345, 160
        %v767 = vld [vmem:[%s766] sm:$0xff]
        %v768 = vld [vmem:[%s766 + $0x8] sm:$0x1]
        %s769 = scalar_lea.vmem %s350, 160
        %v770 = vld [vmem:[%s769] sm:$0xff]
        %v771 = vld [vmem:[%s769 + $0x8] sm:$0x1]
        %s772 = scalar_lea.vmem %s345, 176
        %v773 = vld [vmem:[%s772] sm:$0xff]
        %v774 = vld [vmem:[%s772 + $0x8] sm:$0x1]
        %s775 = scalar_lea.vmem %s350, 176
        %v776 = vld [vmem:[%s775] sm:$0xff]
        %v777 = vld [vmem:[%s775 + $0x8] sm:$0x1]
        %778 = vrot.lane.b32.xlu0 %v678, 8
        %v779 = vpop.permute.xlu0 %778
        %781 = vrot.lane.b32.xlu0 %v718, 16
        %v782 = vpop.permute.xlu0 %781
        %784 = vrot.lane.b32.xlu0 %v725, 24
        %v785 = vpop.permute.xlu0 %784
        %787 = vrot.lane.b32.xlu0 %v681, 32
        %v788 = vpop.permute.xlu0 %787
        %790 = vrot.lane.b32.xlu0 %v684, 40
        %v791 = vpop.permute.xlu0 %790
        %793 = vrot.lane.b32.xlu0 %v740, 48
        %v794 = vpop.permute.xlu0 %793
        %796 = vrot.lane.b32.xlu0 %v747, 56
        %v797 = vpop.permute.xlu0 %796
        %800 = vrot.lane.b32.xlu0 %v767, 64
        %v801 = vpop.permute.xlu0 %800
        %804 = vrot.lane.b32.xlu0 %v770, 72
        %v805 = vpop.permute.xlu0 %804
        %v808 = vrot.slane %v767, 1
        %v809 = vrot.slane %v768, 1
        %v810 = vsel %vm380, %v808, %v809
        %811 = vrot.lane.b32.xlu0 %v810, 80
        %v812 = vpop.permute.xlu0 %811
        %v815 = vrot.slane %v770, 1
        %v816 = vrot.slane %v771, 1
        %v817 = vsel %vm380, %v815, %v816
        %818 = vrot.lane.b32.xlu0 %v817, 88
        %v819 = vpop.permute.xlu0 %818
        %822 = vrot.lane.b32.xlu0 %v773, 96
        %v823 = vpop.permute.xlu0 %822
        %826 = vrot.lane.b32.xlu0 %v776, 104
        %v827 = vpop.permute.xlu0 %826
        %v830 = vrot.slane %v773, 1
        %v831 = vrot.slane %v774, 1
        %v832 = vsel %vm380, %v830, %v831
        %833 = vrot.lane.b32.xlu0 %v832, 112
        %v834 = vpop.permute.xlu0 %833
        %v837 = vrot.slane %v776, 1
        %v838 = vrot.slane %v777, 1
        %v839 = vsel %vm380, %v837, %v838
        %840 = vrot.lane.b32.xlu0 %v839, 120
        %v841 = vpop.permute.xlu0 %840
        %v843 = vsel %vm460, %v675, %v779
        %v844 = vsel %vm462, %v843, %v782
        %v845 = vsel %vm464, %v844, %v785
        %v846 = vsel %vm466, %v845, %v788
        %v847 = vsel %vm468, %v846, %v791
        %v848 = vsel %vm470, %v847, %v794
        %v849 = vsel %vm472, %v848, %v797
        %v850 = vsel %vm474, %v849, %v801
        %v851 = vsel %vm476, %v850, %v805
        %v852 = vsel %vm478, %v851, %v812
        %v853 = vsel %vm480, %v852, %v819
        %v854 = vsel %vm482, %v853, %v823
        %v855 = vsel %vm484, %v854, %v827
        %v856 = vsel %vm486, %v855, %v834
        %v857 = vsel %vm488, %v856, %v841
        %s858 = scalar_lea.vmem %s345, 192
        %v859 = vld [vmem:[%s858] sm:$0xff]
        %v860 = vld [vmem:[%s858 + $0x8] sm:$0x1]
        %s861 = scalar_lea.vmem %s350, 192
        %v862 = vld [vmem:[%s861] sm:$0xff]
        %v863 = vld [vmem:[%s861 + $0x8] sm:$0x1]
        %s864 = scalar_lea.vmem %s345, 208
        %v865 = vld [vmem:[%s864] sm:$0xff]
        %v866 = vld [vmem:[%s864 + $0x8] sm:$0x1]
        %s867 = scalar_lea.vmem %s350, 208
        %v868 = vld [vmem:[%s867] sm:$0xff]
        %v869 = vld [vmem:[%s867 + $0x8] sm:$0x1]
        %870 = vrot.lane.b32.xlu0 %v770, 8
        %v871 = vpop.permute.xlu0 %870
        %873 = vrot.lane.b32.xlu0 %v810, 16
        %v874 = vpop.permute.xlu0 %873
        %876 = vrot.lane.b32.xlu0 %v817, 24
        %v877 = vpop.permute.xlu0 %876
        %879 = vrot.lane.b32.xlu0 %v773, 32
        %v880 = vpop.permute.xlu0 %879
        %882 = vrot.lane.b32.xlu0 %v776, 40
        %v883 = vpop.permute.xlu0 %882
        %885 = vrot.lane.b32.xlu0 %v832, 48
        %v886 = vpop.permute.xlu0 %885
        %888 = vrot.lane.b32.xlu0 %v839, 56
        %v889 = vpop.permute.xlu0 %888
        %892 = vrot.lane.b32.xlu0 %v859, 64
        %v893 = vpop.permute.xlu0 %892
        %896 = vrot.lane.b32.xlu0 %v862, 72
        %v897 = vpop.permute.xlu0 %896
        %v900 = vrot.slane %v859, 1
        %v901 = vrot.slane %v860, 1
        %v902 = vsel %vm380, %v900, %v901
        %903 = vrot.lane.b32.xlu0 %v902, 80
        %v904 = vpop.permute.xlu0 %903
        %v907 = vrot.slane %v862, 1
        %v908 = vrot.slane %v863, 1
        %v909 = vsel %vm380, %v907, %v908
        %910 = vrot.lane.b32.xlu0 %v909, 88
        %v911 = vpop.permute.xlu0 %910
        %914 = vrot.lane.b32.xlu0 %v865, 96
        %v915 = vpop.permute.xlu0 %914
        %918 = vrot.lane.b32.xlu0 %v868, 104
        %v919 = vpop.permute.xlu0 %918
        %v922 = vrot.slane %v865, 1
        %v923 = vrot.slane %v866, 1
        %v924 = vsel %vm380, %v922, %v923
        %925 = vrot.lane.b32.xlu0 %v924, 112
        %v926 = vpop.permute.xlu0 %925
        %v929 = vrot.slane %v868, 1
        %v930 = vrot.slane %v869, 1
        %v931 = vsel %vm380, %v929, %v930
        %932 = vrot.lane.b32.xlu0 %v931, 120
        %v933 = vpop.permute.xlu0 %932
        %v935 = vsel %vm460, %v767, %v871
        %v936 = vsel %vm462, %v935, %v874
        %v937 = vsel %vm464, %v936, %v877
        %v938 = vsel %vm466, %v937, %v880
        %v939 = vsel %vm468, %v938, %v883
        %v940 = vsel %vm470, %v939, %v886
        %v941 = vsel %vm472, %v940, %v889
        %v942 = vsel %vm474, %v941, %v893
        %v943 = vsel %vm476, %v942, %v897
        %v944 = vsel %vm478, %v943, %v904
        %v945 = vsel %vm480, %v944, %v911
        %v946 = vsel %vm482, %v945, %v915
        %v947 = vsel %vm484, %v946, %v919
        %v948 = vsel %vm486, %v947, %v926
        %v949 = vsel %vm488, %v948, %v933
        %s950 = scalar_lea.vmem %s345, 224
        %v951 = vld [vmem:[%s950] sm:$0xff]
        %v952 = vld [vmem:[%s950 + $0x8] sm:$0x1]
        %s953 = scalar_lea.vmem %s350, 224
        %v954 = vld [vmem:[%s953] sm:$0xff]
        %v955 = vld [vmem:[%s953 + $0x8] sm:$0x1]
        %s956 = scalar_lea.vmem %s345, 240
        %v957 = vld [vmem:[%s956] sm:$0xff]
        %v958 = vld [vmem:[%s956 + $0x8] sm:$0x1]
        %s959 = scalar_lea.vmem %s350, 240
        %v960 = vld [vmem:[%s959] sm:$0xff]
        %v961 = vld [vmem:[%s959 + $0x8] sm:$0x1]
        %962 = vrot.lane.b32.xlu0 %v862, 8
        %v963 = vpop.permute.xlu0 %962
        %965 = vrot.lane.b32.xlu0 %v902, 16
        %v966 = vpop.permute.xlu0 %965
        %968 = vrot.lane.b32.xlu0 %v909, 24
        %v969 = vpop.permute.xlu0 %968
        %971 = vrot.lane.b32.xlu0 %v865, 32
        %v972 = vpop.permute.xlu0 %971
        %974 = vrot.lane.b32.xlu0 %v868, 40
        %v975 = vpop.permute.xlu0 %974
        %977 = vrot.lane.b32.xlu0 %v924, 48
        %v978 = vpop.permute.xlu0 %977
        %980 = vrot.lane.b32.xlu0 %v931, 56
        %v981 = vpop.permute.xlu0 %980
        %984 = vrot.lane.b32.xlu0 %v951, 64
        %v985 = vpop.permute.xlu0 %984
        %988 = vrot.lane.b32.xlu0 %v954, 72
        %v989 = vpop.permute.xlu0 %988
        %v992 = vrot.slane %v951, 1
        %v993 = vrot.slane %v952, 1
        %v994 = vsel %vm380, %v992, %v993
        %995 = vrot.lane.b32.xlu0 %v994, 80
        %v996 = vpop.permute.xlu0 %995
        %v999 = vrot.slane %v954, 1
        %v1000 = vrot.slane %v955, 1
        %v1001 = vsel %vm380, %v999, %v1000
        %1002 = vrot.lane.b32.xlu0 %v1001, 88
        %v1003 = vpop.permute.xlu0 %1002
        %1006 = vrot.lane.b32.xlu0 %v957, 96
        %v1007 = vpop.permute.xlu0 %1006
        %1010 = vrot.lane.b32.xlu0 %v960, 104
        %v1011 = vpop.permute.xlu0 %1010
        %v1014 = vrot.slane %v957, 1
        %v1015 = vrot.slane %v958, 1
        %v1016 = vsel %vm380, %v1014, %v1015
        %1017 = vrot.lane.b32.xlu0 %v1016, 112
        %v1018 = vpop.permute.xlu0 %1017
        %v1021 = vrot.slane %v960, 1
        %v1022 = vrot.slane %v961, 1
        %v1023 = vsel %vm380, %v1021, %v1022
        %1024 = vrot.lane.b32.xlu0 %v1023, 120
        %v1025 = vpop.permute.xlu0 %1024
        %v1027 = vsel %vm460, %v859, %v963
        %v1028 = vsel %vm462, %v1027, %v966
        %v1029 = vsel %vm464, %v1028, %v969
        %v1030 = vsel %vm466, %v1029, %v972
        %v1031 = vsel %vm468, %v1030, %v975
        %v1032 = vsel %vm470, %v1031, %v978
        %v1033 = vsel %vm472, %v1032, %v981
        %v1034 = vsel %vm474, %v1033, %v985
        %v1035 = vsel %vm476, %v1034, %v989
        %v1036 = vsel %vm478, %v1035, %v996
        %v1037 = vsel %vm480, %v1036, %v1003
        %v1038 = vsel %vm482, %v1037, %v1007
        %v1039 = vsel %vm484, %v1038, %v1011
        %v1040 = vsel %vm486, %v1039, %v1018
        %v1041 = vsel %vm488, %v1040, %v1025
        %s1042 = scalar_lea.vmem %s345, 256
        %v1043 = vld [vmem:[%s1042] sm:$0xff]
        %v1044 = vld [vmem:[%s1042 + $0x8] sm:$0x1]
        %s1045 = scalar_lea.vmem %s350, 256
        %v1046 = vld [vmem:[%s1045] sm:$0xff]
        %v1047 = vld [vmem:[%s1045 + $0x8] sm:$0x1]
        %s1048 = scalar_lea.vmem %s345, 272
        %v1049 = vld [vmem:[%s1048] sm:$0xff]
        %v1050 = vld [vmem:[%s1048 + $0x8] sm:$0x1]
        %s1051 = scalar_lea.vmem %s350, 272
        %v1052 = vld [vmem:[%s1051] sm:$0xff]
        %v1053 = vld [vmem:[%s1051 + $0x8] sm:$0x1]
        %1054 = vrot.lane.b32.xlu0 %v954, 8
        %v1055 = vpop.permute.xlu0 %1054
        %1057 = vrot.lane.b32.xlu0 %v994, 16
        %v1058 = vpop.permute.xlu0 %1057
        %1060 = vrot.lane.b32.xlu0 %v1001, 24
        %v1061 = vpop.permute.xlu0 %1060
        %1063 = vrot.lane.b32.xlu0 %v957, 32
        %v1064 = vpop.permute.xlu0 %1063
        %1066 = vrot.lane.b32.xlu0 %v960, 40
        %v1067 = vpop.permute.xlu0 %1066
        %1069 = vrot.lane.b32.xlu0 %v1016, 48
        %v1070 = vpop.permute.xlu0 %1069
        %1072 = vrot.lane.b32.xlu0 %v1023, 56
        %v1073 = vpop.permute.xlu0 %1072
        %1076 = vrot.lane.b32.xlu0 %v1043, 64
        %v1077 = vpop.permute.xlu0 %1076
        %1080 = vrot.lane.b32.xlu0 %v1046, 72
        %v1081 = vpop.permute.xlu0 %1080
        %v1084 = vrot.slane %v1043, 1
        %v1085 = vrot.slane %v1044, 1
        %v1086 = vsel %vm380, %v1084, %v1085
        %1087 = vrot.lane.b32.xlu0 %v1086, 80
        %v1088 = vpop.permute.xlu0 %1087
        %v1091 = vrot.slane %v1046, 1
        %v1092 = vrot.slane %v1047, 1
        %v1093 = vsel %vm380, %v1091, %v1092
        %1094 = vrot.lane.b32.xlu0 %v1093, 88
        %v1095 = vpop.permute.xlu0 %1094
        %1098 = vrot.lane.b32.xlu0 %v1049, 96
        %v1099 = vpop.permute.xlu0 %1098
        %1102 = vrot.lane.b32.xlu0 %v1052, 104
        %v1103 = vpop.permute.xlu0 %1102
        %v1106 = vrot.slane %v1049, 1
        %v1107 = vrot.slane %v1050, 1
        %v1108 = vsel %vm380, %v1106, %v1107
        %1109 = vrot.lane.b32.xlu0 %v1108, 112
        %v1110 = vpop.permute.xlu0 %1109
        %v1113 = vrot.slane %v1052, 1
        %v1114 = vrot.slane %v1053, 1
        %v1115 = vsel %vm380, %v1113, %v1114
        %1116 = vrot.lane.b32.xlu0 %v1115, 120
        %v1117 = vpop.permute.xlu0 %1116
        %v1119 = vsel %vm460, %v951, %v1055
        %v1120 = vsel %vm462, %v1119, %v1058
        %v1121 = vsel %vm464, %v1120, %v1061
        %v1122 = vsel %vm466, %v1121, %v1064
        %v1123 = vsel %vm468, %v1122, %v1067
        %v1124 = vsel %vm470, %v1123, %v1070
        %v1125 = vsel %vm472, %v1124, %v1073
        %v1126 = vsel %vm474, %v1125, %v1077
        %v1127 = vsel %vm476, %v1126, %v1081
        %v1128 = vsel %vm478, %v1127, %v1088
        %v1129 = vsel %vm480, %v1128, %v1095
        %v1130 = vsel %vm482, %v1129, %v1099
        %v1131 = vsel %vm484, %v1130, %v1103
        %v1132 = vsel %vm486, %v1131, %v1110
        %v1133 = vsel %vm488, %v1132, %v1117
        %v1134 = vpack.c.bf16 %v581, %v489
        %v1135 = vpack.c.bf16 %v765, %v673
        %v1136 = vpack.c.bf16 %v949, %v857
        %v1137 = vpack.c.bf16 %v1133, %v1041
        %v1138 = vld [vmem:[%s2] sm:$0xf]
        %v1139 = vld [vmem:[%s2 + $0x4] sm:$0xf]
        %v1140 = vld [vmem:[%s2 + $0x8] sm:$0xf]
        %v1141 = vld [vmem:[%s2 + $0xc] sm:$0xf]
        %v1142 = vld [vmem:[%s2 + $0x10] sm:$0xf]
        %v1143 = vld [vmem:[%s2 + $0x14] sm:$0xf]
        %v1144 = vld [vmem:[%s2 + $0x18] sm:$0xf]
        %v1145 = vld [vmem:[%s2 + $0x1c] sm:$0xf]
        %v1146 = vld [vmem:[%s2 + $0x20] sm:$0xf]
        %v1147 = vld [vmem:[%s2 + $0x24] sm:$0xf]
        %v1148 = vld [vmem:[%s2 + $0x28] sm:$0xf]
        %v1149 = vld [vmem:[%s2 + $0x2c] sm:$0xf]
        %v1150 = vld [vmem:[%s2 + $0x30] sm:$0xf]
        %v1151 = vld [vmem:[%s2 + $0x34] sm:$0xf]
        %v1152 = vld [vmem:[%s2 + $0x38] sm:$0xf]
        %v1153 = vld [vmem:[%s2 + $0x3c] sm:$0xf]
        %v1154 = vld [vmem:[%s5] sm:$0x1]
        %v1156 = vperm.slane %v1154, 0
        %v1174 = vunpack.c.l.b16 %v1138
        %v1175 = vunpack.c.l.b16 %v1139
        %v1176 = vunpack.c.l.b16 %v1140
        %v1177 = vunpack.c.l.b16 %v1141
        %v1178 = vunpack.c.l.b16 %v1142
        %v1179 = vunpack.c.l.b16 %v1143
        %v1180 = vunpack.c.l.b16 %v1144
        %v1181 = vunpack.c.l.b16 %v1145
        %v1182 = vunpack.c.l.b16 %v1146
        %v1183 = vunpack.c.l.b16 %v1147
        %v1184 = vunpack.c.l.b16 %v1148
        %v1185 = vunpack.c.l.b16 %v1149
        %v1186 = vunpack.c.l.b16 %v1150
        %v1187 = vunpack.c.l.b16 %v1151
        %v1188 = vunpack.c.l.b16 %v1152
        %v1189 = vunpack.c.l.b16 %v1153
        %v1190 = vpack.c.b16 %v1175, %v1174
        %v1191 = vpack.c.b16 %v1177, %v1176
        %v1192 = vpack.c.b16 %v1179, %v1178
        %v1193 = vpack.c.b16 %v1181, %v1180
        %v1194 = vpack.c.b16 %v1183, %v1182
        %v1195 = vpack.c.b16 %v1185, %v1184
        %v1196 = vpack.c.b16 %v1187, %v1186
        %v1197 = vpack.c.b16 %v1189, %v1188
        %1206 = vmatpush.bf16.msra.mxu0 %v1197
        %1207 = vmatpush.bf16.msra.mxu0 %v1196
        %1208 = vmatpush.bf16.msra.mxu0 %v1195
        %1209 = vmatpush.bf16.msra.mxu0 %v1194
        %1210 = vmatpush.bf16.msra.mxu0 %v1193
        %1211 = vmatpush.bf16.msra.mxu0 %v1192
        %1212 = vmatpush.bf16.msra.mxu0 %v1191
        %1213 = vmatpush.bf16.msra.mxu0 %v1190
        %1214 = vmatmul.bf16.gmra.mxu0 %v1134
        %v1215 = vpop.f32.mrf.mxu0
        %v1216 = vadd.f32 %v1156, %v1215
        %v1217 = vpop.f32.mrf.mxu0
        %v1218 = vadd.f32 %v1156, %v1217
        %1219 = vmatmul.bf16.gmra.mxu0 %v1135
        %v1220 = vpop.f32.mrf.mxu0
        %v1221 = vadd.f32 %v1156, %v1220
        %v1222 = vpop.f32.mrf.mxu0
        %v1223 = vadd.f32 %v1156, %v1222
        %1224 = vmatmul.bf16.gmra.mxu0 %v1136
        %v1225 = vpop.f32.mrf.mxu0
        %v1226 = vadd.f32 %v1156, %v1225
        %v1227 = vpop.f32.mrf.mxu0
        %v1228 = vadd.f32 %v1156, %v1227
        %1229 = vmatmul.bf16.gmra.mxu0 %v1137
        %v1230 = vpop.f32.mrf.mxu0
        %v1231 = vadd.f32 %v1156, %v1230
        %v1232 = vpop.f32.mrf.mxu0
        %v1233 = vadd.f32 %v1156, %v1232
        %1234 = vdwg.mxu0
        %vm1235 = vcmp.ge.f32.partialorder %v1216, 0.0
        %vm1236 = vcmp.ge.f32.partialorder %v1218, 0.0
        %vm1237 = vcmp.ge.f32.partialorder %v1221, 0.0
        %vm1238 = vcmp.ge.f32.partialorder %v1223, 0.0
        %vm1239 = vcmp.ge.f32.partialorder %v1226, 0.0
        %vm1240 = vcmp.ge.f32.partialorder %v1228, 0.0
        %vm1241 = vcmp.ge.f32.partialorder %v1231, 0.0
        %vm1242 = vcmp.ge.f32.partialorder %v1233, 0.0
        %v1243 = vmul.f32 %v1216, 0.01
        %v1244 = vmul.f32 %v1218, 0.01
        %v1245 = vmul.f32 %v1221, 0.01
        %v1246 = vmul.f32 %v1223, 0.01
        %v1247 = vmul.f32 %v1226, 0.01
        %v1248 = vmul.f32 %v1228, 0.01
        %v1249 = vmul.f32 %v1231, 0.01
        %v1250 = vmul.f32 %v1233, 0.01
        %v1251 = vsel %vm1235, %v1216, %v1243
        %v1252 = vsel %vm1236, %v1218, %v1244
        %v1253 = vsel %vm1237, %v1221, %v1245
        %v1254 = vsel %vm1238, %v1223, %v1246
        %v1255 = vsel %vm1239, %v1226, %v1247
        %v1256 = vsel %vm1240, %v1228, %v1248
        %v1257 = vsel %vm1241, %v1231, %v1249
        %v1258 = vsel %vm1242, %v1233, %v1250
        %vm1259 = vcmask 61440
        %1260 = vst.msk [vmem:[#allocation2] sm:$0x1f] %vm1259, 0.0
        %s1261 = scalar_lea.vmem [#allocation2], 72
        %1262 = vst.msk [vmem:[%s1261] sm:$0x1f] %vm1259, 0.0
        %1263 = vst.msk [vmem:[#allocation3] sm:$0x1f] %vm1259, 0.0
        %s1264 = scalar_lea.vmem [#allocation3], 72
        %1265 = vst.msk [vmem:[%s1264] sm:$0x1f] %vm1259, 0.0
        %vm1266 = vcmask 57344
        %1267 = vst.msk [vmem:[#allocation2] sm:$0x1] %vm1266, 0.0
        %1268 = vst.msk [vmem:[#allocation2 + $0x8] sm:$0x1] %vm1266, 0.0
        %1269 = vst.msk [vmem:[#allocation2 + $0x10] sm:$0x1] %vm1266, 0.0
        %1270 = vst.msk [vmem:[#allocation2 + $0x18] sm:$0x1] %vm1266, 0.0
        %1271 = vst.msk [vmem:[#allocation2 + $0x20] sm:$0x1] %vm1266, 0.0
        %1272 = vst.msk [vmem:[#allocation2 + $0x28] sm:$0x1] %vm1266, 0.0
        %1273 = vst.msk [vmem:[#allocation2 + $0x30] sm:$0x1] %vm1266, 0.0
        %1274 = vst.msk [vmem:[#allocation2 + $0x38] sm:$0x1] %vm1266, 0.0
        %1275 = vst.msk [vmem:[#allocation2 + $0x40] sm:$0x1] %vm1266, 0.0
        %1276 = vst.msk [vmem:[#allocation2 + $0x48] sm:$0x1] %vm1266, 0.0
        %1277 = vst.msk [vmem:[#allocation3 + $0x4] sm:$0x1] %vm1266, 0.0
        %1278 = vst.msk [vmem:[#allocation3 + $0xc] sm:$0x1] %vm1266, 0.0
        %1279 = vst.msk [vmem:[#allocation3 + $0x14] sm:$0x1] %vm1266, 0.0
        %1280 = vst.msk [vmem:[#allocation3 + $0x1c] sm:$0x1] %vm1266, 0.0
        %1281 = vst.msk [vmem:[#allocation3 + $0x24] sm:$0x1] %vm1266, 0.0
        %1282 = vst.msk [vmem:[#allocation3 + $0x2c] sm:$0x1] %vm1266, 0.0
        %1283 = vst.msk [vmem:[#allocation3 + $0x34] sm:$0x1] %vm1266, 0.0
        %1284 = vst.msk [vmem:[#allocation3 + $0x3c] sm:$0x1] %vm1266, 0.0
        %1285 = vst.msk [vmem:[#allocation3 + $0x44] sm:$0x1] %vm1266, 0.0
        %1286 = vst.msk [vmem:[#allocation3 + $0x4c] sm:$0x1] %vm1266, 0.0
        %v1287 = vlaneseq
        %v1288 = vshrl.u32 %v1287, 7
        %v1289 = vlaneseq
        %v1290 = vand.u32 %v1289, 127
        %v1291 = vmul.u32 %v1288, 2
        %vm1292 = vcmp.eq.s32.totalorder %v1290, %v1291
        %v1293 = vsel %vm1292, 1.0, 0.0
        %v1294 = vadd.s32 %v1291, 1
        %vm1295 = vcmp.eq.s32.totalorder %v1290, %v1294
        %v1296 = vsel %vm1295, 1.0, 0.0
        %v1298 = vsel %vm460, %v1293, 0
        %1300 = vmatpush.msra.mxu0 0.0
        %1301 = vmatpush.msra.mxu0 0.0
        %1302 = vmatpush.msra.mxu0 0.0
        %1303 = vmatpush.msra.mxu0 0.0
        %1304 = vmatpush.msra.mxu0 0.0
        %1305 = vmatpush.msra.mxu0 0.0
        %1306 = vmatpush.msra.mxu0 0.0
        %1307 = vmatpush.msra.mxu0 0.0
        %1308 = vmatpush.msra.mxu0 0.0
        %1309 = vmatpush.msra.mxu0 0.0
        %1310 = vmatpush.msra.mxu0 0.0
        %1311 = vmatpush.msra.mxu0 0.0
        %1312 = vmatpush.msra.mxu0 0.0
        %1313 = vmatpush.msra.mxu0 0.0
        %1314 = vmatpush.msra.mxu0 0.0
        %1315 = vmatpush.msra.mxu0 %v1251
        %1316 = vmatmul.f32.gmra.mxu0 %v1298
        %v1317 = vpop.f32.mrf.mxu0
        %v1318 = vadd.f32 0.0, %v1317
        %1319 = vdwg.mxu0
        %v1321 = vsel %vm460, %v1296, 0
        %1323 = vmatpush.msra.mxu0 0.0
        %1324 = vmatpush.msra.mxu0 0.0
        %1325 = vmatpush.msra.mxu0 0.0
        %1326 = vmatpush.msra.mxu0 0.0
        %1327 = vmatpush.msra.mxu0 0.0
        %1328 = vmatpush.msra.mxu0 0.0
        %1329 = vmatpush.msra.mxu0 0.0
        %1330 = vmatpush.msra.mxu0 0.0
        %1331 = vmatpush.msra.mxu0 0.0
        %1332 = vmatpush.msra.mxu0 0.0
        %1333 = vmatpush.msra.mxu0 0.0
        %1334 = vmatpush.msra.mxu0 0.0
        %1335 = vmatpush.msra.mxu0 0.0
        %1336 = vmatpush.msra.mxu0 0.0
        %1337 = vmatpush.msra.mxu0 0.0
        %1338 = vmatpush.msra.mxu0 %v1251
        %1339 = vmatmul.f32.gmra.mxu0 %v1321
        %v1340 = vpop.f32.mrf.mxu0
        %v1341 = vadd.f32 0.0, %v1340
        %1342 = vdwg.mxu0
        %s1343 = scalar_lea.vmem [#allocation3], 8
        %vm1344 = vcmask 60416
        %1345 = vst.msk [vmem:[%s1343] sm:$0xf] %vm1344, %v1318
        %s1346 = scalar_lea.vmem [#allocation2], 8
        %1347 = vst.msk [vmem:[%s1346 + $0x1] sm:$0xf] %vm1344, %v1341
        %1348 = vmatpush.msra.mxu0 0.0
        %1349 = vmatpush.msra.mxu0 0.0
        %1350 = vmatpush.msra.mxu0 0.0
        %1351 = vmatpush.msra.mxu0 0.0
        %1352 = vmatpush.msra.mxu0 0.0
        %1353 = vmatpush.msra.mxu0 0.0
        %1354 = vmatpush.msra.mxu0 0.0
        %1355 = vmatpush.msra.mxu0 0.0
        %1356 = vmatpush.msra.mxu0 0.0
        %1357 = vmatpush.msra.mxu0 0.0
        %1358 = vmatpush.msra.mxu0 0.0
        %1359 = vmatpush.msra.mxu0 0.0
        %1360 = vmatpush.msra.mxu0 0.0
        %1361 = vmatpush.msra.mxu0 0.0
        %1362 = vmatpush.msra.mxu0 0.0
        %1363 = vmatpush.msra.mxu0 %v1252
        %1364 = vmatmul.f32.gmra.mxu0 %v1298
        %v1365 = vpop.f32.mrf.mxu0
        %v1366 = vadd.f32 0.0, %v1365
        %1367 = vdwg.mxu0
        %1368 = vmatpush.msra.mxu0 0.0
        %1369 = vmatpush.msra.mxu0 0.0
        %1370 = vmatpush.msra.mxu0 0.0
        %1371 = vmatpush.msra.mxu0 0.0
        %1372 = vmatpush.msra.mxu0 0.0
        %1373 = vmatpush.msra.mxu0 0.0
        %1374 = vmatpush.msra.mxu0 0.0
        %1375 = vmatpush.msra.mxu0 0.0
        %1376 = vmatpush.msra.mxu0 0.0
        %1377 = vmatpush.msra.mxu0 0.0
        %1378 = vmatpush.msra.mxu0 0.0
        %1379 = vmatpush.msra.mxu0 0.0
        %1380 = vmatpush.msra.mxu0 0.0
        %1381 = vmatpush.msra.mxu0 0.0
        %1382 = vmatpush.msra.mxu0 0.0
        %1383 = vmatpush.msra.mxu0 %v1252
        %1384 = vmatmul.f32.gmra.mxu0 %v1321
        %v1385 = vpop.f32.mrf.mxu0
        %v1386 = vadd.f32 0.0, %v1385
        %1387 = vdwg.mxu0
        %s1388 = scalar_lea.vmem [#allocation3], 16
        %1389 = vst.msk [vmem:[%s1388] sm:$0xf] %vm1344, %v1366
        %s1390 = scalar_lea.vmem [#allocation2], 16
        %1391 = vst.msk [vmem:[%s1390 + $0x1] sm:$0xf] %vm1344, %v1386
        %1392 = vmatpush.msra.mxu0 0.0
        %1393 = vmatpush.msra.mxu0 0.0
        %1394 = vmatpush.msra.mxu0 0.0
        %1395 = vmatpush.msra.mxu0 0.0
        %1396 = vmatpush.msra.mxu0 0.0
        %1397 = vmatpush.msra.mxu0 0.0
        %1398 = vmatpush.msra.mxu0 0.0
        %1399 = vmatpush.msra.mxu0 0.0
        %1400 = vmatpush.msra.mxu0 0.0
        %1401 = vmatpush.msra.mxu0 0.0
        %1402 = vmatpush.msra.mxu0 0.0
        %1403 = vmatpush.msra.mxu0 0.0
        %1404 = vmatpush.msra.mxu0 0.0
        %1405 = vmatpush.msra.mxu0 0.0
        %1406 = vmatpush.msra.mxu0 0.0
        %1407 = vmatpush.msra.mxu0 %v1253
        %1408 = vmatmul.f32.gmra.mxu0 %v1298
        %v1409 = vpop.f32.mrf.mxu0
        %v1410 = vadd.f32 0.0, %v1409
        %1411 = vdwg.mxu0
        %1412 = vmatpush.msra.mxu0 0.0
        %1413 = vmatpush.msra.mxu0 0.0
        %1414 = vmatpush.msra.mxu0 0.0
        %1415 = vmatpush.msra.mxu0 0.0
        %1416 = vmatpush.msra.mxu0 0.0
        %1417 = vmatpush.msra.mxu0 0.0
        %1418 = vmatpush.msra.mxu0 0.0
        %1419 = vmatpush.msra.mxu0 0.0
        %1420 = vmatpush.msra.mxu0 0.0
        %1421 = vmatpush.msra.mxu0 0.0
        %1422 = vmatpush.msra.mxu0 0.0
        %1423 = vmatpush.msra.mxu0 0.0
        %1424 = vmatpush.msra.mxu0 0.0
        %1425 = vmatpush.msra.mxu0 0.0
        %1426 = vmatpush.msra.mxu0 0.0
        %1427 = vmatpush.msra.mxu0 %v1253
        %1428 = vmatmul.f32.gmra.mxu0 %v1321
        %v1429 = vpop.f32.mrf.mxu0
        %v1430 = vadd.f32 0.0, %v1429
        %1431 = vdwg.mxu0
        %s1432 = scalar_lea.vmem [#allocation3], 24
        %1433 = vst.msk [vmem:[%s1432] sm:$0xf] %vm1344, %v1410
        %s1434 = scalar_lea.vmem [#allocation2], 24
        %1435 = vst.msk [vmem:[%s1434 + $0x1] sm:$0xf] %vm1344, %v1430
        %1436 = vmatpush.msra.mxu0 0.0
        %1437 = vmatpush.msra.mxu0 0.0
        %1438 = vmatpush.msra.mxu0 0.0
        %1439 = vmatpush.msra.mxu0 0.0
        %1440 = vmatpush.msra.mxu0 0.0
        %1441 = vmatpush.msra.mxu0 0.0
        %1442 = vmatpush.msra.mxu0 0.0
        %1443 = vmatpush.msra.mxu0 0.0
        %1444 = vmatpush.msra.mxu0 0.0
        %1445 = vmatpush.msra.mxu0 0.0
        %1446 = vmatpush.msra.mxu0 0.0
        %1447 = vmatpush.msra.mxu0 0.0
        %1448 = vmatpush.msra.mxu0 0.0
        %1449 = vmatpush.msra.mxu0 0.0
        %1450 = vmatpush.msra.mxu0 0.0
        %1451 = vmatpush.msra.mxu0 %v1254
        %1452 = vmatmul.f32.gmra.mxu0 %v1298
        %v1453 = vpop.f32.mrf.mxu0
        %v1454 = vadd.f32 0.0, %v1453
        %1455 = vdwg.mxu0
        %1456 = vmatpush.msra.mxu0 0.0
        %1457 = vmatpush.msra.mxu0 0.0
        %1458 = vmatpush.msra.mxu0 0.0
        %1459 = vmatpush.msra.mxu0 0.0
        %1460 = vmatpush.msra.mxu0 0.0
        %1461 = vmatpush.msra.mxu0 0.0
        %1462 = vmatpush.msra.mxu0 0.0
        %1463 = vmatpush.msra.mxu0 0.0
        %1464 = vmatpush.msra.mxu0 0.0
        %1465 = vmatpush.msra.mxu0 0.0
        %1466 = vmatpush.msra.mxu0 0.0
        %1467 = vmatpush.msra.mxu0 0.0
        %1468 = vmatpush.msra.mxu0 0.0
        %1469 = vmatpush.msra.mxu0 0.0
        %1470 = vmatpush.msra.mxu0 0.0
        %1471 = vmatpush.msra.mxu0 %v1254
        %1472 = vmatmul.f32.gmra.mxu0 %v1321
        %v1473 = vpop.f32.mrf.mxu0
        %v1474 = vadd.f32 0.0, %v1473
        %1475 = vdwg.mxu0
        %s1476 = scalar_lea.vmem [#allocation3], 32
        %1477 = vst.msk [vmem:[%s1476] sm:$0xf] %vm1344, %v1454
        %s1478 = scalar_lea.vmem [#allocation2], 32
        %1479 = vst.msk [vmem:[%s1478 + $0x1] sm:$0xf] %vm1344, %v1474
        %1480 = vmatpush.msra.mxu0 0.0
        %1481 = vmatpush.msra.mxu0 0.0
        %1482 = vmatpush.msra.mxu0 0.0
        %1483 = vmatpush.msra.mxu0 0.0
        %1484 = vmatpush.msra.mxu0 0.0
        %1485 = vmatpush.msra.mxu0 0.0
        %1486 = vmatpush.msra.mxu0 0.0
        %1487 = vmatpush.msra.mxu0 0.0
        %1488 = vmatpush.msra.mxu0 0.0
        %1489 = vmatpush.msra.mxu0 0.0
        %1490 = vmatpush.msra.mxu0 0.0
        %1491 = vmatpush.msra.mxu0 0.0
        %1492 = vmatpush.msra.mxu0 0.0
        %1493 = vmatpush.msra.mxu0 0.0
        %1494 = vmatpush.msra.mxu0 0.0
        %1495 = vmatpush.msra.mxu0 %v1255
        %1496 = vmatmul.f32.gmra.mxu0 %v1298
        %v1497 = vpop.f32.mrf.mxu0
        %v1498 = vadd.f32 0.0, %v1497
        %1499 = vdwg.mxu0
        %1500 = vmatpush.msra.mxu0 0.0
        %1501 = vmatpush.msra.mxu0 0.0
        %1502 = vmatpush.msra.mxu0 0.0
        %1503 = vmatpush.msra.mxu0 0.0
        %1504 = vmatpush.msra.mxu0 0.0
        %1505 = vmatpush.msra.mxu0 0.0
        %1506 = vmatpush.msra.mxu0 0.0
        %1507 = vmatpush.msra.mxu0 0.0
        %1508 = vmatpush.msra.mxu0 0.0
        %1509 = vmatpush.msra.mxu0 0.0
        %1510 = vmatpush.msra.mxu0 0.0
        %1511 = vmatpush.msra.mxu0 0.0
        %1512 = vmatpush.msra.mxu0 0.0
        %1513 = vmatpush.msra.mxu0 0.0
        %1514 = vmatpush.msra.mxu0 0.0
        %1515 = vmatpush.msra.mxu0 %v1255
        %1516 = vmatmul.f32.gmra.mxu0 %v1321
        %v1517 = vpop.f32.mrf.mxu0
        %v1518 = vadd.f32 0.0, %v1517
        %1519 = vdwg.mxu0
        %s1520 = scalar_lea.vmem [#allocation3], 40
        %1521 = vst.msk [vmem:[%s1520] sm:$0xf] %vm1344, %v1498
        %s1522 = scalar_lea.vmem [#allocation2], 40
        %1523 = vst.msk [vmem:[%s1522 + $0x1] sm:$0xf] %vm1344, %v1518
        %1524 = vmatpush.msra.mxu0 0.0
        %1525 = vmatpush.msra.mxu0 0.0
        %1526 = vmatpush.msra.mxu0 0.0
        %1527 = vmatpush.msra.mxu0 0.0
        %1528 = vmatpush.msra.mxu0 0.0
        %1529 = vmatpush.msra.mxu0 0.0
        %1530 = vmatpush.msra.mxu0 0.0
        %1531 = vmatpush.msra.mxu0 0.0
        %1532 = vmatpush.msra.mxu0 0.0
        %1533 = vmatpush.msra.mxu0 0.0
        %1534 = vmatpush.msra.mxu0 0.0
        %1535 = vmatpush.msra.mxu0 0.0
        %1536 = vmatpush.msra.mxu0 0.0
        %1537 = vmatpush.msra.mxu0 0.0
        %1538 = vmatpush.msra.mxu0 0.0
        %1539 = vmatpush.msra.mxu0 %v1256
        %1540 = vmatmul.f32.gmra.mxu0 %v1298
        %v1541 = vpop.f32.mrf.mxu0
        %v1542 = vadd.f32 0.0, %v1541
        %1543 = vdwg.mxu0
        %1544 = vmatpush.msra.mxu0 0.0
        %1545 = vmatpush.msra.mxu0 0.0
        %1546 = vmatpush.msra.mxu0 0.0
        %1547 = vmatpush.msra.mxu0 0.0
        %1548 = vmatpush.msra.mxu0 0.0
        %1549 = vmatpush.msra.mxu0 0.0
        %1550 = vmatpush.msra.mxu0 0.0
        %1551 = vmatpush.msra.mxu0 0.0
        %1552 = vmatpush.msra.mxu0 0.0
        %1553 = vmatpush.msra.mxu0 0.0
        %1554 = vmatpush.msra.mxu0 0.0
        %1555 = vmatpush.msra.mxu0 0.0
        %1556 = vmatpush.msra.mxu0 0.0
        %1557 = vmatpush.msra.mxu0 0.0
        %1558 = vmatpush.msra.mxu0 0.0
        %1559 = vmatpush.msra.mxu0 %v1256
        %1560 = vmatmul.f32.gmra.mxu0 %v1321
        %v1561 = vpop.f32.mrf.mxu0
        %v1562 = vadd.f32 0.0, %v1561
        %1563 = vdwg.mxu0
        %s1564 = scalar_lea.vmem [#allocation3], 48
        %1565 = vst.msk [vmem:[%s1564] sm:$0xf] %vm1344, %v1542
        %s1566 = scalar_lea.vmem [#allocation2], 48
        %1567 = vst.msk [vmem:[%s1566 + $0x1] sm:$0xf] %vm1344, %v1562
        %1568 = vmatpush.msra.mxu0 0.0
        %1569 = vmatpush.msra.mxu0 0.0
        %1570 = vmatpush.msra.mxu0 0.0
        %1571 = vmatpush.msra.mxu0 0.0
        %1572 = vmatpush.msra.mxu0 0.0
        %1573 = vmatpush.msra.mxu0 0.0
        %1574 = vmatpush.msra.mxu0 0.0
        %1575 = vmatpush.msra.mxu0 0.0
        %1576 = vmatpush.msra.mxu0 0.0
        %1577 = vmatpush.msra.mxu0 0.0
        %1578 = vmatpush.msra.mxu0 0.0
        %1579 = vmatpush.msra.mxu0 0.0
        %1580 = vmatpush.msra.mxu0 0.0
        %1581 = vmatpush.msra.mxu0 0.0
        %1582 = vmatpush.msra.mxu0 0.0
        %1583 = vmatpush.msra.mxu0 %v1257
        %1584 = vmatmul.f32.gmra.mxu0 %v1298
        %v1585 = vpop.f32.mrf.mxu0
        %v1586 = vadd.f32 0.0, %v1585
        %1587 = vdwg.mxu0
        %1588 = vmatpush.msra.mxu0 0.0
        %1589 = vmatpush.msra.mxu0 0.0
        %1590 = vmatpush.msra.mxu0 0.0
        %1591 = vmatpush.msra.mxu0 0.0
        %1592 = vmatpush.msra.mxu0 0.0
        %1593 = vmatpush.msra.mxu0 0.0
        %1594 = vmatpush.msra.mxu0 0.0
        %1595 = vmatpush.msra.mxu0 0.0
        %1596 = vmatpush.msra.mxu0 0.0
        %1597 = vmatpush.msra.mxu0 0.0
        %1598 = vmatpush.msra.mxu0 0.0
        %1599 = vmatpush.msra.mxu0 0.0
        %1600 = vmatpush.msra.mxu0 0.0
        %1601 = vmatpush.msra.mxu0 0.0
        %1602 = vmatpush.msra.mxu0 0.0
        %1603 = vmatpush.msra.mxu0 %v1257
        %1604 = vmatmul.f32.gmra.mxu0 %v1321
        %v1605 = vpop.f32.mrf.mxu0
        %v1606 = vadd.f32 0.0, %v1605
        %1607 = vdwg.mxu0
        %s1608 = scalar_lea.vmem [#allocation3], 56
        %1609 = vst.msk [vmem:[%s1608] sm:$0xf] %vm1344, %v1586
        %s1610 = scalar_lea.vmem [#allocation2], 56
        %1611 = vst.msk [vmem:[%s1610 + $0x1] sm:$0xf] %vm1344, %v1606
        %1612 = vmatpush.msra.mxu0 0.0
        %1613 = vmatpush.msra.mxu0 0.0
        %1614 = vmatpush.msra.mxu0 0.0
        %1615 = vmatpush.msra.mxu0 0.0
        %1616 = vmatpush.msra.mxu0 0.0
        %1617 = vmatpush.msra.mxu0 0.0
        %1618 = vmatpush.msra.mxu0 0.0
        %1619 = vmatpush.msra.mxu0 0.0
        %1620 = vmatpush.msra.mxu0 0.0
        %1621 = vmatpush.msra.mxu0 0.0
        %1622 = vmatpush.msra.mxu0 0.0
        %1623 = vmatpush.msra.mxu0 0.0
        %1624 = vmatpush.msra.mxu0 0.0
        %1625 = vmatpush.msra.mxu0 0.0
        %1626 = vmatpush.msra.mxu0 0.0
        %1627 = vmatpush.msra.mxu0 %v1258
        %1628 = vmatmul.f32.gmra.mxu0 %v1298
        %v1629 = vpop.f32.mrf.mxu0
        %v1630 = vadd.f32 0.0, %v1629
        %1631 = vdwg.mxu0
        %1632 = vmatpush.msra.mxu0 0.0
        %1633 = vmatpush.msra.mxu0 0.0
        %1634 = vmatpush.msra.mxu0 0.0
        %1635 = vmatpush.msra.mxu0 0.0
        %1636 = vmatpush.msra.mxu0 0.0
        %1637 = vmatpush.msra.mxu0 0.0
        %1638 = vmatpush.msra.mxu0 0.0
        %1639 = vmatpush.msra.mxu0 0.0
        %1640 = vmatpush.msra.mxu0 0.0
        %1641 = vmatpush.msra.mxu0 0.0
        %1642 = vmatpush.msra.mxu0 0.0
        %1643 = vmatpush.msra.mxu0 0.0
        %1644 = vmatpush.msra.mxu0 0.0
        %1645 = vmatpush.msra.mxu0 0.0
        %1646 = vmatpush.msra.mxu0 0.0
        %1647 = vmatpush.msra.mxu0 %v1258
        %1648 = vmatmul.f32.gmra.mxu0 %v1321
        %v1649 = vpop.f32.mrf.mxu0
        %v1650 = vadd.f32 0.0, %v1649
        %1651 = vdwg.mxu0
        %s1652 = scalar_lea.vmem [#allocation3], 64
        %1653 = vst.msk [vmem:[%s1652] sm:$0xf] %vm1344, %v1630
        %s1654 = scalar_lea.vmem [#allocation2], 64
        %1655 = vst.msk [vmem:[%s1654 + $0x1] sm:$0xf] %vm1344, %v1650
        %v1656 = vld [vmem:[#allocation2] sm:$0x1f]
        %v1657 = vld [vmem:[#allocation3] sm:$0x1f]
        %v1658 = vld [vmem:[%s1346] sm:$0x1f]
        %v1659 = vld [vmem:[%s1343] sm:$0x1f]
        %v1660 = vld [vmem:[%s1390] sm:$0x1f]
        %v1661 = vld [vmem:[%s1388] sm:$0x1f]
        %v1662 = vld [vmem:[%s1434] sm:$0x1f]
        %v1663 = vld [vmem:[%s1432] sm:$0x1f]
        %1665 = vrot.lane.b32.xlu0 %v1657, 8
        %v1666 = vpop.permute.xlu0 %1665
        %v1669 = vrot.slane %v1656, 1
        %1670 = vrot.lane.b32.xlu0 %v1669, 16
        %v1671 = vpop.permute.xlu0 %1670
        %v1673 = vrot.slane %v1657, 1
        %1674 = vrot.lane.b32.xlu0 %v1673, 24
        %v1675 = vpop.permute.xlu0 %1674
        %1678 = vrot.lane.b32.xlu0 %v1658, 32
        %v1679 = vpop.permute.xlu0 %1678
        %1682 = vrot.lane.b32.xlu0 %v1659, 40
        %v1683 = vpop.permute.xlu0 %1682
        %v1685 = vrot.slane %v1658, 1
        %1686 = vrot.lane.b32.xlu0 %v1685, 48
        %v1687 = vpop.permute.xlu0 %1686
        %v1689 = vrot.slane %v1659, 1
        %1690 = vrot.lane.b32.xlu0 %v1689, 56
        %v1691 = vpop.permute.xlu0 %1690
        %1694 = vrot.lane.b32.xlu0 %v1660, 64
        %v1695 = vpop.permute.xlu0 %1694
        %1698 = vrot.lane.b32.xlu0 %v1661, 72
        %v1699 = vpop.permute.xlu0 %1698
        %v1701 = vrot.slane %v1660, 1
        %1702 = vrot.lane.b32.xlu0 %v1701, 80
        %v1703 = vpop.permute.xlu0 %1702
        %v1705 = vrot.slane %v1661, 1
        %1706 = vrot.lane.b32.xlu0 %v1705, 88
        %v1707 = vpop.permute.xlu0 %1706
        %1710 = vrot.lane.b32.xlu0 %v1662, 96
        %v1711 = vpop.permute.xlu0 %1710
        %1714 = vrot.lane.b32.xlu0 %v1663, 104
        %v1715 = vpop.permute.xlu0 %1714
        %v1717 = vrot.slane %v1662, 1
        %1718 = vrot.lane.b32.xlu0 %v1717, 112
        %v1719 = vpop.permute.xlu0 %1718
        %v1721 = vrot.slane %v1663, 1
        %1722 = vrot.lane.b32.xlu0 %v1721, 120
        %v1723 = vpop.permute.xlu0 %1722
        %v1725 = vsel %vm460, %v1656, %v1666
        %v1726 = vsel %vm462, %v1725, %v1671
        %v1727 = vsel %vm464, %v1726, %v1675
        %v1728 = vsel %vm466, %v1727, %v1679
        %v1729 = vsel %vm468, %v1728, %v1683
        %v1730 = vsel %vm470, %v1729, %v1687
        %v1731 = vsel %vm472, %v1730, %v1691
        %v1732 = vsel %vm474, %v1731, %v1695
        %v1733 = vsel %vm476, %v1732, %v1699
        %v1734 = vsel %vm478, %v1733, %v1703
        %v1735 = vsel %vm480, %v1734, %v1707
        %v1736 = vsel %vm482, %v1735, %v1711
        %v1737 = vsel %vm484, %v1736, %v1715
        %v1738 = vsel %vm486, %v1737, %v1719
        %v1739 = vsel %vm488, %v1738, %v1723
        %v1740 = vld [vmem:[%s1478] sm:$0x1f]
        %v1741 = vld [vmem:[%s1476] sm:$0x1f]
        %v1742 = vld [vmem:[%s1522] sm:$0x1f]
        %v1743 = vld [vmem:[%s1520] sm:$0x1f]
        %1744 = vrot.lane.b32.xlu0 %v1661, 8
        %v1745 = vpop.permute.xlu0 %1744
        %1747 = vrot.lane.b32.xlu0 %v1701, 16
        %v1748 = vpop.permute.xlu0 %1747
        %1750 = vrot.lane.b32.xlu0 %v1705, 24
        %v1751 = vpop.permute.xlu0 %1750
        %1753 = vrot.lane.b32.xlu0 %v1662, 32
        %v1754 = vpop.permute.xlu0 %1753
        %1756 = vrot.lane.b32.xlu0 %v1663, 40
        %v1757 = vpop.permute.xlu0 %1756
        %1759 = vrot.lane.b32.xlu0 %v1717, 48
        %v1760 = vpop.permute.xlu0 %1759
        %1762 = vrot.lane.b32.xlu0 %v1721, 56
        %v1763 = vpop.permute.xlu0 %1762
        %1766 = vrot.lane.b32.xlu0 %v1740, 64
        %v1767 = vpop.permute.xlu0 %1766
        %1770 = vrot.lane.b32.xlu0 %v1741, 72
        %v1771 = vpop.permute.xlu0 %1770
        %v1773 = vrot.slane %v1740, 1
        %1774 = vrot.lane.b32.xlu0 %v1773, 80
        %v1775 = vpop.permute.xlu0 %1774
        %v1777 = vrot.slane %v1741, 1
        %1778 = vrot.lane.b32.xlu0 %v1777, 88
        %v1779 = vpop.permute.xlu0 %1778
        %1782 = vrot.lane.b32.xlu0 %v1742, 96
        %v1783 = vpop.permute.xlu0 %1782
        %1786 = vrot.lane.b32.xlu0 %v1743, 104
        %v1787 = vpop.permute.xlu0 %1786
        %v1789 = vrot.slane %v1742, 1
        %1790 = vrot.lane.b32.xlu0 %v1789, 112
        %v1791 = vpop.permute.xlu0 %1790
        %v1793 = vrot.slane %v1743, 1
        %1794 = vrot.lane.b32.xlu0 %v1793, 120
        %v1795 = vpop.permute.xlu0 %1794
        %v1797 = vsel %vm460, %v1660, %v1745
        %v1798 = vsel %vm462, %v1797, %v1748
        %v1799 = vsel %vm464, %v1798, %v1751
        %v1800 = vsel %vm466, %v1799, %v1754
        %v1801 = vsel %vm468, %v1800, %v1757
        %v1802 = vsel %vm470, %v1801, %v1760
        %v1803 = vsel %vm472, %v1802, %v1763
        %v1804 = vsel %vm474, %v1803, %v1767
        %v1805 = vsel %vm476, %v1804, %v1771
        %v1806 = vsel %vm478, %v1805, %v1775
        %v1807 = vsel %vm480, %v1806, %v1779
        %v1808 = vsel %vm482, %v1807, %v1783
        %v1809 = vsel %vm484, %v1808, %v1787
        %v1810 = vsel %vm486, %v1809, %v1791
        %v1811 = vsel %vm488, %v1810, %v1795
        %v1812 = vld [vmem:[%s1566] sm:$0x1f]
        %v1813 = vld [vmem:[%s1564] sm:$0x1f]
        %v1814 = vld [vmem:[%s1610] sm:$0x1f]
        %v1815 = vld [vmem:[%s1608] sm:$0x1f]
        %1816 = vrot.lane.b32.xlu0 %v1741, 8
        %v1817 = vpop.permute.xlu0 %1816
        %1819 = vrot.lane.b32.xlu0 %v1773, 16
        %v1820 = vpop.permute.xlu0 %1819
        %1822 = vrot.lane.b32.xlu0 %v1777, 24
        %v1823 = vpop.permute.xlu0 %1822
        %1825 = vrot.lane.b32.xlu0 %v1742, 32
        %v1826 = vpop.permute.xlu0 %1825
        %1828 = vrot.lane.b32.xlu0 %v1743, 40
        %v1829 = vpop.permute.xlu0 %1828
        %1831 = vrot.lane.b32.xlu0 %v1789, 48
        %v1832 = vpop.permute.xlu0 %1831
        %1834 = vrot.lane.b32.xlu0 %v1793, 56
        %v1835 = vpop.permute.xlu0 %1834
        %1838 = vrot.lane.b32.xlu0 %v1812, 64
        %v1839 = vpop.permute.xlu0 %1838
        %1842 = vrot.lane.b32.xlu0 %v1813, 72
        %v1843 = vpop.permute.xlu0 %1842
        %v1845 = vrot.slane %v1812, 1
        %1846 = vrot.lane.b32.xlu0 %v1845, 80
        %v1847 = vpop.permute.xlu0 %1846
        %v1849 = vrot.slane %v1813, 1
        %1850 = vrot.lane.b32.xlu0 %v1849, 88
        %v1851 = vpop.permute.xlu0 %1850
        %1854 = vrot.lane.b32.xlu0 %v1814, 96
        %v1855 = vpop.permute.xlu0 %1854
        %1858 = vrot.lane.b32.xlu0 %v1815, 104
        %v1859 = vpop.permute.xlu0 %1858
        %v1861 = vrot.slane %v1814, 1
        %1862 = vrot.lane.b32.xlu0 %v1861, 112
        %v1863 = vpop.permute.xlu0 %1862
        %v1865 = vrot.slane %v1815, 1
        %1866 = vrot.lane.b32.xlu0 %v1865, 120
        %v1867 = vpop.permute.xlu0 %1866
        %v1869 = vsel %vm460, %v1740, %v1817
        %v1870 = vsel %vm462, %v1869, %v1820
        %v1871 = vsel %vm464, %v1870, %v1823
        %v1872 = vsel %vm466, %v1871, %v1826
        %v1873 = vsel %vm468, %v1872, %v1829
        %v1874 = vsel %vm470, %v1873, %v1832
        %v1875 = vsel %vm472, %v1874, %v1835
        %v1876 = vsel %vm474, %v1875, %v1839
        %v1877 = vsel %vm476, %v1876, %v1843
        %v1878 = vsel %vm478, %v1877, %v1847
        %v1879 = vsel %vm480, %v1878, %v1851
        %v1880 = vsel %vm482, %v1879, %v1855
        %v1881 = vsel %vm484, %v1880, %v1859
        %v1882 = vsel %vm486, %v1881, %v1863
        %v1883 = vsel %vm488, %v1882, %v1867
        %v1884 = vld [vmem:[%s1654] sm:$0x1f]
        %v1885 = vld [vmem:[%s1652] sm:$0x1f]
        %v1886 = vld [vmem:[%s1261] sm:$0x1f]
        %v1887 = vld [vmem:[%s1264] sm:$0x1f]
        %1888 = vrot.lane.b32.xlu0 %v1813, 8
        %v1889 = vpop.permute.xlu0 %1888
        %1891 = vrot.lane.b32.xlu0 %v1845, 16
        %v1892 = vpop.permute.xlu0 %1891
        %1894 = vrot.lane.b32.xlu0 %v1849, 24
        %v1895 = vpop.permute.xlu0 %1894
        %1897 = vrot.lane.b32.xlu0 %v1814, 32
        %v1898 = vpop.permute.xlu0 %1897
        %1900 = vrot.lane.b32.xlu0 %v1815, 40
        %v1901 = vpop.permute.xlu0 %1900
        %1903 = vrot.lane.b32.xlu0 %v1861, 48
        %v1904 = vpop.permute.xlu0 %1903
        %1906 = vrot.lane.b32.xlu0 %v1865, 56
        %v1907 = vpop.permute.xlu0 %1906
        %1910 = vrot.lane.b32.xlu0 %v1884, 64
        %v1911 = vpop.permute.xlu0 %1910
        %1914 = vrot.lane.b32.xlu0 %v1885, 72
        %v1915 = vpop.permute.xlu0 %1914
        %v1917 = vrot.slane %v1884, 1
        %1918 = vrot.lane.b32.xlu0 %v1917, 80
        %v1919 = vpop.permute.xlu0 %1918
        %v1921 = vrot.slane %v1885, 1
        %1922 = vrot.lane.b32.xlu0 %v1921, 88
        %v1923 = vpop.permute.xlu0 %1922
        %1926 = vrot.lane.b32.xlu0 %v1886, 96
        %v1927 = vpop.permute.xlu0 %1926
        %1930 = vrot.lane.b32.xlu0 %v1887, 104
        %v1931 = vpop.permute.xlu0 %1930
        %v1933 = vrot.slane %v1886, 1
        %1934 = vrot.lane.b32.xlu0 %v1933, 112
        %v1935 = vpop.permute.xlu0 %1934
        %v1937 = vrot.slane %v1887, 1
        %1938 = vrot.lane.b32.xlu0 %v1937, 120
        %v1939 = vpop.permute.xlu0 %1938
        %v1941 = vsel %vm460, %v1812, %v1889
        %v1942 = vsel %vm462, %v1941, %v1892
        %v1943 = vsel %vm464, %v1942, %v1895
        %v1944 = vsel %vm466, %v1943, %v1898
        %v1945 = vsel %vm468, %v1944, %v1901
        %v1946 = vsel %vm470, %v1945, %v1904
        %v1947 = vsel %vm472, %v1946, %v1907
        %v1948 = vsel %vm474, %v1947, %v1911
        %v1949 = vsel %vm476, %v1948, %v1915
        %v1950 = vsel %vm478, %v1949, %v1919
        %v1951 = vsel %vm480, %v1950, %v1923
        %v1952 = vsel %vm482, %v1951, %v1927
        %v1953 = vsel %vm484, %v1952, %v1931
        %v1954 = vsel %vm486, %v1953, %v1935
        %v1955 = vsel %vm488, %v1954, %v1939
        %v1957 = vrot.slane %v1811, 4
        %v1960 = vrot.slane %v1955, 4
        %vm1962 = vcmask 1043456
        %v1963 = vsel %vm1962, %v1739, %v1957
        %v1964 = vsel %vm1962, %v1883, %v1960
        %v1965 = vpack.c.bf16 %v1964, %v1963
        %v1966 = vld [vmem:[%s3] sm:$0xf]
        %v1967 = vld [vmem:[%s3 + $0x4] sm:$0xf]
        %v1968 = vld [vmem:[%s3 + $0x8] sm:$0xf]
        %v1969 = vld [vmem:[%s3 + $0xc] sm:$0xf]
        %v1970 = vld [vmem:[%s3 + $0x10] sm:$0xf]
        %v1971 = vld [vmem:[%s3 + $0x14] sm:$0xf]
        %v1972 = vld [vmem:[%s3 + $0x18] sm:$0xf]
        %v1973 = vld [vmem:[%s3 + $0x1c] sm:$0xf]
        %v1974 = vld [vmem:[%s3 + $0x20] sm:$0xf]
        %v1975 = vld [vmem:[%s3 + $0x24] sm:$0xf]
        %v1976 = vld [vmem:[%s3 + $0x28] sm:$0xf]
        %v1977 = vld [vmem:[%s3 + $0x2c] sm:$0xf]
        %v1978 = vld [vmem:[%s3 + $0x30] sm:$0xf]
        %v1979 = vld [vmem:[%s3 + $0x34] sm:$0xf]
        %v1980 = vld [vmem:[%s3 + $0x38] sm:$0xf]
        %v1981 = vld [vmem:[%s3 + $0x3c] sm:$0xf]
        %v1982 = vld [vmem:[%s6] sm:$0x1]
        %v1984 = vperm.slane %v1982, 0
        %v2002 = vunpack.c.l.b16 %v1966
        %v2003 = vunpack.c.l.b16 %v1967
        %v2004 = vunpack.c.l.b16 %v1968
        %v2005 = vunpack.c.l.b16 %v1969
        %v2006 = vunpack.c.l.b16 %v1970
        %v2007 = vunpack.c.l.b16 %v1971
        %v2008 = vunpack.c.l.b16 %v1972
        %v2009 = vunpack.c.l.b16 %v1973
        %v2010 = vunpack.c.l.b16 %v1974
        %v2011 = vunpack.c.l.b16 %v1975
        %v2012 = vunpack.c.l.b16 %v1976
        %v2013 = vunpack.c.l.b16 %v1977
        %v2014 = vunpack.c.l.b16 %v1978
        %v2015 = vunpack.c.l.b16 %v1979
        %v2016 = vunpack.c.l.b16 %v1980
        %v2017 = vunpack.c.l.b16 %v1981
        %v2018 = vpack.c.b16 %v2003, %v2002
        %v2019 = vpack.c.b16 %v2005, %v2004
        %v2020 = vpack.c.b16 %v2007, %v2006
        %v2021 = vpack.c.b16 %v2009, %v2008
        %v2022 = vpack.c.b16 %v2011, %v2010
        %v2023 = vpack.c.b16 %v2013, %v2012
        %v2024 = vpack.c.b16 %v2015, %v2014
        %v2025 = vpack.c.b16 %v2017, %v2016
        %2034 = vmatpush.bf16.msra.mxu0 %v2025
        %2035 = vmatpush.bf16.msra.mxu0 %v2024
        %2036 = vmatpush.bf16.msra.mxu0 %v2023
        %2037 = vmatpush.bf16.msra.mxu0 %v2022
        %2038 = vmatpush.bf16.msra.mxu0 %v2021
        %2039 = vmatpush.bf16.msra.mxu0 %v2020
        %2040 = vmatpush.bf16.msra.mxu0 %v2019
        %2041 = vmatpush.bf16.msra.mxu0 %v2018
        %2042 = vmatmul.bf16.gmra.mxu0 %v1965
        %v2043 = vpop.f32.mrf.mxu0
        %v2044 = vadd.f32 %v1984, %v2043
        %v2045 = vpop.f32.mrf.mxu0
        %v2046 = vadd.f32 %v1984, %v2045
        %2047 = vdwg.mxu0
        %vm2048 = vcmp.ge.f32.partialorder %v2044, 0.0
        %vm2049 = vcmp.ge.f32.partialorder %v2046, 0.0
        %v2050 = vmul.f32 %v2044, 0.01
        %v2051 = vmul.f32 %v2046, 0.01
        %v2052 = vsel %vm2048, %v2044, %v2050
        %v2053 = vsel %vm2049, %v2046, %v2051
        %vm2054 = vcmask 124928
        %2055 = vst.msk [vmem:[#allocation4] sm:$0x7] %vm2054, 0.0
        %s2056 = scalar_lea.vmem [#allocation4], 20
        %2057 = vst.msk [vmem:[%s2056] sm:$0x7] %vm2054, 0.0
        %2058 = vst.msk [vmem:[#allocation5] sm:$0x7] %vm2054, 0.0
        %s2059 = scalar_lea.vmem [#allocation5], 20
        %2060 = vst.msk [vmem:[%s2059] sm:$0x7] %vm2054, 0.0
        %vm2061 = vcmask 122880
        %2062 = vst.msk [vmem:[#allocation4] sm:$0x1] %vm2061, 0.0
        %2063 = vst.msk [vmem:[#allocation4 + $0x4] sm:$0x1] %vm2061, 0.0
        %2064 = vst.msk [vmem:[#allocation4 + $0x8] sm:$0x1] %vm2061, 0.0
        %2065 = vst.msk [vmem:[#allocation4 + $0xc] sm:$0x1] %vm2061, 0.0
        %2066 = vst.msk [vmem:[#allocation4 + $0x10] sm:$0x1] %vm2061, 0.0
        %2067 = vst.msk [vmem:[#allocation4 + $0x14] sm:$0x1] %vm2061, 0.0
        %2068 = vst.msk [vmem:[#allocation5 + $0x2] sm:$0x1] %vm2061, 0.0
        %2069 = vst.msk [vmem:[#allocation5 + $0x6] sm:$0x1] %vm2061, 0.0
        %2070 = vst.msk [vmem:[#allocation5 + $0xa] sm:$0x1] %vm2061, 0.0
        %2071 = vst.msk [vmem:[#allocation5 + $0xe] sm:$0x1] %vm2061, 0.0
        %2072 = vst.msk [vmem:[#allocation5 + $0x12] sm:$0x1] %vm2061, 0.0
        %2073 = vst.msk [vmem:[#allocation5 + $0x16] sm:$0x1] %vm2061, 0.0
        %vm2074 = vcmask 31744
        %v2075 = vsel %vm2074, %v1293, 0
        %v2078 = vsel %vm1962, %v2052, 0
        %2080 = vmatpush.msra.mxu0 0.0
        %2081 = vmatpush.msra.mxu0 0.0
        %2082 = vmatpush.msra.mxu0 0.0
        %2083 = vmatpush.msra.mxu0 0.0
        %2084 = vmatpush.msra.mxu0 0.0
        %2085 = vmatpush.msra.mxu0 0.0
        %2086 = vmatpush.msra.mxu0 0.0
        %2087 = vmatpush.msra.mxu0 0.0
        %2088 = vmatpush.msra.mxu0 0.0
        %2089 = vmatpush.msra.mxu0 0.0
        %2090 = vmatpush.msra.mxu0 0.0
        %2091 = vmatpush.msra.mxu0 0.0
        %2092 = vmatpush.msra.mxu0 0.0
        %2093 = vmatpush.msra.mxu0 0.0
        %2094 = vmatpush.msra.mxu0 0.0
        %2095 = vmatpush.msra.mxu0 %v2078
        %2096 = vmatmul.f32.gmra.mxu0 %v2075
        %v2097 = vpop.f32.mrf.mxu0
        %v2098 = vadd.f32 0.0, %v2097
        %2099 = vdwg.mxu0
        %v2100 = vsel %vm2074, %v1296, 0
        %2102 = vmatpush.msra.mxu0 0.0
        %2103 = vmatpush.msra.mxu0 0.0
        %2104 = vmatpush.msra.mxu0 0.0
        %2105 = vmatpush.msra.mxu0 0.0
        %2106 = vmatpush.msra.mxu0 0.0
        %2107 = vmatpush.msra.mxu0 0.0
        %2108 = vmatpush.msra.mxu0 0.0
        %2109 = vmatpush.msra.mxu0 0.0
        %2110 = vmatpush.msra.mxu0 0.0
        %2111 = vmatpush.msra.mxu0 0.0
        %2112 = vmatpush.msra.mxu0 0.0
        %2113 = vmatpush.msra.mxu0 0.0
        %2114 = vmatpush.msra.mxu0 0.0
        %2115 = vmatpush.msra.mxu0 0.0
        %2116 = vmatpush.msra.mxu0 0.0
        %2117 = vmatpush.msra.mxu0 %v2078
        %2118 = vmatmul.f32.gmra.mxu0 %v2100
        %v2119 = vpop.f32.mrf.mxu0
        %v2120 = vadd.f32 0.0, %v2119
        %2121 = vdwg.mxu0
        %s2122 = scalar_lea.vmem [#allocation5], 4
        %vm2123 = vcmask 123904
        %2124 = vst.msk [vmem:[%s2122] sm:$0x3] %vm2123, %v2098
        %s2125 = scalar_lea.vmem [#allocation4], 4
        %2126 = vst.msk [vmem:[%s2125 + $0x1] sm:$0x3] %vm2123, %v2120
        %v2127 = vrot.slane %v2052, 4
        %v2128 = vsel %vm1962, %v2127, 0
        %2130 = vmatpush.msra.mxu0 0.0
        %2131 = vmatpush.msra.mxu0 0.0
        %2132 = vmatpush.msra.mxu0 0.0
        %2133 = vmatpush.msra.mxu0 0.0
        %2134 = vmatpush.msra.mxu0 0.0
        %2135 = vmatpush.msra.mxu0 0.0
        %2136 = vmatpush.msra.mxu0 0.0
        %2137 = vmatpush.msra.mxu0 0.0
        %2138 = vmatpush.msra.mxu0 0.0
        %2139 = vmatpush.msra.mxu0 0.0
        %2140 = vmatpush.msra.mxu0 0.0
        %2141 = vmatpush.msra.mxu0 0.0
        %2142 = vmatpush.msra.mxu0 0.0
        %2143 = vmatpush.msra.mxu0 0.0
        %2144 = vmatpush.msra.mxu0 0.0
        %2145 = vmatpush.msra.mxu0 %v2128
        %2146 = vmatmul.f32.gmra.mxu0 %v2075
        %v2147 = vpop.f32.mrf.mxu0
        %v2148 = vadd.f32 0.0, %v2147
        %2149 = vdwg.mxu0
        %2150 = vmatpush.msra.mxu0 0.0
        %2151 = vmatpush.msra.mxu0 0.0
        %2152 = vmatpush.msra.mxu0 0.0
        %2153 = vmatpush.msra.mxu0 0.0
        %2154 = vmatpush.msra.mxu0 0.0
        %2155 = vmatpush.msra.mxu0 0.0
        %2156 = vmatpush.msra.mxu0 0.0
        %2157 = vmatpush.msra.mxu0 0.0
        %2158 = vmatpush.msra.mxu0 0.0
        %2159 = vmatpush.msra.mxu0 0.0
        %2160 = vmatpush.msra.mxu0 0.0
        %2161 = vmatpush.msra.mxu0 0.0
        %2162 = vmatpush.msra.mxu0 0.0
        %2163 = vmatpush.msra.mxu0 0.0
        %2164 = vmatpush.msra.mxu0 0.0
        %2165 = vmatpush.msra.mxu0 %v2128
        %2166 = vmatmul.f32.gmra.mxu0 %v2100
        %v2167 = vpop.f32.mrf.mxu0
        %v2168 = vadd.f32 0.0, %v2167
        %2169 = vdwg.mxu0
        %s2170 = scalar_lea.vmem [#allocation5], 8
        %2171 = vst.msk [vmem:[%s2170] sm:$0x3] %vm2123, %v2148
        %s2172 = scalar_lea.vmem [#allocation4], 8
        %2173 = vst.msk [vmem:[%s2172 + $0x1] sm:$0x3] %vm2123, %v2168
        %v2175 = vsel %vm1962, %v2053, 0
        %2177 = vmatpush.msra.mxu0 0.0
        %2178 = vmatpush.msra.mxu0 0.0
        %2179 = vmatpush.msra.mxu0 0.0
        %2180 = vmatpush.msra.mxu0 0.0
        %2181 = vmatpush.msra.mxu0 0.0
        %2182 = vmatpush.msra.mxu0 0.0
        %2183 = vmatpush.msra.mxu0 0.0
        %2184 = vmatpush.msra.mxu0 0.0
        %2185 = vmatpush.msra.mxu0 0.0
        %2186 = vmatpush.msra.mxu0 0.0
        %2187 = vmatpush.msra.mxu0 0.0
        %2188 = vmatpush.msra.mxu0 0.0
        %2189 = vmatpush.msra.mxu0 0.0
        %2190 = vmatpush.msra.mxu0 0.0
        %2191 = vmatpush.msra.mxu0 0.0
        %2192 = vmatpush.msra.mxu0 %v2175
        %2193 = vmatmul.f32.gmra.mxu0 %v2075
        %v2194 = vpop.f32.mrf.mxu0
        %v2195 = vadd.f32 0.0, %v2194
        %2196 = vdwg.mxu0
        %2197 = vmatpush.msra.mxu0 0.0
        %2198 = vmatpush.msra.mxu0 0.0
        %2199 = vmatpush.msra.mxu0 0.0
        %2200 = vmatpush.msra.mxu0 0.0
        %2201 = vmatpush.msra.mxu0 0.0
        %2202 = vmatpush.msra.mxu0 0.0
        %2203 = vmatpush.msra.mxu0 0.0
        %2204 = vmatpush.msra.mxu0 0.0
        %2205 = vmatpush.msra.mxu0 0.0
        %2206 = vmatpush.msra.mxu0 0.0
        %2207 = vmatpush.msra.mxu0 0.0
        %2208 = vmatpush.msra.mxu0 0.0
        %2209 = vmatpush.msra.mxu0 0.0
        %2210 = vmatpush.msra.mxu0 0.0
        %2211 = vmatpush.msra.mxu0 0.0
        %2212 = vmatpush.msra.mxu0 %v2175
        %2213 = vmatmul.f32.gmra.mxu0 %v2100
        %v2214 = vpop.f32.mrf.mxu0
        %v2215 = vadd.f32 0.0, %v2214
        %2216 = vdwg.mxu0
        %s2217 = scalar_lea.vmem [#allocation5], 12
        %2218 = vst.msk [vmem:[%s2217] sm:$0x3] %vm2123, %v2195
        %s2219 = scalar_lea.vmem [#allocation4], 12
        %2220 = vst.msk [vmem:[%s2219 + $0x1] sm:$0x3] %vm2123, %v2215
        %v2221 = vrot.slane %v2053, 4
        %v2222 = vsel %vm1962, %v2221, 0
        %2224 = vmatpush.msra.mxu0 0.0
        %2225 = vmatpush.msra.mxu0 0.0
        %2226 = vmatpush.msra.mxu0 0.0
        %2227 = vmatpush.msra.mxu0 0.0
        %2228 = vmatpush.msra.mxu0 0.0
        %2229 = vmatpush.msra.mxu0 0.0
        %2230 = vmatpush.msra.mxu0 0.0
        %2231 = vmatpush.msra.mxu0 0.0
        %2232 = vmatpush.msra.mxu0 0.0
        %2233 = vmatpush.msra.mxu0 0.0
        %2234 = vmatpush.msra.mxu0 0.0
        %2235 = vmatpush.msra.mxu0 0.0
        %2236 = vmatpush.msra.mxu0 0.0
        %2237 = vmatpush.msra.mxu0 0.0
        %2238 = vmatpush.msra.mxu0 0.0
        %2239 = vmatpush.msra.mxu0 %v2222
        %2240 = vmatmul.f32.gmra.mxu0 %v2075
        %v2241 = vpop.f32.mrf.mxu0
        %v2242 = vadd.f32 0.0, %v2241
        %2243 = vdwg.mxu0
        %2244 = vmatpush.msra.mxu0 0.0
        %2245 = vmatpush.msra.mxu0 0.0
        %2246 = vmatpush.msra.mxu0 0.0
        %2247 = vmatpush.msra.mxu0 0.0
        %2248 = vmatpush.msra.mxu0 0.0
        %2249 = vmatpush.msra.mxu0 0.0
        %2250 = vmatpush.msra.mxu0 0.0
        %2251 = vmatpush.msra.mxu0 0.0
        %2252 = vmatpush.msra.mxu0 0.0
        %2253 = vmatpush.msra.mxu0 0.0
        %2254 = vmatpush.msra.mxu0 0.0
        %2255 = vmatpush.msra.mxu0 0.0
        %2256 = vmatpush.msra.mxu0 0.0
        %2257 = vmatpush.msra.mxu0 0.0
        %2258 = vmatpush.msra.mxu0 0.0
        %2259 = vmatpush.msra.mxu0 %v2222
        %2260 = vmatmul.f32.gmra.mxu0 %v2100
        %v2261 = vpop.f32.mrf.mxu0
        %v2262 = vadd.f32 0.0, %v2261
        %2263 = vdwg.mxu0
        %s2264 = scalar_lea.vmem [#allocation5], 16
        %2265 = vst.msk [vmem:[%s2264] sm:$0x3] %vm2123, %v2242
        %s2266 = scalar_lea.vmem [#allocation4], 16
        %2267 = vst.msk [vmem:[%s2266 + $0x1] sm:$0x3] %vm2123, %v2262
        %v2268 = vld [vmem:[#allocation4] sm:$0x7]
        %v2269 = vld [vmem:[#allocation5] sm:$0x7]
        %v2270 = vld [vmem:[%s2125] sm:$0x7]
        %v2271 = vld [vmem:[%s2122] sm:$0x7]
        %v2272 = vld [vmem:[%s2172] sm:$0x7]
        %v2273 = vld [vmem:[%s2170] sm:$0x7]
        %v2274 = vld [vmem:[%s2219] sm:$0x7]
        %v2275 = vld [vmem:[%s2217] sm:$0x7]
        %2277 = vrot.lane.b32.xlu0 %v2269, 16
        %v2278 = vpop.permute.xlu0 %2277
        %v2281 = vrot.slane %v2268, 1
        %2282 = vrot.lane.b32.xlu0 %v2281, 32
        %v2283 = vpop.permute.xlu0 %2282
        %v2285 = vrot.slane %v2269, 1
        %2286 = vrot.lane.b32.xlu0 %v2285, 48
        %v2287 = vpop.permute.xlu0 %2286
        %2290 = vrot.lane.b32.xlu0 %v2270, 64
        %v2291 = vpop.permute.xlu0 %2290
        %2294 = vrot.lane.b32.xlu0 %v2271, 80
        %v2295 = vpop.permute.xlu0 %2294
        %v2297 = vrot.slane %v2270, 1
        %2298 = vrot.lane.b32.xlu0 %v2297, 96
        %v2299 = vpop.permute.xlu0 %2298
        %v2301 = vrot.slane %v2271, 1
        %2302 = vrot.lane.b32.xlu0 %v2301, 112
        %v2303 = vpop.permute.xlu0 %2302
        %2306 = vrot.lane.b32.xlu0 %v2273, 16
        %v2307 = vpop.permute.xlu0 %2306
        %v2310 = vrot.slane %v2272, 1
        %2311 = vrot.lane.b32.xlu0 %v2310, 32
        %v2312 = vpop.permute.xlu0 %2311
        %v2314 = vrot.slane %v2273, 1
        %2315 = vrot.lane.b32.xlu0 %v2314, 48
        %v2316 = vpop.permute.xlu0 %2315
        %2319 = vrot.lane.b32.xlu0 %v2274, 64
        %v2320 = vpop.permute.xlu0 %2319
        %2323 = vrot.lane.b32.xlu0 %v2275, 80
        %v2324 = vpop.permute.xlu0 %2323
        %v2326 = vrot.slane %v2274, 1
        %2327 = vrot.lane.b32.xlu0 %v2326, 96
        %v2328 = vpop.permute.xlu0 %2327
        %v2330 = vrot.slane %v2275, 1
        %2331 = vrot.lane.b32.xlu0 %v2330, 112
        %v2332 = vpop.permute.xlu0 %2331
        %v2334 = vsel %vm462, %v2268, %v2278
        %v2335 = vsel %vm466, %v2334, %v2283
        %v2336 = vsel %vm470, %v2335, %v2287
        %v2337 = vsel %vm474, %v2336, %v2291
        %v2338 = vsel %vm478, %v2337, %v2295
        %v2339 = vsel %vm482, %v2338, %v2299
        %v2340 = vsel %vm486, %v2339, %v2303
        %v2341 = vsel %vm462, %v2272, %v2307
        %v2342 = vsel %vm466, %v2341, %v2312
        %v2343 = vsel %vm470, %v2342, %v2316
        %v2344 = vsel %vm474, %v2343, %v2320
        %v2345 = vsel %vm478, %v2344, %v2324
        %v2346 = vsel %vm482, %v2345, %v2328
        %v2347 = vsel %vm486, %v2346, %v2332
        %v2348 = vld [vmem:[%s2266] sm:$0x7]
        %v2349 = vld [vmem:[%s2264] sm:$0x7]
        %v2350 = vld [vmem:[%s2056] sm:$0x7]
        %v2351 = vld [vmem:[%s2059] sm:$0x7]
        %2353 = vrot.lane.b32.xlu0 %v2349, 16
        %v2354 = vpop.permute.xlu0 %2353
        %v2357 = vrot.slane %v2348, 1
        %2358 = vrot.lane.b32.xlu0 %v2357, 32
        %v2359 = vpop.permute.xlu0 %2358
        %v2361 = vrot.slane %v2349, 1
        %2362 = vrot.lane.b32.xlu0 %v2361, 48
        %v2363 = vpop.permute.xlu0 %2362
        %2366 = vrot.lane.b32.xlu0 %v2350, 64
        %v2367 = vpop.permute.xlu0 %2366
        %2370 = vrot.lane.b32.xlu0 %v2351, 80
        %v2371 = vpop.permute.xlu0 %2370
        %v2373 = vrot.slane %v2350, 1
        %2374 = vrot.lane.b32.xlu0 %v2373, 96
        %v2375 = vpop.permute.xlu0 %2374
        %v2377 = vrot.slane %v2351, 1
        %2378 = vrot.lane.b32.xlu0 %v2377, 112
        %v2379 = vpop.permute.xlu0 %2378
        %v2381 = vsel %vm462, %v2348, %v2354
        %v2382 = vsel %vm466, %v2381, %v2359
        %v2383 = vsel %vm470, %v2382, %v2363
        %v2384 = vsel %vm474, %v2383, %v2367
        %v2385 = vsel %vm478, %v2384, %v2371
        %v2386 = vsel %vm482, %v2385, %v2375
        %v2387 = vsel %vm486, %v2386, %v2379
        %v2390 = vrot.slane %v2347, 6
        %v2391 = vrot.slane %v2387, 6
        %vm2394 = vcmask 1041408
        %v2395 = vsel %vm2394, %v2340, %v2390
        %v2396 = vsel %vm2394, %v2347, %v2391
        %v2397 = vpack.c.bf16 %v2395, %v2395
        %v2398 = vpack.c.bf16 %v2396, %v2396
        %v2399 = vld [vmem:[%s4] sm:$0xf]
        %v2400 = vld [vmem:[%s4 + $0x4] sm:$0xf]
        %v2401 = vld [vmem:[%s4 + $0x8] sm:$0xf]
        %v2402 = vld [vmem:[%s4 + $0xc] sm:$0xf]
        %v2403 = vld [vmem:[%s4 + $0x10] sm:$0xf]
        %v2404 = vld [vmem:[%s4 + $0x14] sm:$0xf]
        %v2405 = vld [vmem:[%s4 + $0x18] sm:$0xf]
        %v2406 = vld [vmem:[%s4 + $0x1c] sm:$0xf]
        %v2407 = vld [vmem:[%s4 + $0x20] sm:$0xf]
        %v2408 = vld [vmem:[%s4 + $0x24] sm:$0xf]
        %v2409 = vld [vmem:[%s4 + $0x28] sm:$0xf]
        %v2410 = vld [vmem:[%s4 + $0x2c] sm:$0xf]
        %v2411 = vld [vmem:[%s4 + $0x30] sm:$0xf]
        %v2412 = vld [vmem:[%s4 + $0x34] sm:$0xf]
        %v2413 = vld [vmem:[%s4 + $0x38] sm:$0xf]
        %v2414 = vld [vmem:[%s4 + $0x3c] sm:$0xf]
        %v2415 = vld [vmem:[%s4 + $0x40] sm:$0xf]
        %v2416 = vld [vmem:[%s4 + $0x44] sm:$0xf]
        %v2417 = vld [vmem:[%s4 + $0x48] sm:$0xf]
        %v2418 = vld [vmem:[%s4 + $0x4c] sm:$0xf]
        %v2419 = vld [vmem:[%s4 + $0x50] sm:$0xf]
        %v2420 = vld [vmem:[%s4 + $0x54] sm:$0xf]
        %v2421 = vld [vmem:[%s4 + $0x58] sm:$0xf]
        %v2422 = vld [vmem:[%s4 + $0x5c] sm:$0xf]
        %v2423 = vld [vmem:[%s4 + $0x60] sm:$0xf]
        %v2424 = vld [vmem:[%s4 + $0x64] sm:$0xf]
        %v2425 = vld [vmem:[%s4 + $0x68] sm:$0xf]
        %v2426 = vld [vmem:[%s4 + $0x6c] sm:$0xf]
        %v2427 = vld [vmem:[%s4 + $0x70] sm:$0xf]
        %v2428 = vld [vmem:[%s4 + $0x74] sm:$0xf]
        %v2429 = vld [vmem:[%s4 + $0x78] sm:$0xf]
        %v2430 = vld [vmem:[%s4 + $0x7c] sm:$0xf]
        %v2431 = vld [vmem:[%s7] sm:$0x1]
        %v2433 = vperm.slane %v2431, 0
        %v2467 = vunpack.c.l.b16 %v2399
        %v2468 = vunpack.c.l.b16 %v2400
        %v2469 = vunpack.c.l.b16 %v2401
        %v2470 = vunpack.c.l.b16 %v2402
        %v2471 = vunpack.c.l.b16 %v2403
        %v2472 = vunpack.c.l.b16 %v2404
        %v2473 = vunpack.c.l.b16 %v2405
        %v2474 = vunpack.c.l.b16 %v2406
        %v2475 = vunpack.c.l.b16 %v2407
        %v2476 = vunpack.c.l.b16 %v2408
        %v2477 = vunpack.c.l.b16 %v2409
        %v2478 = vunpack.c.l.b16 %v2410
        %v2479 = vunpack.c.l.b16 %v2411
        %v2480 = vunpack.c.l.b16 %v2412
        %v2481 = vunpack.c.l.b16 %v2413
        %v2482 = vunpack.c.l.b16 %v2414
        %v2483 = vunpack.c.l.b16 %v2415
        %v2484 = vunpack.c.l.b16 %v2416
        %v2485 = vunpack.c.l.b16 %v2417
        %v2486 = vunpack.c.l.b16 %v2418
        %v2487 = vunpack.c.l.b16 %v2419
        %v2488 = vunpack.c.l.b16 %v2420
        %v2489 = vunpack.c.l.b16 %v2421
        %v2490 = vunpack.c.l.b16 %v2422
        %v2491 = vunpack.c.l.b16 %v2423
        %v2492 = vunpack.c.l.b16 %v2424
        %v2493 = vunpack.c.l.b16 %v2425
        %v2494 = vunpack.c.l.b16 %v2426
        %v2495 = vunpack.c.l.b16 %v2427
        %v2496 = vunpack.c.l.b16 %v2428
        %v2497 = vunpack.c.l.b16 %v2429
        %v2498 = vunpack.c.l.b16 %v2430
        %v2499 = vpack.c.b16 %v2468, %v2467
        %v2500 = vpack.c.b16 %v2470, %v2469
        %v2501 = vpack.c.b16 %v2472, %v2471
        %v2502 = vpack.c.b16 %v2474, %v2473
        %v2503 = vpack.c.b16 %v2476, %v2475
        %v2504 = vpack.c.b16 %v2478, %v2477
        %v2505 = vpack.c.b16 %v2480, %v2479
        %v2506 = vpack.c.b16 %v2482, %v2481
        %v2507 = vpack.c.b16 %v2484, %v2483
        %v2508 = vpack.c.b16 %v2486, %v2485
        %v2509 = vpack.c.b16 %v2488, %v2487
        %v2510 = vpack.c.b16 %v2490, %v2489
        %v2511 = vpack.c.b16 %v2492, %v2491
        %v2512 = vpack.c.b16 %v2494, %v2493
        %v2513 = vpack.c.b16 %v2496, %v2495
        %v2514 = vpack.c.b16 %v2498, %v2497
        %2531 = vmatpush.bf16.msra.mxu0 %v2506
        %2532 = vmatpush.bf16.msra.mxu0 %v2505
        %2533 = vmatpush.bf16.msra.mxu0 %v2504
        %2534 = vmatpush.bf16.msra.mxu0 %v2503
        %2535 = vmatpush.bf16.msra.mxu0 %v2502
        %2536 = vmatpush.bf16.msra.mxu0 %v2501
        %2537 = vmatpush.bf16.msra.mxu0 %v2500
        %2538 = vmatpush.bf16.msra.mxu0 %v2499
        %2539 = vmatmul.bf16.gmra.mxu0 %v2397
        %v2540 = vpop.f32.mrf.mxu0
        %v2541 = vadd.f32 %v2433, %v2540
        %v2542 = vpop.f32.mrf.mxu0
        %2543 = vdwg.mxu0
        %2544 = vmatpush.bf16.msra.mxu0 %v2514
        %2545 = vmatpush.bf16.msra.mxu0 %v2513
        %2546 = vmatpush.bf16.msra.mxu0 %v2512
        %2547 = vmatpush.bf16.msra.mxu0 %v2511
        %2548 = vmatpush.bf16.msra.mxu0 %v2510
        %2549 = vmatpush.bf16.msra.mxu0 %v2509
        %2550 = vmatpush.bf16.msra.mxu0 %v2508
        %2551 = vmatpush.bf16.msra.mxu0 %v2507
        %2552 = vmatmul.bf16.gmra.mxu0 %v2398
        %v2553 = vpop.f32.mrf.mxu0
        %v2554 = vadd.f32 %v2541, %v2553
        %v2555 = vpop.f32.mrf.mxu0
        %2556 = vdwg.mxu0
        %vm2557 = vcmp.ge.f32.partialorder %v2554, 0.0
        %v2558 = vmul.f32 %v2554, 0.01
        %v2559 = vsel %vm2557, %v2554, %v2558
        %vm2560 = vcmask 257024
        %2561 = vst.msk [vmem:[#allocation6] sm:$0xf] %vm2560, 0.0
        %s2562 = scalar_lea.vmem [#allocation6], 12
        %2563 = vst.msk [vmem:[%s2562] sm:$0xf] %vm2560, 0.0
        %vm2564 = vcmask 253952
        %2565 = vst.msk [vmem:[#allocation6] sm:$0x1] %vm2564, 0.0
        %2566 = vst.msk [vmem:[#allocation6 + $0x4] sm:$0x1] %vm2564, 0.0
        %2567 = vst.msk [vmem:[#allocation6 + $0x8] sm:$0x1] %vm2564, 0.0
        %2568 = vst.msk [vmem:[#allocation6 + $0xc] sm:$0x1] %vm2564, 0.0
        %2569 = vst.msk [vmem:[#allocation6 + $0x3] sm:$0x1] %vm2564, 0.0
        %2570 = vst.msk [vmem:[#allocation6 + $0x7] sm:$0x1] %vm2564, 0.0
        %2571 = vst.msk [vmem:[#allocation6 + $0xb] sm:$0x1] %vm2564, 0.0
        %2572 = vst.msk [vmem:[#allocation6 + $0xf] sm:$0x1] %vm2564, 0.0
        %s2573 = scalar_lea.vmem [#allocation6], 4
        %vm2574 = vcmask 254976
        %2575 = vst.msk [vmem:[%s2573 + $0x1] sm:$0x3] %vm2574, %v2559
        %s2576 = scalar_lea.vmem [#allocation6], 8
        %vm2577 = vcmask 257026
        %2578 = vst.msk [vmem:[%s2576 - $0x1] sm:$0xc] %vm2577, %v2559
        %v2579 = vld [vmem:[#allocation6] sm:$0xf]
        %v2580 = vld [vmem:[%s2573] sm:$0xf]
        %v2581 = vld [vmem:[%s2576] sm:$0xf]
        %v2583 = vrot.slane %v2579, 1
        %2584 = vrot.lane.b32.xlu0 %v2583, 32
        %v2585 = vpop.permute.xlu0 %2584
        %v2587 = vrot.slane %v2579, 2
        %2588 = vrot.lane.b32.xlu0 %v2587, 64
        %v2589 = vpop.permute.xlu0 %2588
        %2592 = vrot.lane.b32.xlu0 %v2580, 96
        %v2593 = vpop.permute.xlu0 %2592
        %v2595 = vrot.slane %v2580, 1
        %v2597 = vrot.slane %v2580, 2
        %2598 = vrot.lane.b32.xlu0 %v2597, 32
        %v2599 = vpop.permute.xlu0 %2598
        %2602 = vrot.lane.b32.xlu0 %v2581, 64
        %v2603 = vpop.permute.xlu0 %2602
        %v2605 = vrot.slane %v2581, 1
        %2606 = vrot.lane.b32.xlu0 %v2605, 96
        %v2607 = vpop.permute.xlu0 %2606
        %v2609 = vrot.slane %v2581, 2
        %v2611 = vsel %vm466, %v2579, %v2585
        %v2612 = vsel %vm474, %v2611, %v2589
        %v2613 = vsel %vm482, %v2612, %v2593
        %v2614 = vsel %vm466, %v2595, %v2599
        %v2615 = vsel %vm474, %v2614, %v2603
        %v2616 = vsel %vm482, %v2615, %v2607
        %v2617 = vld [vmem:[%s2562] sm:$0xf]
        %2618 = vrot.lane.b32.xlu0 %v2595, 32
        %v2619 = vpop.permute.xlu0 %2618
        %2621 = vrot.lane.b32.xlu0 %v2597, 64
        %v2622 = vpop.permute.xlu0 %2621
        %2624 = vrot.lane.b32.xlu0 %v2581, 96
        %v2625 = vpop.permute.xlu0 %2624
        %2628 = vrot.lane.b32.xlu0 %v2609, 32
        %v2629 = vpop.permute.xlu0 %2628
        %2632 = vrot.lane.b32.xlu0 %v2617, 64
        %v2633 = vpop.permute.xlu0 %2632
        %v2635 = vrot.slane %v2617, 1
        %2636 = vrot.lane.b32.xlu0 %v2635, 96
        %v2637 = vpop.permute.xlu0 %2636
        %v2639 = vrot.slane %v2617, 2
        %v2640 = vsel %vm466, %v2580, %v2619
        %v2641 = vsel %vm474, %v2640, %v2622
        %v2642 = vsel %vm482, %v2641, %v2625
        %v2643 = vsel %vm466, %v2605, %v2629
        %v2644 = vsel %vm474, %v2643, %v2633
        %v2645 = vsel %vm482, %v2644, %v2637
        %v2648 = vrot.slane %v2642, 6
        %v2649 = vrot.slane %v2645, 6
        %v2650 = vrot.slane %v2639, 6
        %v2654 = vsel %vm2394, %v2613, %v2648
        %v2655 = vsel %vm2394, %v2616, %v2649
        %v2656 = vsel %vm2394, %v2609, %v2650
        %v2657 = vpack.c.bf16 %v2654, %v2654
        %v2658 = vpack.c.bf16 %v2655, %v2655
        %v2659 = vpack.c.bf16 %v2656, %v2656
        %v2660 = vld [vmem:[%s8] sm:$0xf]
        %v2661 = vld [vmem:[%s8 + $0x4] sm:$0xf]
        %v2662 = vld [vmem:[%s8 + $0x8] sm:$0xf]
        %v2663 = vld [vmem:[%s8 + $0xc] sm:$0xf]
        %v2664 = vld [vmem:[%s8 + $0x10] sm:$0xf]
        %v2665 = vld [vmem:[%s8 + $0x14] sm:$0xf]
        %v2666 = vld [vmem:[%s8 + $0x18] sm:$0xf]
        %v2667 = vld [vmem:[%s8 + $0x1c] sm:$0xf]
        %v2668 = vld [vmem:[%s8 + $0x20] sm:$0xf]
        %v2669 = vld [vmem:[%s8 + $0x24] sm:$0xf]
        %v2670 = vld [vmem:[%s8 + $0x28] sm:$0xf]
        %v2671 = vld [vmem:[%s8 + $0x2c] sm:$0xf]
        %v2672 = vld [vmem:[%s8 + $0x30] sm:$0xf]
        %v2673 = vld [vmem:[%s8 + $0x34] sm:$0xf]
        %v2674 = vld [vmem:[%s8 + $0x38] sm:$0xf]
        %v2675 = vld [vmem:[%s8 + $0x3c] sm:$0xf]
        %v2676 = vld [vmem:[%s8 + $0x40] sm:$0xf]
        %v2677 = vld [vmem:[%s8 + $0x44] sm:$0xf]
        %v2678 = vld [vmem:[%s8 + $0x48] sm:$0xf]
        %v2679 = vld [vmem:[%s8 + $0x4c] sm:$0xf]
        %v2680 = vld [vmem:[%s8 + $0x50] sm:$0xf]
        %v2681 = vld [vmem:[%s8 + $0x54] sm:$0xf]
        %v2682 = vld [vmem:[%s8 + $0x58] sm:$0xf]
        %v2683 = vld [vmem:[%s8 + $0x5c] sm:$0xf]
        %v2684 = vld [vmem:[%s8 + $0x60] sm:$0xf]
        %v2685 = vld [vmem:[%s8 + $0x64] sm:$0xf]
        %v2686 = vld [vmem:[%s8 + $0x68] sm:$0xf]
        %v2687 = vld [vmem:[%s8 + $0x6c] sm:$0xf]
        %v2688 = vld [vmem:[%s8 + $0x70] sm:$0xf]
        %v2689 = vld [vmem:[%s8 + $0x74] sm:$0xf]
        %v2690 = vld [vmem:[%s8 + $0x78] sm:$0xf]
        %v2691 = vld [vmem:[%s8 + $0x7c] sm:$0xf]
        %v2692 = vld [vmem:[%s8 + $0x80] sm:$0xf]
        %v2693 = vld [vmem:[%s8 + $0x84] sm:$0xf]
        %v2694 = vld [vmem:[%s8 + $0x88] sm:$0xf]
        %v2695 = vld [vmem:[%s8 + $0x8c] sm:$0xf]
        %v2732 = vunpack.c.l.b16 %v2660
        %v2733 = vunpack.c.l.b16 %v2661
        %v2734 = vunpack.c.l.b16 %v2662
        %v2735 = vunpack.c.l.b16 %v2663
        %v2736 = vunpack.c.l.b16 %v2664
        %v2737 = vunpack.c.l.b16 %v2665
        %v2738 = vunpack.c.l.b16 %v2666
        %v2739 = vunpack.c.l.b16 %v2667
        %v2740 = vunpack.c.l.b16 %v2668
        %v2741 = vunpack.c.l.b16 %v2669
        %v2742 = vunpack.c.l.b16 %v2670
        %v2743 = vunpack.c.l.b16 %v2671
        %v2744 = vunpack.c.l.b16 %v2672
        %v2745 = vunpack.c.l.b16 %v2673
        %v2746 = vunpack.c.l.b16 %v2674
        %v2747 = vunpack.c.l.b16 %v2675
        %v2748 = vunpack.c.l.b16 %v2676
        %v2749 = vunpack.c.l.b16 %v2677
        %v2750 = vunpack.c.l.b16 %v2678
        %v2751 = vunpack.c.l.b16 %v2679
        %v2752 = vunpack.c.l.b16 %v2680
        %v2753 = vunpack.c.l.b16 %v2681
        %v2754 = vunpack.c.l.b16 %v2682
        %v2755 = vunpack.c.l.b16 %v2683
        %v2756 = vunpack.c.l.b16 %v2684
        %v2757 = vunpack.c.l.b16 %v2685
        %v2758 = vunpack.c.l.b16 %v2686
        %v2759 = vunpack.c.l.b16 %v2687
        %v2760 = vunpack.c.l.b16 %v2688
        %v2761 = vunpack.c.l.b16 %v2689
        %v2762 = vunpack.c.l.b16 %v2690
        %v2763 = vunpack.c.l.b16 %v2691
        %v2764 = vunpack.c.l.b16 %v2692
        %v2765 = vunpack.c.l.b16 %v2693
        %v2766 = vunpack.c.l.b16 %v2694
        %v2767 = vunpack.c.l.b16 %v2695
        %v2768 = vpack.c.b16 %v2733, %v2732
        %v2769 = vpack.c.b16 %v2735, %v2734
        %v2770 = vpack.c.b16 %v2737, %v2736
        %v2771 = vpack.c.b16 %v2739, %v2738
        %v2772 = vpack.c.b16 %v2741, %v2740
        %v2773 = vpack.c.b16 %v2743, %v2742
        %v2774 = vpack.c.b16 %v2745, %v2744
        %v2775 = vpack.c.b16 %v2747, %v2746
        %v2776 = vpack.c.b16 %v2749, %v2748
        %v2777 = vpack.c.b16 %v2751, %v2750
        %v2778 = vpack.c.b16 %v2753, %v2752
        %v2779 = vpack.c.b16 %v2755, %v2754
        %v2780 = vpack.c.b16 %v2757, %v2756
        %v2781 = vpack.c.b16 %v2759, %v2758
        %v2782 = vpack.c.b16 %v2761, %v2760
        %v2783 = vpack.c.b16 %v2763, %v2762
        %v2784 = vpack.c.b16 %v2765, %v2764
        %v2785 = vpack.c.b16 %v2767, %v2766
        %v2805 = vsel %vm466, %v2659, 0
        %2807 = vmatpush.bf16.msra.mxu0 %v2775
        %2808 = vmatpush.bf16.msra.mxu0 %v2774
        %2809 = vmatpush.bf16.msra.mxu0 %v2773
        %2810 = vmatpush.bf16.msra.mxu0 %v2772
        %2811 = vmatpush.bf16.msra.mxu0 %v2771
        %2812 = vmatpush.bf16.msra.mxu0 %v2770
        %2813 = vmatpush.bf16.msra.mxu0 %v2769
        %2814 = vmatpush.bf16.msra.mxu0 %v2768
        %2815 = vmatmul.bf16.gmra.mxu0 %v2657
        %v2816 = vpop.f32.mrf.mxu0
        %v2817 = vadd.f32 0.0, %v2816
        %v2818 = vpop.f32.mrf.mxu0
        %2819 = vdwg.mxu0
        %2820 = vmatpush.bf16.msra.mxu0 %v2783
        %2821 = vmatpush.bf16.msra.mxu0 %v2782
        %2822 = vmatpush.bf16.msra.mxu0 %v2781
        %2823 = vmatpush.bf16.msra.mxu0 %v2780
        %2824 = vmatpush.bf16.msra.mxu0 %v2779
        %2825 = vmatpush.bf16.msra.mxu0 %v2778
        %2826 = vmatpush.bf16.msra.mxu0 %v2777
        %2827 = vmatpush.bf16.msra.mxu0 %v2776
        %2828 = vmatmul.bf16.gmra.mxu0 %v2658
        %v2829 = vpop.f32.mrf.mxu0
        %v2830 = vadd.f32 %v2817, %v2829
        %v2831 = vpop.f32.mrf.mxu0
        %2832 = vdwg.mxu0
        %2833 = vmatpush.bf16.msra.mxu0 0
        %2834 = vmatpush.bf16.msra.mxu0 0
        %2835 = vmatpush.bf16.msra.mxu0 0
        %2836 = vmatpush.bf16.msra.mxu0 0
        %2837 = vmatpush.bf16.msra.mxu0 0
        %2838 = vmatpush.bf16.msra.mxu0 0
        %2839 = vmatpush.bf16.msra.mxu0 %v2785
        %2840 = vmatpush.bf16.msra.mxu0 %v2784
        %2841 = vmatmul.bf16.gmra.mxu0 %v2805
        %v2842 = vpop.f32.mrf.mxu0
        %v2843 = vadd.f32 %v2830, %v2842
        %v2844 = vpop.f32.mrf.mxu0
        %2845 = vdwg.mxu0
        %2846 = vst [vmem:[%s340] sm:$0x3] %v2843
        %s2847 = scalar_lea.vmem %s340, 2 [#allocation7]
        %2848 = vst [vmem:[%s2847 - $0x2] sm:$0xc] %v2843
        %s2849 = sand.u32 %s230, 1
        %s2850 = scalar_lea.sflag [#allocation8], %s2849
        %s2851 = sand.u32 %s230, 1
        %s2852 = smul.addr %s2851, 4
        %s2853 = scalar_lea.vmem [#allocation7], %s2852
        // Predicated region
        $region57: #{tpu_custom_call.1} parent=55 // pred_check
          %p2854 = pneg %p240
        $region58: #{tpu_custom_call.1} parent=55 // pred_check_branch
          %2856 = sbr.rel (%p2854) target = $region60
        $region59: #{tpu_custom_call.1} parent=55 // pred_region
          %2858 = vsyncadd %s2850, 0
          %s2859 = smul.addr %s23, 2
          %s2860 = smul.addr %s2859, 2
          %s2861 = scalar_lea.hbm %s9, %s2860
          %s2862 = sshll.u32 %s2853, 4
          %s2863 = int_to_ptr.vmem [resolvable:$true] %s2862
          %s2864 = sshll.u32 %s2861, 4
          %s2865 = int_to_ptr.hbm [resolvable:$true] %s2864
          %2870 = dma.vmem_to_hbm [thread:$0]  %s2863, 64, %s2865, %s2850, 32, 32, 2
        $region60: #{tpu_custom_call.1} parent=55 // pred_fallthru
          _
      $region56: #{tpu_custom_call.1} parent=5 // pred_fallthru
        _
      %p2871 = scmp.le.s32.totalorder 2, %s18
      // Predicated region
      $region61: #{tpu_custom_call.1} parent=5 // pred_check
        %p2872 = pneg %p2871
      $region62: #{tpu_custom_call.1} parent=5 // pred_check_branch
        %2874 = sbr.rel (%p2872) target = $region64
      $region63: #{tpu_custom_call.1} parent=5 // pred_region
        %s2875 = ssub.s32 %s18, 2
        // Predicated region
        $region65: #{tpu_custom_call.1} parent=63 // pred_check
          %p2876 = pneg %p246
        $region66: #{tpu_custom_call.1} parent=63 // pred_check_branch
          %2878 = sbr.rel (%p2876) target = $region68
        $region67: #{tpu_custom_call.1} parent=63 // pred_region
          %s2879 = sand.u32 %s231, 1
          %s2880 = scalar_lea.sflag [#allocation8], %s2879
          %s2881 = sand.u32 %s231, 1
          %s2882 = smul.addr %s2881, 4
          %s2883 = scalar_lea.vmem [#allocation7], %s2882
          %2885 = dma.done %s2880, 64
        $region68: #{tpu_custom_call.1} parent=63 // pred_fallthru
          _
      $region64: #{tpu_custom_call.1} parent=5 // pred_fallthru
        _
    $region6: #{tpu_custom_call.1} parent=1 // loop_footer
      %s22 = sadd.s32 1, %s18
    $region7: #{tpu_custom_call.1} parent=1 // loop_footer_branch
      %17 = sbr.rel target = $region3
    $region8: #{tpu_custom_call.1} parent=1 // loop_exit
      _
    %2886 = vsyncpa [#allocation8], 1
    %s2887 = scalar_lea.sflag [#allocation8], 1
    %2888 = vsyncpa %s2887, 1

</llo_original>
